<compile_context>
chip_gen: v7x
topology: tpu7x:2x2x1
jax: 0.10.0
libtpu: 0.0.40
codegen_flags: <defaults>
</compile_context>

<pallas_src>
import numpy as np
import jax
import jax.numpy as jnp
from jax.experimental import pallas as pl
from jax.experimental.pallas import tpu as pltpu


# ---------------------------------------------------------------------------
# Fused LeNet5 forward kernel.
#
# Layouts (row index always = spatial_row * B + batch):
#   xs  : (28B, 28)    rows h*B+b,    cols w
#   c   : (24B, 512)   conv1+bias; cols [pw1*20+c1 | 256+pw1*20+c1] even|odd ow
#   cp  : (24B, 256)   relu + W-pooled conv1 (cols 240..255 are exact zeros)
#   p1  : (12B, 256)   pool1 output (rows ph1*B+b)
#   d   : ( 8B, 512)   conv2+bias; cols [pw2*50+c2 | 256+pw2*50+c2] even|odd ow
#   cp2 : ( 8B, 256)   relu + W-pooled conv2 (cols 200..255 zeros)
#   p2  : ( 4B, 256)   pool2 output (rows ph2*B+b)
#   h   : (  B, 512)   fc1+relu   (cols 500..511 zeros)
# ---------------------------------------------------------------------------
def lenet5_kernel(xs_ref, m1_ref, b1_ref, r1e_ref, r1o_ref,
                  m2_ref, b2_ref, r2e_ref, r2o_ref,
                  w1_ref, fb1_ref, w2_ref, fb2_ref, o_ref):
    B = o_ref.shape[0]
    f32 = jnp.float32
    xs = xs_ref[...]                                                 # (28B, 28)

    # ---- conv1 + bias; even/odd output-column parity packed in 512 lanes ----
    c = jnp.zeros((24 * B, 512), f32) + b1_ref[...]
    for kh in range(5):
        c = c + jnp.dot(xs[kh * B:(kh + 24) * B, :], m1_ref[kh],
                        preferred_element_type=f32)
    # relu + W-direction of the 2x2 pool: lane-aligned split at 256, then max.
    cp = jnp.maximum(jnp.maximum(c[:, :256], c[:, 256:]), 0.0)      # (24B,256)
    # H-direction of the pool via 0/1 row-selection matmuls (oh*B+b -> ph*B+b).
    p1 = jnp.maximum(jnp.dot(r1e_ref[...], cp, preferred_element_type=f32),
                     jnp.dot(r1o_ref[...], cp, preferred_element_type=f32))

    # ---- conv2 + bias + relu + pool2 (same scheme) ----
    d = jnp.zeros((8 * B, 512), f32) + b2_ref[...]
    for kh in range(5):
        d = d + jnp.dot(p1[kh * B:(kh + 8) * B, :], m2_ref[kh],
                        preferred_element_type=f32)
    cp2 = jnp.maximum(jnp.maximum(d[:, :256], d[:, 256:]), 0.0)     # (8B,256)
    p2 = jnp.maximum(jnp.dot(r2e_ref[...], cp2, preferred_element_type=f32),
                     jnp.dot(r2o_ref[...], cp2, preferred_element_type=f32))

    # ---- fc1 + relu: sum of 4 dots, no in-kernel flatten/concat needed ----
    h = jnp.zeros((B, 512), f32) + fb1_ref[...]
    for ph in range(4):
        h = h + jnp.dot(p2[ph * B:(ph + 1) * B, :], w1_ref[ph],
                        preferred_element_type=f32)
    h = jnp.maximum(h, 0.0)                                          # (B, 512)

    # ---- fc2 + self_imp_softmax over dim 1 ----
    logits = jnp.dot(h, w2_ref[...], preferred_element_type=f32) + fb2_ref[...]
    logits = logits - jnp.max(logits, axis=1, keepdims=True)
    e = jnp.exp(logits)
    o_ref[...] = e / jnp.sum(e, axis=1, keepdims=True)


# ---------------------------------------------------------------------------
# One-time weight re-layout (hoisted out of the jitted forward).
# ---------------------------------------------------------------------------
def pack_params(p, batch):
    w1 = np.asarray(p["conv1_w"], np.float32)      # (20, 1, 5, 5)
    w2 = np.asarray(p["conv2_w"], np.float32)      # (50, 20, 5, 5)
    b1 = np.asarray(p["conv1_b"], np.float32)      # (20,)
    b2 = np.asarray(p["conv2_b"], np.float32)      # (50,)

    # conv1 banded weights: rows = input col w (28); output cols pack both
    # pool parities: even ow -> [pw1*20+c1], odd ow -> [256 + pw1*20+c1].
    m1 = np.zeros((5, 28, 512), np.float32)
    for kh in range(5):
        for pw in range(12):
            for kw in range(5):
                m1[kh, 2 * pw + kw, pw * 20:(pw + 1) * 20] = w1[:, 0, kh, kw]
                m1[kh, 2 * pw + 1 + kw,
                   256 + pw * 20:256 + (pw + 1) * 20] = w1[:, 0, kh, kw]
    b1s = np.zeros((1, 512), np.float32)
    b1s[0, :240] = np.tile(b1, 12)
    b1s[0, 256:496] = np.tile(b1, 12)

    # conv2 banded weights: rows = pw1*20 + cin (padded to 256, zero pad rows),
    # cols = even [pw2*50+c2] | odd [256 + pw2*50+c2].
    m2 = np.zeros((5, 256, 512), np.float32)
    for kh in range(5):
        for pw2 in range(4):
            for kw in range(5):
                blk = w2[:, :, kh, kw].T                             # (20, 50)
                re_ = (2 * pw2 + kw) * 20
                ro_ = (2 * pw2 + 1 + kw) * 20
                m2[kh, re_:re_ + 20, pw2 * 50:(pw2 + 1) * 50] = blk
                m2[kh, ro_:ro_ + 20, 256 + pw2 * 50:256 + (pw2 + 1) * 50] = blk
    b2s = np.zeros((1, 512), np.float32)
    b2s[0, :200] = np.tile(b2, 4)
    b2s[0, 256:456] = np.tile(b2, 4)

    # 0/1 selectors for the row (sublane) half of each 2x2 pool.
    def rowsel(n_out, parity):
        r = np.zeros((n_out * batch, 2 * n_out * batch), np.float32)
        for ph in range(n_out):
            for b in range(batch):
                r[ph * batch + b, (2 * ph + parity) * batch + b] = 1.0
        return r

    # fc1 weight split per pooled spatial row ph2, contraction axis matching
    # p2 cols (pw2*50 + c2, padded to 256).  Absorbs PyTorch NCHW flatten
    # order (flat index = c2*16 + ph2*4 + pw2).  Output padded 500 -> 512.
    fc1_w = np.asarray(p["fc1_w"], np.float32).reshape(500, 50, 4, 4)
    w1p = np.zeros((4, 256, 512), np.float32)
    for ph2 in range(4):
        w1p[ph2, :200, :500] = np.transpose(fc1_w[:, :, ph2, :],
                                            (2, 1, 0)).reshape(200, 500)
    fb1 = np.zeros((1, 512), np.float32)
    fb1[0, :500] = np.asarray(p["fc1_b"], np.float32)

    # fc2 weight: rows padded 500 -> 512 with zeros (kills the h padding cols).
    w2r = np.zeros((512, 10), np.float32)
    w2r[:500, :] = np.asarray(p["fc2_w"], np.float32).T
    fb2 = np.asarray(p["fc2_b"], np.float32).reshape(1, 10)

    pk = {"m1": m1, "b1s": b1s, "r1e": rowsel(12, 0), "r1o": rowsel(12, 1),
          "m2": m2, "b2s": b2s, "r2e": rowsel(4, 0), "r2o": rowsel(4, 1),
          "w1p": w1p, "fb1": fb1, "w2r": w2r, "fb2": fb2}
    return {k: jnp.asarray(v) for k, v in pk.items()}


# ---------------------------------------------------------------------------
# Jitted forward: only the tiny input re-layout happens per call.
# ---------------------------------------------------------------------------
@jax.jit
def lenet5_forward(x, pk):
    B = x.shape[0]
    # (B,1,28,28) NCHW -> (28B, 28) with row = h*B + b  (tiny XLA glue)
    xs = jnp.transpose(x[:, 0, :, :], (1, 0, 2)).reshape(28 * B, 28).astype(jnp.float32)
    return pl.pallas_call(
        lenet5_kernel,
        out_shape=jax.ShapeDtypeStruct((B, 10), jnp.float32),
        compiler_params=pltpu.CompilerParams(vmem_limit_bytes=32 * 1024 * 1024),
    )(xs, pk["m1"], pk["b1s"], pk["r1e"], pk["r1o"],
      pk["m2"], pk["b2s"], pk["r2e"], pk["r2o"],
      pk["w1p"], pk["fb1"], pk["w2r"], pk["fb2"])


# ---------------------------------------------------------------------------
# Pure-JAX reference (matches the PyTorch forward) and deterministic params
# ---------------------------------------------------------------------------
def lenet5_reference(x, p):
    dn = ("NCHW", "OIHW", "NCHW")
    y = jax.lax.conv_general_dilated(x, p["conv1_w"], (1, 1), "VALID",
                                     dimension_numbers=dn)
    y = jax.nn.relu(y + p["conv1_b"][None, :, None, None])
    y = jax.lax.reduce_window(y, -jnp.inf, jax.lax.max, (1, 1, 2, 2),
                              (1, 1, 2, 2), "VALID")
    y = jax.lax.conv_general_dilated(y, p["conv2_w"], (1, 1), "VALID",
                                     dimension_numbers=dn)
    y = jax.nn.relu(y + p["conv2_b"][None, :, None, None])
    y = jax.lax.reduce_window(y, -jnp.inf, jax.lax.max, (1, 1, 2, 2),
                              (1, 1, 2, 2), "VALID")
    y = y.reshape(y.shape[0], -1)                                # NCHW flatten
    y = jax.nn.relu(y @ p["fc1_w"].T + p["fc1_b"])
    y = y @ p["fc2_w"].T + p["fc2_b"]
    y = y - jnp.max(y, axis=1, keepdims=True)
    y = jnp.exp(y)
    return y / jnp.sum(y, axis=1, keepdims=True)


def init_params(key):
    ks = jax.random.split(key, 8)
    return {
        "conv1_w": jax.random.normal(ks[0], (20, 1, 5, 5), jnp.float32) * 0.10,
        "conv1_b": jax.random.normal(ks[1], (20,), jnp.float32) * 0.10,
        "conv2_w": jax.random.normal(ks[2], (50, 20, 5, 5), jnp.float32) * 0.05,
        "conv2_b": jax.random.normal(ks[3], (50,), jnp.float32) * 0.05,
        "fc1_w": jax.random.normal(ks[4], (500, 800), jnp.float32) * 0.02,
        "fc1_b": jax.random.normal(ks[5], (500,), jnp.float32) * 0.02,
        "fc2_w": jax.random.normal(ks[6], (10, 500), jnp.float32) * 0.05,
        "fc2_b": jax.random.normal(ks[7], (10,), jnp.float32) * 0.05,
    }


if __name__ == "__main__":
    key = jax.random.PRNGKey(0)
    pkey, xkey = jax.random.split(key)
    params = init_params(pkey)
    x = jax.random.normal(xkey, (2, 1, 28, 28), jnp.float32)     # MNIST-shaped

    packed = pack_params(params, batch=x.shape[0])   # one-time weight re-layout

    out = lenet5_forward(x, packed)
    out = jax.block_until_ready(out)

    ref = lenet5_reference(x, params)
    err = float(jnp.max(jnp.abs(out - ref)))
    assert out.shape == (2, 10)
    assert err < 1e-3, f"mismatch vs reference: max abs err = {err}"
    print("KERNEL_OK")
</pallas_src>

<mosaic_0001>
module attributes {stable_mosaic.version = 11 : i64} {
  func.func @lenet5_kernel(%arg0: memref<56x28xf32, #tpu.memory_space<vmem>>, %arg1: memref<5x28x512xf32, #tpu.memory_space<vmem>>, %arg2: memref<1x512xf32, #tpu.memory_space<vmem>>, %arg3: memref<24x48xf32, #tpu.memory_space<vmem>>, %arg4: memref<24x48xf32, #tpu.memory_space<vmem>>, %arg5: memref<5x256x512xf32, #tpu.memory_space<vmem>>, %arg6: memref<1x512xf32, #tpu.memory_space<vmem>>, %arg7: memref<8x16xf32, #tpu.memory_space<vmem>>, %arg8: memref<8x16xf32, #tpu.memory_space<vmem>>, %arg9: memref<4x256x512xf32, #tpu.memory_space<vmem>>, %arg10: memref<1x512xf32, #tpu.memory_space<vmem>>, %arg11: memref<512x10xf32, #tpu.memory_space<vmem>>, %arg12: memref<1x10xf32, #tpu.memory_space<vmem>>, %arg13: memref<2x10xf32, #tpu.memory_space<vmem>>) attributes {dimension_semantics = [], scalar_prefetch = 0 : i64, scratch_operands = 0 : i64, tpu.core_type = #tpu.core_type<tc>} {
    %c0 = arith.constant 0 : index
    %c0_0 = arith.constant 0 : index
    %0 = vector.load %arg0[%c0, %c0_0] : memref<56x28xf32, #tpu.memory_space<vmem>>, vector<56x28xf32>
    %cst = arith.constant 0.000000e+00 : f32
    %1 = vector.broadcast %cst : f32 to vector<48x512xf32>
    %c0_1 = arith.constant 0 : index
    %c0_2 = arith.constant 0 : index
    %2 = vector.load %arg2[%c0_1, %c0_2] : memref<1x512xf32, #tpu.memory_space<vmem>>, vector<1x512xf32>
    %3 = vector.broadcast %2 : vector<1x512xf32> to vector<48x512xf32>
    %4 = arith.addf %1, %3 : vector<48x512xf32>
    %5 = vector.extract_strided_slice %0 {offsets = [0, 0], sizes = [48, 28], strides = [1, 1]} : vector<56x28xf32> to vector<48x28xf32>
    %c0_3 = arith.constant 0 : index
    %c0_4 = arith.constant 0 : index
    %c0_5 = arith.constant 0 : index
    %6 = vector.load %arg1[%c0_3, %c0_4, %c0_5] : memref<5x28x512xf32, #tpu.memory_space<vmem>>, vector<1x28x512xf32>
    %7 = vector.shape_cast %6 : vector<1x28x512xf32> to vector<28x512xf32>
    %cst_6 = arith.constant dense<0.000000e+00> : vector<48x512xf32>
    %8 = tpu.matmul %5, %7, %cst_6 {dimension_numbers = #tpu.dot_dimension_numbers<[1], [0], [0], [1], [0, 0, 1, 1], [], []>} : vector<48x28xf32>, vector<28x512xf32>, vector<48x512xf32> -> vector<48x512xf32>
    %9 = arith.addf %4, %8 : vector<48x512xf32>
    %10 = vector.extract_strided_slice %0 {offsets = [2, 0], sizes = [48, 28], strides = [1, 1]} : vector<56x28xf32> to vector<48x28xf32>
    %c1 = arith.constant 1 : index
    %c0_7 = arith.constant 0 : index
    %c0_8 = arith.constant 0 : index
    %11 = vector.load %arg1[%c1, %c0_7, %c0_8] : memref<5x28x512xf32, #tpu.memory_space<vmem>>, vector<1x28x512xf32>
    %12 = vector.shape_cast %11 : vector<1x28x512xf32> to vector<28x512xf32>
    %cst_9 = arith.constant dense<0.000000e+00> : vector<48x512xf32>
    %13 = tpu.matmul %10, %12, %cst_9 {dimension_numbers = #tpu.dot_dimension_numbers<[1], [0], [0], [1], [0, 0, 1, 1], [], []>} : vector<48x28xf32>, vector<28x512xf32>, vector<48x512xf32> -> vector<48x512xf32>
    %14 = arith.addf %9, %13 : vector<48x512xf32>
    %15 = vector.extract_strided_slice %0 {offsets = [4, 0], sizes = [48, 28], strides = [1, 1]} : vector<56x28xf32> to vector<48x28xf32>
    %c2 = arith.constant 2 : index
    %c0_10 = arith.constant 0 : index
    %c0_11 = arith.constant 0 : index
    %16 = vector.load %arg1[%c2, %c0_10, %c0_11] : memref<5x28x512xf32, #tpu.memory_space<vmem>>, vector<1x28x512xf32>
    %17 = vector.shape_cast %16 : vector<1x28x512xf32> to vector<28x512xf32>
    %cst_12 = arith.constant dense<0.000000e+00> : vector<48x512xf32>
    %18 = tpu.matmul %15, %17, %cst_12 {dimension_numbers = #tpu.dot_dimension_numbers<[1], [0], [0], [1], [0, 0, 1, 1], [], []>} : vector<48x28xf32>, vector<28x512xf32>, vector<48x512xf32> -> vector<48x512xf32>
    %19 = arith.addf %14, %18 : vector<48x512xf32>
    %20 = vector.extract_strided_slice %0 {offsets = [6, 0], sizes = [48, 28], strides = [1, 1]} : vector<56x28xf32> to vector<48x28xf32>
    %c3 = arith.constant 3 : index
    %c0_13 = arith.constant 0 : index
    %c0_14 = arith.constant 0 : index
    %21 = vector.load %arg1[%c3, %c0_13, %c0_14] : memref<5x28x512xf32, #tpu.memory_space<vmem>>, vector<1x28x512xf32>
    %22 = vector.shape_cast %21 : vector<1x28x512xf32> to vector<28x512xf32>
    %cst_15 = arith.constant dense<0.000000e+00> : vector<48x512xf32>
    %23 = tpu.matmul %20, %22, %cst_15 {dimension_numbers = #tpu.dot_dimension_numbers<[1], [0], [0], [1], [0, 0, 1, 1], [], []>} : vector<48x28xf32>, vector<28x512xf32>, vector<48x512xf32> -> vector<48x512xf32>
    %24 = arith.addf %19, %23 : vector<48x512xf32>
    %25 = vector.extract_strided_slice %0 {offsets = [8, 0], sizes = [48, 28], strides = [1, 1]} : vector<56x28xf32> to vector<48x28xf32>
    %c4 = arith.constant 4 : index
    %c0_16 = arith.constant 0 : index
    %c0_17 = arith.constant 0 : index
    %26 = vector.load %arg1[%c4, %c0_16, %c0_17] : memref<5x28x512xf32, #tpu.memory_space<vmem>>, vector<1x28x512xf32>
    %27 = vector.shape_cast %26 : vector<1x28x512xf32> to vector<28x512xf32>
    %cst_18 = arith.constant dense<0.000000e+00> : vector<48x512xf32>
    %28 = tpu.matmul %25, %27, %cst_18 {dimension_numbers = #tpu.dot_dimension_numbers<[1], [0], [0], [1], [0, 0, 1, 1], [], []>} : vector<48x28xf32>, vector<28x512xf32>, vector<48x512xf32> -> vector<48x512xf32>
    %29 = arith.addf %24, %28 : vector<48x512xf32>
    %30 = vector.extract_strided_slice %29 {offsets = [0, 0], sizes = [48, 256], strides = [1, 1]} : vector<48x512xf32> to vector<48x256xf32>
    %31 = vector.extract_strided_slice %29 {offsets = [0, 256], sizes = [48, 256], strides = [1, 1]} : vector<48x512xf32> to vector<48x256xf32>
    %32 = arith.maximumf %30, %31 : vector<48x256xf32>
    %cst_19 = arith.constant 0.000000e+00 : f32
    %33 = vector.broadcast %cst_19 : f32 to vector<48x256xf32>
    %34 = arith.maximumf %32, %33 : vector<48x256xf32>
    %c0_20 = arith.constant 0 : index
    %c0_21 = arith.constant 0 : index
    %35 = vector.load %arg3[%c0_20, %c0_21] : memref<24x48xf32, #tpu.memory_space<vmem>>, vector<24x48xf32>
    %cst_22 = arith.constant dense<0.000000e+00> : vector<24x256xf32>
    %36 = tpu.matmul %35, %34, %cst_22 {dimension_numbers = #tpu.dot_dimension_numbers<[1], [0], [0], [1], [0, 0, 1, 1], [], []>} : vector<24x48xf32>, vector<48x256xf32>, vector<24x256xf32> -> vector<24x256xf32>
    %c0_23 = arith.constant 0 : index
    %c0_24 = arith.constant 0 : index
    %37 = vector.load %arg4[%c0_23, %c0_24] : memref<24x48xf32, #tpu.memory_space<vmem>>, vector<24x48xf32>
    %cst_25 = arith.constant dense<0.000000e+00> : vector<24x256xf32>
    %38 = tpu.matmul %37, %34, %cst_25 {dimension_numbers = #tpu.dot_dimension_numbers<[1], [0], [0], [1], [0, 0, 1, 1], [], []>} : vector<24x48xf32>, vector<48x256xf32>, vector<24x256xf32> -> vector<24x256xf32>
    %39 = arith.maximumf %36, %38 : vector<24x256xf32>
    %cst_26 = arith.constant 0.000000e+00 : f32
    %40 = vector.broadcast %cst_26 : f32 to vector<16x512xf32>
    %c0_27 = arith.constant 0 : index
    %c0_28 = arith.constant 0 : index
    %41 = vector.load %arg6[%c0_27, %c0_28] : memref<1x512xf32, #tpu.memory_space<vmem>>, vector<1x512xf32>
    %42 = vector.broadcast %41 : vector<1x512xf32> to vector<16x512xf32>
    %43 = arith.addf %40, %42 : vector<16x512xf32>
    %44 = vector.extract_strided_slice %39 {offsets = [0, 0], sizes = [16, 256], strides = [1, 1]} : vector<24x256xf32> to vector<16x256xf32>
    %c0_29 = arith.constant 0 : index
    %c0_30 = arith.constant 0 : index
    %c0_31 = arith.constant 0 : index
    %45 = vector.load %arg5[%c0_29, %c0_30, %c0_31] : memref<5x256x512xf32, #tpu.memory_space<vmem>>, vector<1x256x512xf32>
    %46 = vector.shape_cast %45 : vector<1x256x512xf32> to vector<256x512xf32>
    %cst_32 = arith.constant dense<0.000000e+00> : vector<16x512xf32>
    %47 = tpu.matmul %44, %46, %cst_32 {dimension_numbers = #tpu.dot_dimension_numbers<[1], [0], [0], [1], [0, 0, 1, 1], [], []>} : vector<16x256xf32>, vector<256x512xf32>, vector<16x512xf32> -> vector<16x512xf32>
    %48 = arith.addf %43, %47 : vector<16x512xf32>
    %49 = vector.extract_strided_slice %39 {offsets = [2, 0], sizes = [16, 256], strides = [1, 1]} : vector<24x256xf32> to vector<16x256xf32>
    %c1_33 = arith.constant 1 : index
    %c0_34 = arith.constant 0 : index
    %c0_35 = arith.constant 0 : index
    %50 = vector.load %arg5[%c1_33, %c0_34, %c0_35] : memref<5x256x512xf32, #tpu.memory_space<vmem>>, vector<1x256x512xf32>
    %51 = vector.shape_cast %50 : vector<1x256x512xf32> to vector<256x512xf32>
    %cst_36 = arith.constant dense<0.000000e+00> : vector<16x512xf32>
    %52 = tpu.matmul %49, %51, %cst_36 {dimension_numbers = #tpu.dot_dimension_numbers<[1], [0], [0], [1], [0, 0, 1, 1], [], []>} : vector<16x256xf32>, vector<256x512xf32>, vector<16x512xf32> -> vector<16x512xf32>
    %53 = arith.addf %48, %52 : vector<16x512xf32>
    %54 = vector.extract_strided_slice %39 {offsets = [4, 0], sizes = [16, 256], strides = [1, 1]} : vector<24x256xf32> to vector<16x256xf32>
    %c2_37 = arith.constant 2 : index
    %c0_38 = arith.constant 0 : index
    %c0_39 = arith.constant 0 : index
    %55 = vector.load %arg5[%c2_37, %c0_38, %c0_39] : memref<5x256x512xf32, #tpu.memory_space<vmem>>, vector<1x256x512xf32>
    %56 = vector.shape_cast %55 : vector<1x256x512xf32> to vector<256x512xf32>
    %cst_40 = arith.constant dense<0.000000e+00> : vector<16x512xf32>
    %57 = tpu.matmul %54, %56, %cst_40 {dimension_numbers = #tpu.dot_dimension_numbers<[1], [0], [0], [1], [0, 0, 1, 1], [], []>} : vector<16x256xf32>, vector<256x512xf32>, vector<16x512xf32> -> vector<16x512xf32>
    %58 = arith.addf %53, %57 : vector<16x512xf32>
    %59 = vector.extract_strided_slice %39 {offsets = [6, 0], sizes = [16, 256], strides = [1, 1]} : vector<24x256xf32> to vector<16x256xf32>
    %c3_41 = arith.constant 3 : index
    %c0_42 = arith.constant 0 : index
    %c0_43 = arith.constant 0 : index
    %60 = vector.load %arg5[%c3_41, %c0_42, %c0_43] : memref<5x256x512xf32, #tpu.memory_space<vmem>>, vector<1x256x512xf32>
    %61 = vector.shape_cast %60 : vector<1x256x512xf32> to vector<256x512xf32>
    %cst_44 = arith.constant dense<0.000000e+00> : vector<16x512xf32>
    %62 = tpu.matmul %59, %61, %cst_44 {dimension_numbers = #tpu.dot_dimension_numbers<[1], [0], [0], [1], [0, 0, 1, 1], [], []>} : vector<16x256xf32>, vector<256x512xf32>, vector<16x512xf32> -> vector<16x512xf32>
    %63 = arith.addf %58, %62 : vector<16x512xf32>
    %64 = vector.extract_strided_slice %39 {offsets = [8, 0], sizes = [16, 256], strides = [1, 1]} : vector<24x256xf32> to vector<16x256xf32>
    %c4_45 = arith.constant 4 : index
    %c0_46 = arith.constant 0 : index
    %c0_47 = arith.constant 0 : index
    %65 = vector.load %arg5[%c4_45, %c0_46, %c0_47] : memref<5x256x512xf32, #tpu.memory_space<vmem>>, vector<1x256x512xf32>
    %66 = vector.shape_cast %65 : vector<1x256x512xf32> to vector<256x512xf32>
    %cst_48 = arith.constant dense<0.000000e+00> : vector<16x512xf32>
    %67 = tpu.matmul %64, %66, %cst_48 {dimension_numbers = #tpu.dot_dimension_numbers<[1], [0], [0], [1], [0, 0, 1, 1], [], []>} : vector<16x256xf32>, vector<256x512xf32>, vector<16x512xf32> -> vector<16x512xf32>
    %68 = arith.addf %63, %67 : vector<16x512xf32>
    %69 = vector.extract_strided_slice %68 {offsets = [0, 0], sizes = [16, 256], strides = [1, 1]} : vector<16x512xf32> to vector<16x256xf32>
    %70 = vector.extract_strided_slice %68 {offsets = [0, 256], sizes = [16, 256], strides = [1, 1]} : vector<16x512xf32> to vector<16x256xf32>
    %71 = arith.maximumf %69, %70 : vector<16x256xf32>
    %cst_49 = arith.constant 0.000000e+00 : f32
    %72 = vector.broadcast %cst_49 : f32 to vector<16x256xf32>
    %73 = arith.maximumf %71, %72 : vector<16x256xf32>
    %c0_50 = arith.constant 0 : index
    %c0_51 = arith.constant 0 : index
    %74 = vector.load %arg7[%c0_50, %c0_51] : memref<8x16xf32, #tpu.memory_space<vmem>>, vector<8x16xf32>
    %cst_52 = arith.constant dense<0.000000e+00> : vector<8x256xf32>
    %75 = tpu.matmul %74, %73, %cst_52 {dimension_numbers = #tpu.dot_dimension_numbers<[1], [0], [0], [1], [0, 0, 1, 1], [], []>} : vector<8x16xf32>, vector<16x256xf32>, vector<8x256xf32> -> vector<8x256xf32>
    %c0_53 = arith.constant 0 : index
    %c0_54 = arith.constant 0 : index
    %76 = vector.load %arg8[%c0_53, %c0_54] : memref<8x16xf32, #tpu.memory_space<vmem>>, vector<8x16xf32>
    %cst_55 = arith.constant dense<0.000000e+00> : vector<8x256xf32>
    %77 = tpu.matmul %76, %73, %cst_55 {dimension_numbers = #tpu.dot_dimension_numbers<[1], [0], [0], [1], [0, 0, 1, 1], [], []>} : vector<8x16xf32>, vector<16x256xf32>, vector<8x256xf32> -> vector<8x256xf32>
    %78 = arith.maximumf %75, %77 : vector<8x256xf32>
    %cst_56 = arith.constant 0.000000e+00 : f32
    %79 = vector.broadcast %cst_56 : f32 to vector<2x512xf32>
    %c0_57 = arith.constant 0 : index
    %c0_58 = arith.constant 0 : index
    %80 = vector.load %arg10[%c0_57, %c0_58] : memref<1x512xf32, #tpu.memory_space<vmem>>, vector<1x512xf32>
    %81 = vector.broadcast %80 : vector<1x512xf32> to vector<2x512xf32>
    %82 = arith.addf %79, %81 : vector<2x512xf32>
    %83 = vector.extract_strided_slice %78 {offsets = [0, 0], sizes = [2, 256], strides = [1, 1]} : vector<8x256xf32> to vector<2x256xf32>
    %c0_59 = arith.constant 0 : index
    %c0_60 = arith.constant 0 : index
    %c0_61 = arith.constant 0 : index
    %84 = vector.load %arg9[%c0_59, %c0_60, %c0_61] : memref<4x256x512xf32, #tpu.memory_space<vmem>>, vector<1x256x512xf32>
    %85 = vector.shape_cast %84 : vector<1x256x512xf32> to vector<256x512xf32>
    %cst_62 = arith.constant dense<0.000000e+00> : vector<2x512xf32>
    %86 = tpu.matmul %83, %85, %cst_62 {dimension_numbers = #tpu.dot_dimension_numbers<[1], [0], [0], [1], [0, 0, 1, 1], [], []>} : vector<2x256xf32>, vector<256x512xf32>, vector<2x512xf32> -> vector<2x512xf32>
    %87 = arith.addf %82, %86 : vector<2x512xf32>
    %88 = vector.extract_strided_slice %78 {offsets = [2, 0], sizes = [2, 256], strides = [1, 1]} : vector<8x256xf32> to vector<2x256xf32>
    %c1_63 = arith.constant 1 : index
    %c0_64 = arith.constant 0 : index
    %c0_65 = arith.constant 0 : index
    %89 = vector.load %arg9[%c1_63, %c0_64, %c0_65] : memref<4x256x512xf32, #tpu.memory_space<vmem>>, vector<1x256x512xf32>
    %90 = vector.shape_cast %89 : vector<1x256x512xf32> to vector<256x512xf32>
    %cst_66 = arith.constant dense<0.000000e+00> : vector<2x512xf32>
    %91 = tpu.matmul %88, %90, %cst_66 {dimension_numbers = #tpu.dot_dimension_numbers<[1], [0], [0], [1], [0, 0, 1, 1], [], []>} : vector<2x256xf32>, vector<256x512xf32>, vector<2x512xf32> -> vector<2x512xf32>
    %92 = arith.addf %87, %91 : vector<2x512xf32>
    %93 = vector.extract_strided_slice %78 {offsets = [4, 0], sizes = [2, 256], strides = [1, 1]} : vector<8x256xf32> to vector<2x256xf32>
    %c2_67 = arith.constant 2 : index
    %c0_68 = arith.constant 0 : index
    %c0_69 = arith.constant 0 : index
    %94 = vector.load %arg9[%c2_67, %c0_68, %c0_69] : memref<4x256x512xf32, #tpu.memory_space<vmem>>, vector<1x256x512xf32>
    %95 = vector.shape_cast %94 : vector<1x256x512xf32> to vector<256x512xf32>
    %cst_70 = arith.constant dense<0.000000e+00> : vector<2x512xf32>
    %96 = tpu.matmul %93, %95, %cst_70 {dimension_numbers = #tpu.dot_dimension_numbers<[1], [0], [0], [1], [0, 0, 1, 1], [], []>} : vector<2x256xf32>, vector<256x512xf32>, vector<2x512xf32> -> vector<2x512xf32>
    %97 = arith.addf %92, %96 : vector<2x512xf32>
    %98 = vector.extract_strided_slice %78 {offsets = [6, 0], sizes = [2, 256], strides = [1, 1]} : vector<8x256xf32> to vector<2x256xf32>
    %c3_71 = arith.constant 3 : index
    %c0_72 = arith.constant 0 : index
    %c0_73 = arith.constant 0 : index
    %99 = vector.load %arg9[%c3_71, %c0_72, %c0_73] : memref<4x256x512xf32, #tpu.memory_space<vmem>>, vector<1x256x512xf32>
    %100 = vector.shape_cast %99 : vector<1x256x512xf32> to vector<256x512xf32>
    %cst_74 = arith.constant dense<0.000000e+00> : vector<2x512xf32>
    %101 = tpu.matmul %98, %100, %cst_74 {dimension_numbers = #tpu.dot_dimension_numbers<[1], [0], [0], [1], [0, 0, 1, 1], [], []>} : vector<2x256xf32>, vector<256x512xf32>, vector<2x512xf32> -> vector<2x512xf32>
    %102 = arith.addf %97, %101 : vector<2x512xf32>
    %cst_75 = arith.constant 0.000000e+00 : f32
    %103 = vector.broadcast %cst_75 : f32 to vector<2x512xf32>
    %104 = arith.maximumf %102, %103 : vector<2x512xf32>
    %c0_76 = arith.constant 0 : index
    %c0_77 = arith.constant 0 : index
    %105 = vector.load %arg11[%c0_76, %c0_77] : memref<512x10xf32, #tpu.memory_space<vmem>>, vector<512x10xf32>
    %cst_78 = arith.constant dense<0.000000e+00> : vector<2x10xf32>
    %106 = tpu.matmul %104, %105, %cst_78 {dimension_numbers = #tpu.dot_dimension_numbers<[1], [0], [0], [1], [0, 0, 1, 1], [], []>} : vector<2x512xf32>, vector<512x10xf32>, vector<2x10xf32> -> vector<2x10xf32>
    %c0_79 = arith.constant 0 : index
    %c0_80 = arith.constant 0 : index
    %107 = vector.load %arg12[%c0_79, %c0_80] : memref<1x10xf32, #tpu.memory_space<vmem>>, vector<1x10xf32>
    %108 = vector.broadcast %107 : vector<1x10xf32> to vector<2x10xf32>
    %109 = arith.addf %106, %108 : vector<2x10xf32>
    %cst_81 = arith.constant dense<0xFF800000> : vector<2xf32>
    %110 = vector.multi_reduction <maximumf>, %109, %cst_81 [1] : vector<2x10xf32> to vector<2xf32>
    %111 = vector.shape_cast %110 : vector<2xf32> to vector<2x1xf32>
    %112 = vector.broadcast %111 : vector<2x1xf32> to vector<2x10xf32>
    %113 = arith.subf %109, %112 : vector<2x10xf32>
    %114 = math.exp %113 : vector<2x10xf32>
    %cst_82 = arith.constant dense<0.000000e+00> : vector<2xf32>
    %115 = vector.multi_reduction <add>, %114, %cst_82 [1] : vector<2x10xf32> to vector<2xf32>
    %116 = vector.shape_cast %115 : vector<2xf32> to vector<2x1xf32>
    %117 = vector.broadcast %116 : vector<2x1xf32> to vector<2x10xf32>
    %118 = arith.divf %114, %117 : vector<2x10xf32>
    %c0_83 = arith.constant 0 : index
    %c0_84 = arith.constant 0 : index
    %119 = vector.load %arg13[%c0_83, %c0_84] : memref<2x10xf32, #tpu.memory_space<vmem>>, vector<2x10xf32>
    tpu.vector_store %arg13[%c0_83, %c0_84], %118 {strides = array<i32>} : memref<2x10xf32, #tpu.memory_space<vmem>>, vector<2x10xf32>,
    return
  }
}

</mosaic_0001>

<llo_original>
// kernel: lenet5_forward.1
$region0: #{lenet5_forward.1}
  #allocation0 [shape = 'u32[]', space=smem, size = 0x4, offset = 0x4, fixed_abs, tag = 'smem constant byte address 0x4 - core index']
  #allocation1 [shape = 'u32[144,128]{1,0:T(1,128)}', space=vmem, size = 0x12000, scoped, tag = 'internal scratch']
  %s0 = inlined_call_operand.vmem [shape: f32[56,28], index: 0, kind: input, shape index: {}]
  %s1 = inlined_call_operand.hbm [shape: f32[5,28,512], index: 1, kind: input, shape index: {}]
  %s2 = inlined_call_operand.hbm [shape: f32[1,512], index: 2, kind: input, shape index: {}]
  %s3 = inlined_call_operand.hbm [shape: f32[24,48], index: 3, kind: input, shape index: {}]
  %s4 = inlined_call_operand.hbm [shape: f32[24,48], index: 4, kind: input, shape index: {}]
  %s5 = inlined_call_operand.hbm [shape: f32[5,256,512], index: 5, kind: input, shape index: {}]
  %s6 = inlined_call_operand.hbm [shape: f32[1,512], index: 6, kind: input, shape index: {}]
  %s7 = inlined_call_operand.hbm [shape: f32[8,16], index: 7, kind: input, shape index: {}]
  %s8 = inlined_call_operand.hbm [shape: f32[8,16], index: 8, kind: input, shape index: {}]
  %s9 = inlined_call_operand.hbm [shape: f32[4,256,512], index: 9, kind: input, shape index: {}]
  %s10 = inlined_call_operand.hbm [shape: f32[1,512], index: 10, kind: input, shape index: {}]
  %s11 = inlined_call_operand.vmem [shape: f32[512,10], index: 11, kind: input, shape index: {}]
  %s12 = inlined_call_operand.hbm [shape: f32[1,10], index: 12, kind: input, shape index: {}]
  %s13 = inlined_call_operand.hbm [shape: f32[2,10], index: 13, kind: output, shape index: {}]
  %s14 = sld [smem:[#allocation0]]
  $region106: #{lenet5_forward.1} parent=0
    _
  %s16 = ssub.s32 1, %s14
  %s17 = scalar_select 0, %s16, %s14
  $region1: #{lenet5_forward.1} parent=0
    #allocation2 [shape = 'u8[327680]{0}', space=vmem, size = 0x50000, scoped, tag = 'input window, operand 1, single buffered']
    #allocation3 [shape = 's32[1]{0}', space=sflag, size = 0x4, scoped, tag = 'scoped memory for lenet5_forward.1']
    #allocation4 [shape = 's32[1]{0}', space=sflag, size = 0x4, scoped, tag = 'scoped memory for lenet5_forward.1']
    #allocation5 [shape = 'u8[2048]{0}', space=vmem, size = 0x800, scoped, tag = 'input window, operand 2, single buffered']
    #allocation6 [shape = 's32[1]{0}', space=sflag, size = 0x4, scoped, tag = 'scoped memory for lenet5_forward.1']
    #allocation7 [shape = 'u8[12288]{0}', space=vmem, size = 0x3000, scoped, tag = 'input window, operand 3, single buffered']
    #allocation8 [shape = 'u8[12288]{0}', space=vmem, size = 0x3000, scoped, tag = 'input window, operand 4, single buffered']
    #allocation9 [shape = 's32[1]{0}', space=sflag, size = 0x4, scoped, tag = 'scoped memory for lenet5_forward.1']
    #allocation10 [shape = 'u8[2621440]{0}', space=vmem, size = 0x280000, scoped, tag = 'input window, operand 5, single buffered']
    #allocation11 [shape = 'u8[2048]{0}', space=vmem, size = 0x800, scoped, tag = 'input window, operand 6, single buffered']
    #allocation12 [shape = 's32[1]{0}', space=sflag, size = 0x4, scoped, tag = 'scoped memory for lenet5_forward.1']
    #allocation13 [shape = 'u8[4096]{0}', space=vmem, size = 0x1000, scoped, tag = 'input window, operand 7, single buffered']
    #allocation14 [shape = 'u8[4096]{0}', space=vmem, size = 0x1000, scoped, tag = 'input window, operand 8, single buffered']
    #allocation15 [shape = 's32[1]{0}', space=sflag, size = 0x4, scoped, tag = 'scoped memory for lenet5_forward.1']
    #allocation16 [shape = 'u8[2097152]{0}', space=vmem, size = 0x200000, scoped, tag = 'input window, operand 9, single buffered']
    #allocation17 [shape = 'u8[2048]{0}', space=vmem, size = 0x800, scoped, tag = 'input window, operand 10, single buffered']
    #allocation18 [shape = 's32[1]{0}', space=sflag, size = 0x4, scoped, tag = 'scoped memory for lenet5_forward.1']
    #allocation19 [shape = 'u8[512]{0}', space=vmem, size = 0x400, scoped, tag = 'input window, operand 12, single buffered']
    #allocation20 [shape = 'u8[1024]{0}', space=vmem, size = 0x400, scoped, tag = 'output window, operand 0, single buffered']
    %18 = vsyncpa [#allocation3], 0
    %19 = vsyncpa [#allocation6], 0
    %20 = vsyncpa [#allocation9], 0
    %21 = vsyncpa [#allocation12], 0
    %22 = vsyncpa [#allocation15], 0
    %23 = vsyncpa [#allocation18], 0
    %24 = vsyncpa [#allocation4], 0
    // Predicated region
    $region2: #{lenet5_forward.1} parent=1 // pred_check
      _
    $region3: #{lenet5_forward.1} parent=1 // pred_check_branch
      %26 = sbr.rel (0) target = $region5
    $region4: #{lenet5_forward.1} parent=1 // pred_region
      _
    $region5: #{lenet5_forward.1} parent=1 // pred_fallthru
      _
    // Predicated region
    $region6: #{lenet5_forward.1} parent=1 // pred_check
      _
    $region7: #{lenet5_forward.1} parent=1 // pred_check_branch
      %28 = sbr.rel (0) target = $region9
    $region8: #{lenet5_forward.1} parent=1 // pred_region
      %s30 = ssub.s32 10240, 10240
      %31 = vsyncadd [#allocation3], %s30
      %s32 = sshll.u32 [#allocation2], 4
      %s33 = int_to_ptr.vmem [resolvable:$true] %s32
      %38 = dma.hbm_to_vmem [thread:$0]  %s1, 10240, %s33, [#allocation3], 512, 512, 32
    $region9: #{lenet5_forward.1} parent=1 // pred_fallthru
      _
    // Predicated region
    $region10: #{lenet5_forward.1} parent=1 // pred_check
      _
    $region11: #{lenet5_forward.1} parent=1 // pred_check_branch
      %40 = sbr.rel (0) target = $region13
    $region12: #{lenet5_forward.1} parent=1 // pred_region
      %s42 = ssub.s32 64, 64
      %43 = vsyncadd [#allocation6], %s42
      %s45 = sshll.u32 [#allocation5], 4
      %s46 = int_to_ptr.vmem [resolvable:$true] %s45
      %48 = dma.hbm_to_vmem [thread:$0]  %s2, 64, %s46, [#allocation6]
    $region13: #{lenet5_forward.1} parent=1 // pred_fallthru
      _
    // Predicated region
    $region14: #{lenet5_forward.1} parent=1 // pred_check
      _
    $region15: #{lenet5_forward.1} parent=1 // pred_check_branch
      %50 = sbr.rel (0) target = $region17
    $region16: #{lenet5_forward.1} parent=1 // pred_region
      %s52 = ssub.s32 384, 384
      %53 = vsyncadd [#allocation6], %s52
      %s54 = sshll.u32 [#allocation7], 4
      %s55 = int_to_ptr.vmem [resolvable:$true] %s54
      %60 = dma.hbm_to_vmem [thread:$0]  %s3, 384, %s55, [#allocation6], 128, 128, 8
    $region17: #{lenet5_forward.1} parent=1 // pred_fallthru
      _
    // Predicated region
    $region18: #{lenet5_forward.1} parent=1 // pred_check
      _
    $region19: #{lenet5_forward.1} parent=1 // pred_check_branch
      %62 = sbr.rel (0) target = $region21
    $region20: #{lenet5_forward.1} parent=1 // pred_region
      %s64 = ssub.s32 384, 384
      %65 = vsyncadd [#allocation9], %s64
      %s66 = sshll.u32 [#allocation8], 4
      %s67 = int_to_ptr.vmem [resolvable:$true] %s66
      %72 = dma.hbm_to_vmem [thread:$0]  %s4, 384, %s67, [#allocation9], 128, 128, 8
    $region21: #{lenet5_forward.1} parent=1 // pred_fallthru
      _
    // Predicated region
    $region22: #{lenet5_forward.1} parent=1 // pred_check
      _
    $region23: #{lenet5_forward.1} parent=1 // pred_check_branch
      %74 = sbr.rel (0) target = $region25
    $region24: #{lenet5_forward.1} parent=1 // pred_region
      %s76 = ssub.s32 81920, 81920
      %77 = vsyncadd [#allocation9], %s76
      %s78 = sshll.u32 [#allocation10], 4
      %s79 = int_to_ptr.vmem [resolvable:$true] %s78
      %84 = dma.hbm_to_vmem [thread:$0]  %s5, 81920, %s79, [#allocation9], 512, 512, 32
    $region25: #{lenet5_forward.1} parent=1 // pred_fallthru
      _
    // Predicated region
    $region26: #{lenet5_forward.1} parent=1 // pred_check
      _
    $region27: #{lenet5_forward.1} parent=1 // pred_check_branch
      %86 = sbr.rel (0) target = $region29
    $region28: #{lenet5_forward.1} parent=1 // pred_region
      %s88 = ssub.s32 64, 64
      %89 = vsyncadd [#allocation12], %s88
      %s91 = sshll.u32 [#allocation11], 4
      %s92 = int_to_ptr.vmem [resolvable:$true] %s91
      %94 = dma.hbm_to_vmem [thread:$0]  %s6, 64, %s92, [#allocation12]
    $region29: #{lenet5_forward.1} parent=1 // pred_fallthru
      _
    // Predicated region
    $region30: #{lenet5_forward.1} parent=1 // pred_check
      _
    $region31: #{lenet5_forward.1} parent=1 // pred_check_branch
      %96 = sbr.rel (0) target = $region33
    $region32: #{lenet5_forward.1} parent=1 // pred_region
      %s98 = ssub.s32 128, 128
      %99 = vsyncadd [#allocation12], %s98
      %s101 = sshll.u32 [#allocation13], 4
      %s102 = int_to_ptr.vmem [resolvable:$true] %s101
      %104 = dma.hbm_to_vmem [thread:$0]  %s7, 128, %s102, [#allocation12]
    $region33: #{lenet5_forward.1} parent=1 // pred_fallthru
      _
    // Predicated region
    $region34: #{lenet5_forward.1} parent=1 // pred_check
      _
    $region35: #{lenet5_forward.1} parent=1 // pred_check_branch
      %106 = sbr.rel (0) target = $region37
    $region36: #{lenet5_forward.1} parent=1 // pred_region
      %s108 = ssub.s32 128, 128
      %109 = vsyncadd [#allocation15], %s108
      %s111 = sshll.u32 [#allocation14], 4
      %s112 = int_to_ptr.vmem [resolvable:$true] %s111
      %114 = dma.hbm_to_vmem [thread:$0]  %s8, 128, %s112, [#allocation15]
    $region37: #{lenet5_forward.1} parent=1 // pred_fallthru
      _
    // Predicated region
    $region38: #{lenet5_forward.1} parent=1 // pred_check
      _
    $region39: #{lenet5_forward.1} parent=1 // pred_check_branch
      %116 = sbr.rel (0) target = $region41
    $region40: #{lenet5_forward.1} parent=1 // pred_region
      %s118 = ssub.s32 65536, 65536
      %119 = vsyncadd [#allocation15], %s118
      %s120 = sshll.u32 [#allocation16], 4
      %s121 = int_to_ptr.vmem [resolvable:$true] %s120
      %126 = dma.hbm_to_vmem [thread:$0]  %s9, 65536, %s121, [#allocation15], 512, 512, 32
    $region41: #{lenet5_forward.1} parent=1 // pred_fallthru
      _
    // Predicated region
    $region42: #{lenet5_forward.1} parent=1 // pred_check
      _
    $region43: #{lenet5_forward.1} parent=1 // pred_check_branch
      %128 = sbr.rel (0) target = $region45
    $region44: #{lenet5_forward.1} parent=1 // pred_region
      %s130 = ssub.s32 64, 64
      %131 = vsyncadd [#allocation18], %s130
      %s133 = sshll.u32 [#allocation17], 4
      %s134 = int_to_ptr.vmem [resolvable:$true] %s133
      %136 = dma.hbm_to_vmem [thread:$0]  %s10, 64, %s134, [#allocation18]
    $region45: #{lenet5_forward.1} parent=1 // pred_fallthru
      _
    // Predicated region
    $region46: #{lenet5_forward.1} parent=1 // pred_check
      _
    $region47: #{lenet5_forward.1} parent=1 // pred_check_branch
      %138 = sbr.rel (0) target = $region49
    $region48: #{lenet5_forward.1} parent=1 // pred_region
      _
    $region49: #{lenet5_forward.1} parent=1 // pred_fallthru
      _
    // Predicated region
    $region50: #{lenet5_forward.1} parent=1 // pred_check
      _
    $region51: #{lenet5_forward.1} parent=1 // pred_check_branch
      %140 = sbr.rel (0) target = $region53
    $region52: #{lenet5_forward.1} parent=1 // pred_region
      %s142 = ssub.s32 16, 16
      %143 = vsyncadd [#allocation18], %s142
      %s145 = sshll.u32 [#allocation19], 4
      %s146 = int_to_ptr.vmem [resolvable:$true] %s145
      %148 = dma.hbm_to_vmem [thread:$0]  %s12, 16, %s146, [#allocation18]
    $region53: #{lenet5_forward.1} parent=1 // pred_fallthru
      _
    // Predicated region
    $region54: #{lenet5_forward.1} parent=1 // pred_check
      _
    $region55: #{lenet5_forward.1} parent=1 // pred_check_branch
      %150 = sbr.rel (0) target = $region57
    $region56: #{lenet5_forward.1} parent=1 // pred_region
      %151 = dma.done [#allocation3], 10240
    $region57: #{lenet5_forward.1} parent=1 // pred_fallthru
      _
    // Predicated region
    $region58: #{lenet5_forward.1} parent=1 // pred_check
      _
    $region59: #{lenet5_forward.1} parent=1 // pred_check_branch
      %153 = sbr.rel (0) target = $region61
    $region60: #{lenet5_forward.1} parent=1 // pred_region
      %154 = dma.done [#allocation6], 64
    $region61: #{lenet5_forward.1} parent=1 // pred_fallthru
      _
    // Predicated region
    $region62: #{lenet5_forward.1} parent=1 // pred_check
      _
    $region63: #{lenet5_forward.1} parent=1 // pred_check_branch
      %156 = sbr.rel (0) target = $region65
    $region64: #{lenet5_forward.1} parent=1 // pred_region
      %157 = dma.done [#allocation6], 384
    $region65: #{lenet5_forward.1} parent=1 // pred_fallthru
      _
    // Predicated region
    $region66: #{lenet5_forward.1} parent=1 // pred_check
      _
    $region67: #{lenet5_forward.1} parent=1 // pred_check_branch
      %159 = sbr.rel (0) target = $region69
    $region68: #{lenet5_forward.1} parent=1 // pred_region
      %160 = dma.done [#allocation9], 384
    $region69: #{lenet5_forward.1} parent=1 // pred_fallthru
      _
    // Predicated region
    $region70: #{lenet5_forward.1} parent=1 // pred_check
      _
    $region71: #{lenet5_forward.1} parent=1 // pred_check_branch
      %162 = sbr.rel (0) target = $region73
    $region72: #{lenet5_forward.1} parent=1 // pred_region
      %163 = dma.done [#allocation9], 81920
    $region73: #{lenet5_forward.1} parent=1 // pred_fallthru
      _
    // Predicated region
    $region74: #{lenet5_forward.1} parent=1 // pred_check
      _
    $region75: #{lenet5_forward.1} parent=1 // pred_check_branch
      %165 = sbr.rel (0) target = $region77
    $region76: #{lenet5_forward.1} parent=1 // pred_region
      %166 = dma.done [#allocation12], 64
    $region77: #{lenet5_forward.1} parent=1 // pred_fallthru
      _
    // Predicated region
    $region78: #{lenet5_forward.1} parent=1 // pred_check
      _
    $region79: #{lenet5_forward.1} parent=1 // pred_check_branch
      %168 = sbr.rel (0) target = $region81
    $region80: #{lenet5_forward.1} parent=1 // pred_region
      %169 = dma.done [#allocation12], 128
    $region81: #{lenet5_forward.1} parent=1 // pred_fallthru
      _
    // Predicated region
    $region82: #{lenet5_forward.1} parent=1 // pred_check
      _
    $region83: #{lenet5_forward.1} parent=1 // pred_check_branch
      %171 = sbr.rel (0) target = $region85
    $region84: #{lenet5_forward.1} parent=1 // pred_region
      %172 = dma.done [#allocation15], 128
    $region85: #{lenet5_forward.1} parent=1 // pred_fallthru
      _
    // Predicated region
    $region86: #{lenet5_forward.1} parent=1 // pred_check
      _
    $region87: #{lenet5_forward.1} parent=1 // pred_check_branch
      %174 = sbr.rel (0) target = $region89
    $region88: #{lenet5_forward.1} parent=1 // pred_region
      %175 = dma.done [#allocation15], 65536
    $region89: #{lenet5_forward.1} parent=1 // pred_fallthru
      _
    // Predicated region
    $region90: #{lenet5_forward.1} parent=1 // pred_check
      _
    $region91: #{lenet5_forward.1} parent=1 // pred_check_branch
      %177 = sbr.rel (0) target = $region93
    $region92: #{lenet5_forward.1} parent=1 // pred_region
      %178 = dma.done [#allocation18], 64
    $region93: #{lenet5_forward.1} parent=1 // pred_fallthru
      _
    // Predicated region
    $region94: #{lenet5_forward.1} parent=1 // pred_check
      _
    $region95: #{lenet5_forward.1} parent=1 // pred_check_branch
      %180 = sbr.rel (0) target = $region97
    $region96: #{lenet5_forward.1} parent=1 // pred_region
      %181 = dma.done [#allocation18], 16
    $region97: #{lenet5_forward.1} parent=1 // pred_fallthru
      _
    %v182 = vld [vmem:[%s0] sm:$0xff]
    %v183 = vld [vmem:[%s0 + $0x8] sm:$0xff]
    %v184 = vld [vmem:[%s0 + $0x10] sm:$0xff]
    %v185 = vld [vmem:[%s0 + $0x18] sm:$0xff]
    %v186 = vld [vmem:[%s0 + $0x20] sm:$0xff]
    %v187 = vld [vmem:[%s0 + $0x28] sm:$0xff]
    %v188 = vld [vmem:[%s0 + $0x30] sm:$0xff]
    %v189 = vld [vmem:[#allocation5] sm:$0xf]
    %v191 = vlaneseq
    %v192 = vshrl.u32 %v191, 7
    %v193 = vsub.s32 0, %v192
    %v194 = vrot.slane %v189, %v193
    %v195 = vlaneseq
    %v196 = vshrl.u32 %v195, 7
    %v197 = vsub.s32 1, %v196
    %v198 = vrot.slane %v189, %v197
    %v199 = vlaneseq
    %v200 = vshrl.u32 %v199, 7
    %v201 = vsub.s32 2, %v200
    %v202 = vrot.slane %v189, %v201
    %v203 = vlaneseq
    %v204 = vshrl.u32 %v203, 7
    %v205 = vsub.s32 3, %v204
    %v206 = vrot.slane %v189, %v205
    %v211 = vadd.f32 %v194, 0.0
    %v212 = vadd.f32 %v198, 0.0
    %v213 = vadd.f32 %v202, 0.0
    %v214 = vadd.f32 %v206, 0.0
    %v215 = vld [vmem:[#allocation2] sm:$0xff]
    %v216 = vld [vmem:[#allocation2 + $0x8] sm:$0xff]
    %v217 = vld [vmem:[#allocation2 + $0x10] sm:$0xff]
    %v218 = vld [vmem:[#allocation2 + $0x18] sm:$0xff]
    %v219 = vld [vmem:[#allocation2 + $0x20] sm:$0xff]
    %v220 = vld [vmem:[#allocation2 + $0x28] sm:$0xff]
    %v221 = vld [vmem:[#allocation2 + $0x30] sm:$0xff]
    %v222 = vld [vmem:[#allocation2 + $0x38] sm:$0xff]
    %v223 = vld [vmem:[#allocation2 + $0x40] sm:$0xff]
    %v224 = vld [vmem:[#allocation2 + $0x48] sm:$0xff]
    %v225 = vld [vmem:[#allocation2 + $0x50] sm:$0xff]
    %v226 = vld [vmem:[#allocation2 + $0x58] sm:$0xff]
    %v227 = vld [vmem:[#allocation2 + $0x60] sm:$0xf]
    %v228 = vld [vmem:[#allocation2 + $0x68] sm:$0xf]
    %v229 = vld [vmem:[#allocation2 + $0x70] sm:$0xf]
    %v230 = vld [vmem:[#allocation2 + $0x78] sm:$0xf]
    %vm231 = vcmask 228352
    %v233 = vsel %vm231, %v182, 0
    %v236 = vsel %vm231, %v183, 0
    %v239 = vsel %vm231, %v184, 0
    %v242 = vsel %vm231, %v185, 0
    %v245 = vsel %vm231, %v186, 0
    %v248 = vsel %vm231, %v187, 0
    %vm250 = vcmask 1043456
    %v252 = vsel %vm250, %v227, 0
    %v255 = vsel %vm250, %v228, 0
    %v258 = vsel %vm250, %v229, 0
    %v261 = vsel %vm250, %v230, 0
    %263 = vmatprep.subr.mxu0 %v216
    %264 = vmatpush1.msra.mxu0 %v215
    %265 = vmatprep.subr.mxu0 %v220
    %266 = vmatpush1.msra.mxu0 %v219
    %267 = vmatprep.subr.mxu0 %v224
    %268 = vmatpush1.msra.mxu0 %v223
    %269 = vmatprep.subr.mxu0 %v255
    %270 = vmatpush1.msra.mxu0 %v252
    %271 = vmatprep.subr.mxu0 0.0
    %272 = vmatpush1.msra.mxu0 0.0
    %273 = vmatprep.subr.mxu0 0.0
    %274 = vmatpush1.msra.mxu0 0.0
    %275 = vmatprep.subr.mxu0 0.0
    %276 = vmatpush1.msra.mxu0 0.0
    %277 = vmatprep.subr.mxu0 0.0
    %278 = vmatpush1.msra.mxu0 0.0
    %279 = vmatprep.subr.mxu0 0.0
    %280 = vmatpush1.msra.mxu0 0.0
    %281 = vmatprep.subr.mxu0 0.0
    %282 = vmatpush1.msra.mxu0 0.0
    %283 = vmatprep.subr.mxu0 0.0
    %284 = vmatpush1.msra.mxu0 0.0
    %285 = vmatprep.subr.mxu0 0.0
    %286 = vmatpush1.msra.mxu0 0.0
    %287 = vmatprep.subr.mxu0 0.0
    %288 = vmatpush1.msra.mxu0 0.0
    %289 = vmatprep.subr.mxu0 0.0
    %290 = vmatpush1.msra.mxu0 0.0
    %291 = vmatprep.subr.mxu0 0.0
    %292 = vmatpush1.msra.mxu0 0.0
    %293 = vmatprep.subr.mxu0 0.0
    %294 = vmatpush1.msra.mxu0 0.0
    %295 = vmatprep.subr.mxu0 0.0
    %296 = vmatpush1.msra.mxu0 0.0
    %297 = vmatprep.subr.mxu0 0.0
    %298 = vmatpush1.msra.mxu0 0.0
    %299 = vmatprep.subr.mxu0 0.0
    %300 = vmatpush1.msra.mxu0 0.0
    %301 = vmatprep.subr.mxu0 0.0
    %302 = vmatpush1.msra.mxu0 0.0
    %303 = vmatprep.subr.mxu0 0.0
    %304 = vmatpush1.msra.mxu0 0.0
    %305 = vmatprep.subr.mxu0 0.0
    %306 = vmatpush1.msra.mxu0 0.0
    %307 = vmatprep.subr.mxu0 0.0
    %308 = vmatpush1.msra.mxu0 0.0
    %309 = vmatprep.subr.mxu0 0.0
    %310 = vmatpush1.msra.mxu0 0.0
    %311 = vmatprep.subr.mxu0 0.0
    %312 = vmatpush1.msra.mxu0 0.0
    %313 = vmatprep.subr.mxu0 0.0
    %314 = vmatpush1.msra.mxu0 0.0
    %315 = vmatprep.subr.mxu0 0.0
    %316 = vmatpush1.msra.mxu0 0.0
    %317 = vmatprep.subr.mxu0 0.0
    %318 = vmatpush1.msra.mxu0 0.0
    %319 = vmatprep.subr.mxu0 0.0
    %320 = vmatpush1.msra.mxu0 0.0
    %321 = vmatprep.subr.mxu0 0.0
    %322 = vmatpush1.msra.mxu0 0.0
    %323 = vmatprep.subr.mxu0 0.0
    %324 = vmatpush1.msra.mxu0 0.0
    %325 = vmatprep.subr.mxu0 0.0
    %326 = vmatpush1.msra.mxu0 0.0
    %327 = vmatprep.mubr.f32.mxu0 0.0
    %328 = vmatmul.mubr.f32.gmra.mrb[0].mxu0 %v233
    %v329 = vpop.f32.mrb[0].mxu0
    %v330 = vadd.f32 0.0, %v329
    %v331 = vpop.f32.mrb[0].mxu0
    %v332 = vadd.f32 0.0, %v331
    %333 = vmatprep.mubr.f32.mxu0 0.0
    %334 = vmatmul.mubr.f32.gmra.mrb[0].mxu0 %v236
    %v335 = vpop.f32.mrb[0].mxu0
    %v336 = vadd.f32 0.0, %v335
    %v337 = vpop.f32.mrb[0].mxu0
    %v338 = vadd.f32 0.0, %v337
    %339 = vmatprep.mubr.f32.mxu0 0.0
    %340 = vmatmul.mubr.f32.gmra.mrb[0].mxu0 %v239
    %v341 = vpop.f32.mrb[0].mxu0
    %v342 = vadd.f32 0.0, %v341
    %v343 = vpop.f32.mrb[0].mxu0
    %v344 = vadd.f32 0.0, %v343
    %345 = vmatprep.mubr.f32.mxu0 0.0
    %346 = vmatmul.mubr.f32.gmra.mrb[0].mxu0 %v242
    %v347 = vpop.f32.mrb[0].mxu0
    %v348 = vadd.f32 0.0, %v347
    %v349 = vpop.f32.mrb[0].mxu0
    %v350 = vadd.f32 0.0, %v349
    %351 = vmatprep.mubr.f32.mxu0 0.0
    %352 = vmatmul.mubr.f32.gmra.mrb[0].mxu0 %v245
    %v353 = vpop.f32.mrb[0].mxu0
    %v354 = vadd.f32 0.0, %v353
    %v355 = vpop.f32.mrb[0].mxu0
    %v356 = vadd.f32 0.0, %v355
    %357 = vmatprep.mubr.f32.mxu0 0.0
    %358 = vmatmul.mubr.f32.gmra.mrb[0].mxu0 %v248
    %v359 = vpop.f32.mrb[0].mxu0
    %v360 = vadd.f32 0.0, %v359
    %v361 = vpop.f32.mrb[0].mxu0
    %v362 = vadd.f32 0.0, %v361
    %363 = vdwg.mxu0
    %364 = vmatprep.subr.mxu0 %v218
    %365 = vmatpush1.msra.mxu0 %v217
    %366 = vmatprep.subr.mxu0 %v222
    %367 = vmatpush1.msra.mxu0 %v221
    %368 = vmatprep.subr.mxu0 %v226
    %369 = vmatpush1.msra.mxu0 %v225
    %370 = vmatprep.subr.mxu0 %v261
    %371 = vmatpush1.msra.mxu0 %v258
    %372 = vmatprep.subr.mxu0 0.0
    %373 = vmatpush1.msra.mxu0 0.0
    %374 = vmatprep.subr.mxu0 0.0
    %375 = vmatpush1.msra.mxu0 0.0
    %376 = vmatprep.subr.mxu0 0.0
    %377 = vmatpush1.msra.mxu0 0.0
    %378 = vmatprep.subr.mxu0 0.0
    %379 = vmatpush1.msra.mxu0 0.0
    %380 = vmatprep.subr.mxu0 0.0
    %381 = vmatpush1.msra.mxu0 0.0
    %382 = vmatprep.subr.mxu0 0.0
    %383 = vmatpush1.msra.mxu0 0.0
    %384 = vmatprep.subr.mxu0 0.0
    %385 = vmatpush1.msra.mxu0 0.0
    %386 = vmatprep.subr.mxu0 0.0
    %387 = vmatpush1.msra.mxu0 0.0
    %388 = vmatprep.subr.mxu0 0.0
    %389 = vmatpush1.msra.mxu0 0.0
    %390 = vmatprep.subr.mxu0 0.0
    %391 = vmatpush1.msra.mxu0 0.0
    %392 = vmatprep.subr.mxu0 0.0
    %393 = vmatpush1.msra.mxu0 0.0
    %394 = vmatprep.subr.mxu0 0.0
    %395 = vmatpush1.msra.mxu0 0.0
    %396 = vmatprep.subr.mxu0 0.0
    %397 = vmatpush1.msra.mxu0 0.0
    %398 = vmatprep.subr.mxu0 0.0
    %399 = vmatpush1.msra.mxu0 0.0
    %400 = vmatprep.subr.mxu0 0.0
    %401 = vmatpush1.msra.mxu0 0.0
    %402 = vmatprep.subr.mxu0 0.0
    %403 = vmatpush1.msra.mxu0 0.0
    %404 = vmatprep.subr.mxu0 0.0
    %405 = vmatpush1.msra.mxu0 0.0
    %406 = vmatprep.subr.mxu0 0.0
    %407 = vmatpush1.msra.mxu0 0.0
    %408 = vmatprep.subr.mxu0 0.0
    %409 = vmatpush1.msra.mxu0 0.0
    %410 = vmatprep.subr.mxu0 0.0
    %411 = vmatpush1.msra.mxu0 0.0
    %412 = vmatprep.subr.mxu0 0.0
    %413 = vmatpush1.msra.mxu0 0.0
    %414 = vmatprep.subr.mxu0 0.0
    %415 = vmatpush1.msra.mxu0 0.0
    %416 = vmatprep.subr.mxu0 0.0
    %417 = vmatpush1.msra.mxu0 0.0
    %418 = vmatprep.subr.mxu0 0.0
    %419 = vmatpush1.msra.mxu0 0.0
    %420 = vmatprep.subr.mxu0 0.0
    %421 = vmatpush1.msra.mxu0 0.0
    %422 = vmatprep.subr.mxu0 0.0
    %423 = vmatpush1.msra.mxu0 0.0
    %424 = vmatprep.subr.mxu0 0.0
    %425 = vmatpush1.msra.mxu0 0.0
    %426 = vmatprep.subr.mxu0 0.0
    %427 = vmatpush1.msra.mxu0 0.0
    %428 = vmatprep.mubr.f32.mxu0 0.0
    %429 = vmatmul.mubr.f32.gmra.mrb[0].mxu0 %v233
    %v430 = vpop.f32.mrb[0].mxu0
    %v431 = vadd.f32 0.0, %v430
    %v432 = vpop.f32.mrb[0].mxu0
    %v433 = vadd.f32 0.0, %v432
    %434 = vmatprep.mubr.f32.mxu0 0.0
    %435 = vmatmul.mubr.f32.gmra.mrb[0].mxu0 %v236
    %v436 = vpop.f32.mrb[0].mxu0
    %v437 = vadd.f32 0.0, %v436
    %v438 = vpop.f32.mrb[0].mxu0
    %v439 = vadd.f32 0.0, %v438
    %440 = vmatprep.mubr.f32.mxu0 0.0
    %441 = vmatmul.mubr.f32.gmra.mrb[0].mxu0 %v239
    %v442 = vpop.f32.mrb[0].mxu0
    %v443 = vadd.f32 0.0, %v442
    %v444 = vpop.f32.mrb[0].mxu0
    %v445 = vadd.f32 0.0, %v444
    %446 = vmatprep.mubr.f32.mxu0 0.0
    %447 = vmatmul.mubr.f32.gmra.mrb[0].mxu0 %v242
    %v448 = vpop.f32.mrb[0].mxu0
    %v449 = vadd.f32 0.0, %v448
    %v450 = vpop.f32.mrb[0].mxu0
    %v451 = vadd.f32 0.0, %v450
    %452 = vmatprep.mubr.f32.mxu0 0.0
    %453 = vmatmul.mubr.f32.gmra.mrb[0].mxu0 %v245
    %v454 = vpop.f32.mrb[0].mxu0
    %v455 = vadd.f32 0.0, %v454
    %v456 = vpop.f32.mrb[0].mxu0
    %v457 = vadd.f32 0.0, %v456
    %458 = vmatprep.mubr.f32.mxu0 0.0
    %459 = vmatmul.mubr.f32.gmra.mrb[0].mxu0 %v248
    %v460 = vpop.f32.mrb[0].mxu0
    %v461 = vadd.f32 0.0, %v460
    %v462 = vpop.f32.mrb[0].mxu0
    %v463 = vadd.f32 0.0, %v462
    %464 = vdwg.mxu0
    %v465 = vadd.f32 %v211, %v330
    %v466 = vadd.f32 %v212, %v332
    %v467 = vadd.f32 %v213, %v431
    %v468 = vadd.f32 %v214, %v433
    %v469 = vadd.f32 %v211, %v336
    %v470 = vadd.f32 %v212, %v338
    %v471 = vadd.f32 %v213, %v437
    %v472 = vadd.f32 %v214, %v439
    %v473 = vadd.f32 %v211, %v342
    %v474 = vadd.f32 %v212, %v344
    %v475 = vadd.f32 %v213, %v443
    %v476 = vadd.f32 %v214, %v445
    %v477 = vadd.f32 %v211, %v348
    %v478 = vadd.f32 %v212, %v350
    %v479 = vadd.f32 %v213, %v449
    %v480 = vadd.f32 %v214, %v451
    %v481 = vadd.f32 %v211, %v354
    %v482 = vadd.f32 %v212, %v356
    %v483 = vadd.f32 %v213, %v455
    %v484 = vadd.f32 %v214, %v457
    %v485 = vadd.f32 %v211, %v360
    %v486 = vadd.f32 %v212, %v362
    %v487 = vadd.f32 %v213, %v461
    %v488 = vadd.f32 %v214, %v463
    %s489 = scalar_lea.vmem [#allocation2], 128
    %v490 = vld [vmem:[%s489] sm:$0xff]
    %v491 = vld [vmem:[%s489 + $0x8] sm:$0xff]
    %v492 = vld [vmem:[%s489 + $0x10] sm:$0xff]
    %v493 = vld [vmem:[%s489 + $0x18] sm:$0xff]
    %v494 = vld [vmem:[%s489 + $0x20] sm:$0xff]
    %v495 = vld [vmem:[%s489 + $0x28] sm:$0xff]
    %v496 = vld [vmem:[%s489 + $0x30] sm:$0xff]
    %v497 = vld [vmem:[%s489 + $0x38] sm:$0xff]
    %v498 = vld [vmem:[%s489 + $0x40] sm:$0xff]
    %v499 = vld [vmem:[%s489 + $0x48] sm:$0xff]
    %v500 = vld [vmem:[%s489 + $0x50] sm:$0xff]
    %v501 = vld [vmem:[%s489 + $0x58] sm:$0xff]
    %v502 = vld [vmem:[%s489 + $0x60] sm:$0xf]
    %v503 = vld [vmem:[%s489 + $0x68] sm:$0xf]
    %v504 = vld [vmem:[%s489 + $0x70] sm:$0xf]
    %v505 = vld [vmem:[%s489 + $0x78] sm:$0xf]
    %vm507 = vcmask 1045504
    %v508 = vrot.slane %v182, 2
    %v509 = vrot.slane %v183, 2
    %v510 = vsel %vm507, %v508, %v509
    %v511 = vrot.slane %v184, 2
    %v512 = vsel %vm507, %v509, %v511
    %v513 = vrot.slane %v185, 2
    %v514 = vsel %vm507, %v511, %v513
    %v515 = vrot.slane %v186, 2
    %v516 = vsel %vm507, %v513, %v515
    %v517 = vrot.slane %v187, 2
    %v518 = vsel %vm507, %v515, %v517
    %v519 = vrot.slane %v188, 2
    %v520 = vsel %vm507, %v517, %v519
    %v521 = vsel %vm231, %v510, 0
    %v523 = vsel %vm231, %v512, 0
    %v525 = vsel %vm231, %v514, 0
    %v527 = vsel %vm231, %v516, 0
    %v529 = vsel %vm231, %v518, 0
    %v531 = vsel %vm231, %v520, 0
    %v534 = vsel %vm250, %v502, 0
    %v537 = vsel %vm250, %v503, 0
    %v540 = vsel %vm250, %v504, 0
    %v543 = vsel %vm250, %v505, 0
    %545 = vmatprep.subr.mxu0 %v491
    %546 = vmatpush1.msra.mxu0 %v490
    %547 = vmatprep.subr.mxu0 %v495
    %548 = vmatpush1.msra.mxu0 %v494
    %549 = vmatprep.subr.mxu0 %v499
    %550 = vmatpush1.msra.mxu0 %v498
    %551 = vmatprep.subr.mxu0 %v537
    %552 = vmatpush1.msra.mxu0 %v534
    %553 = vmatprep.subr.mxu0 0.0
    %554 = vmatpush1.msra.mxu0 0.0
    %555 = vmatprep.subr.mxu0 0.0
    %556 = vmatpush1.msra.mxu0 0.0
    %557 = vmatprep.subr.mxu0 0.0
    %558 = vmatpush1.msra.mxu0 0.0
    %559 = vmatprep.subr.mxu0 0.0
    %560 = vmatpush1.msra.mxu0 0.0
    %561 = vmatprep.subr.mxu0 0.0
    %562 = vmatpush1.msra.mxu0 0.0
    %563 = vmatprep.subr.mxu0 0.0
    %564 = vmatpush1.msra.mxu0 0.0
    %565 = vmatprep.subr.mxu0 0.0
    %566 = vmatpush1.msra.mxu0 0.0
    %567 = vmatprep.subr.mxu0 0.0
    %568 = vmatpush1.msra.mxu0 0.0
    %569 = vmatprep.subr.mxu0 0.0
    %570 = vmatpush1.msra.mxu0 0.0
    %571 = vmatprep.subr.mxu0 0.0
    %572 = vmatpush1.msra.mxu0 0.0
    %573 = vmatprep.subr.mxu0 0.0
    %574 = vmatpush1.msra.mxu0 0.0
    %575 = vmatprep.subr.mxu0 0.0
    %576 = vmatpush1.msra.mxu0 0.0
    %577 = vmatprep.subr.mxu0 0.0
    %578 = vmatpush1.msra.mxu0 0.0
    %579 = vmatprep.subr.mxu0 0.0
    %580 = vmatpush1.msra.mxu0 0.0
    %581 = vmatprep.subr.mxu0 0.0
    %582 = vmatpush1.msra.mxu0 0.0
    %583 = vmatprep.subr.mxu0 0.0
    %584 = vmatpush1.msra.mxu0 0.0
    %585 = vmatprep.subr.mxu0 0.0
    %586 = vmatpush1.msra.mxu0 0.0
    %587 = vmatprep.subr.mxu0 0.0
    %588 = vmatpush1.msra.mxu0 0.0
    %589 = vmatprep.subr.mxu0 0.0
    %590 = vmatpush1.msra.mxu0 0.0
    %591 = vmatprep.subr.mxu0 0.0
    %592 = vmatpush1.msra.mxu0 0.0
    %593 = vmatprep.subr.mxu0 0.0
    %594 = vmatpush1.msra.mxu0 0.0
    %595 = vmatprep.subr.mxu0 0.0
    %596 = vmatpush1.msra.mxu0 0.0
    %597 = vmatprep.subr.mxu0 0.0
    %598 = vmatpush1.msra.mxu0 0.0
    %599 = vmatprep.subr.mxu0 0.0
    %600 = vmatpush1.msra.mxu0 0.0
    %601 = vmatprep.subr.mxu0 0.0
    %602 = vmatpush1.msra.mxu0 0.0
    %603 = vmatprep.subr.mxu0 0.0
    %604 = vmatpush1.msra.mxu0 0.0
    %605 = vmatprep.subr.mxu0 0.0
    %606 = vmatpush1.msra.mxu0 0.0
    %607 = vmatprep.subr.mxu0 0.0
    %608 = vmatpush1.msra.mxu0 0.0
    %609 = vmatprep.mubr.f32.mxu0 0.0
    %610 = vmatmul.mubr.f32.gmra.mrb[0].mxu0 %v521
    %v611 = vpop.f32.mrb[0].mxu0
    %v612 = vadd.f32 0.0, %v611
    %v613 = vpop.f32.mrb[0].mxu0
    %v614 = vadd.f32 0.0, %v613
    %615 = vmatprep.mubr.f32.mxu0 0.0
    %616 = vmatmul.mubr.f32.gmra.mrb[0].mxu0 %v523
    %v617 = vpop.f32.mrb[0].mxu0
    %v618 = vadd.f32 0.0, %v617
    %v619 = vpop.f32.mrb[0].mxu0
    %v620 = vadd.f32 0.0, %v619
    %621 = vmatprep.mubr.f32.mxu0 0.0
    %622 = vmatmul.mubr.f32.gmra.mrb[0].mxu0 %v525
    %v623 = vpop.f32.mrb[0].mxu0
    %v624 = vadd.f32 0.0, %v623
    %v625 = vpop.f32.mrb[0].mxu0
    %v626 = vadd.f32 0.0, %v625
    %627 = vmatprep.mubr.f32.mxu0 0.0
    %628 = vmatmul.mubr.f32.gmra.mrb[0].mxu0 %v527
    %v629 = vpop.f32.mrb[0].mxu0
    %v630 = vadd.f32 0.0, %v629
    %v631 = vpop.f32.mrb[0].mxu0
    %v632 = vadd.f32 0.0, %v631
    %633 = vmatprep.mubr.f32.mxu0 0.0
    %634 = vmatmul.mubr.f32.gmra.mrb[0].mxu0 %v529
    %v635 = vpop.f32.mrb[0].mxu0
    %v636 = vadd.f32 0.0, %v635
    %v637 = vpop.f32.mrb[0].mxu0
    %v638 = vadd.f32 0.0, %v637
    %639 = vmatprep.mubr.f32.mxu0 0.0
    %640 = vmatmul.mubr.f32.gmra.mrb[0].mxu0 %v531
    %v641 = vpop.f32.mrb[0].mxu0
    %v642 = vadd.f32 0.0, %v641
    %v643 = vpop.f32.mrb[0].mxu0
    %v644 = vadd.f32 0.0, %v643
    %645 = vdwg.mxu0
    %646 = vmatprep.subr.mxu0 %v493
    %647 = vmatpush1.msra.mxu0 %v492
    %648 = vmatprep.subr.mxu0 %v497
    %649 = vmatpush1.msra.mxu0 %v496
    %650 = vmatprep.subr.mxu0 %v501
    %651 = vmatpush1.msra.mxu0 %v500
    %652 = vmatprep.subr.mxu0 %v543
    %653 = vmatpush1.msra.mxu0 %v540
    %654 = vmatprep.subr.mxu0 0.0
    %655 = vmatpush1.msra.mxu0 0.0
    %656 = vmatprep.subr.mxu0 0.0
    %657 = vmatpush1.msra.mxu0 0.0
    %658 = vmatprep.subr.mxu0 0.0
    %659 = vmatpush1.msra.mxu0 0.0
    %660 = vmatprep.subr.mxu0 0.0
    %661 = vmatpush1.msra.mxu0 0.0
    %662 = vmatprep.subr.mxu0 0.0
    %663 = vmatpush1.msra.mxu0 0.0
    %664 = vmatprep.subr.mxu0 0.0
    %665 = vmatpush1.msra.mxu0 0.0
    %666 = vmatprep.subr.mxu0 0.0
    %667 = vmatpush1.msra.mxu0 0.0
    %668 = vmatprep.subr.mxu0 0.0
    %669 = vmatpush1.msra.mxu0 0.0
    %670 = vmatprep.subr.mxu0 0.0
    %671 = vmatpush1.msra.mxu0 0.0
    %672 = vmatprep.subr.mxu0 0.0
    %673 = vmatpush1.msra.mxu0 0.0
    %674 = vmatprep.subr.mxu0 0.0
    %675 = vmatpush1.msra.mxu0 0.0
    %676 = vmatprep.subr.mxu0 0.0
    %677 = vmatpush1.msra.mxu0 0.0
    %678 = vmatprep.subr.mxu0 0.0
    %679 = vmatpush1.msra.mxu0 0.0
    %680 = vmatprep.subr.mxu0 0.0
    %681 = vmatpush1.msra.mxu0 0.0
    %682 = vmatprep.subr.mxu0 0.0
    %683 = vmatpush1.msra.mxu0 0.0
    %684 = vmatprep.subr.mxu0 0.0
    %685 = vmatpush1.msra.mxu0 0.0
    %686 = vmatprep.subr.mxu0 0.0
    %687 = vmatpush1.msra.mxu0 0.0
    %688 = vmatprep.subr.mxu0 0.0
    %689 = vmatpush1.msra.mxu0 0.0
    %690 = vmatprep.subr.mxu0 0.0
    %691 = vmatpush1.msra.mxu0 0.0
    %692 = vmatprep.subr.mxu0 0.0
    %693 = vmatpush1.msra.mxu0 0.0
    %694 = vmatprep.subr.mxu0 0.0
    %695 = vmatpush1.msra.mxu0 0.0
    %696 = vmatprep.subr.mxu0 0.0
    %697 = vmatpush1.msra.mxu0 0.0
    %698 = vmatprep.subr.mxu0 0.0
    %699 = vmatpush1.msra.mxu0 0.0
    %700 = vmatprep.subr.mxu0 0.0
    %701 = vmatpush1.msra.mxu0 0.0
    %702 = vmatprep.subr.mxu0 0.0
    %703 = vmatpush1.msra.mxu0 0.0
    %704 = vmatprep.subr.mxu0 0.0
    %705 = vmatpush1.msra.mxu0 0.0
    %706 = vmatprep.subr.mxu0 0.0
    %707 = vmatpush1.msra.mxu0 0.0
    %708 = vmatprep.subr.mxu0 0.0
    %709 = vmatpush1.msra.mxu0 0.0
    %710 = vmatprep.mubr.f32.mxu0 0.0
    %711 = vmatmul.mubr.f32.gmra.mrb[0].mxu0 %v521
    %v712 = vpop.f32.mrb[0].mxu0
    %v713 = vadd.f32 0.0, %v712
    %v714 = vpop.f32.mrb[0].mxu0
    %v715 = vadd.f32 0.0, %v714
    %716 = vmatprep.mubr.f32.mxu0 0.0
    %717 = vmatmul.mubr.f32.gmra.mrb[0].mxu0 %v523
    %v718 = vpop.f32.mrb[0].mxu0
    %v719 = vadd.f32 0.0, %v718
    %v720 = vpop.f32.mrb[0].mxu0
    %v721 = vadd.f32 0.0, %v720
    %722 = vmatprep.mubr.f32.mxu0 0.0
    %723 = vmatmul.mubr.f32.gmra.mrb[0].mxu0 %v525
    %v724 = vpop.f32.mrb[0].mxu0
    %v725 = vadd.f32 0.0, %v724
    %v726 = vpop.f32.mrb[0].mxu0
    %v727 = vadd.f32 0.0, %v726
    %728 = vmatprep.mubr.f32.mxu0 0.0
    %729 = vmatmul.mubr.f32.gmra.mrb[0].mxu0 %v527
    %v730 = vpop.f32.mrb[0].mxu0
    %v731 = vadd.f32 0.0, %v730
    %v732 = vpop.f32.mrb[0].mxu0
    %v733 = vadd.f32 0.0, %v732
    %734 = vmatprep.mubr.f32.mxu0 0.0
    %735 = vmatmul.mubr.f32.gmra.mrb[0].mxu0 %v529
    %v736 = vpop.f32.mrb[0].mxu0
    %v737 = vadd.f32 0.0, %v736
    %v738 = vpop.f32.mrb[0].mxu0
    %v739 = vadd.f32 0.0, %v738
    %740 = vmatprep.mubr.f32.mxu0 0.0
    %741 = vmatmul.mubr.f32.gmra.mrb[0].mxu0 %v531
    %v742 = vpop.f32.mrb[0].mxu0
    %v743 = vadd.f32 0.0, %v742
    %v744 = vpop.f32.mrb[0].mxu0
    %v745 = vadd.f32 0.0, %v744
    %746 = vdwg.mxu0
    %v747 = vadd.f32 %v465, %v612
    %v748 = vadd.f32 %v466, %v614
    %v749 = vadd.f32 %v467, %v713
    %v750 = vadd.f32 %v468, %v715
    %v751 = vadd.f32 %v469, %v618
    %v752 = vadd.f32 %v470, %v620
    %v753 = vadd.f32 %v471, %v719
    %v754 = vadd.f32 %v472, %v721
    %v755 = vadd.f32 %v473, %v624
    %v756 = vadd.f32 %v474, %v626
    %v757 = vadd.f32 %v475, %v725
    %v758 = vadd.f32 %v476, %v727
    %v759 = vadd.f32 %v477, %v630
    %v760 = vadd.f32 %v478, %v632
    %v761 = vadd.f32 %v479, %v731
    %v762 = vadd.f32 %v480, %v733
    %v763 = vadd.f32 %v481, %v636
    %v764 = vadd.f32 %v482, %v638
    %v765 = vadd.f32 %v483, %v737
    %v766 = vadd.f32 %v484, %v739
    %v767 = vadd.f32 %v485, %v642
    %v768 = vadd.f32 %v486, %v644
    %v769 = vadd.f32 %v487, %v743
    %v770 = vadd.f32 %v488, %v745
    %s771 = scalar_lea.vmem [#allocation2], 256
    %v772 = vld [vmem:[%s771] sm:$0xff]
    %v773 = vld [vmem:[%s771 + $0x8] sm:$0xff]
    %v774 = vld [vmem:[%s771 + $0x10] sm:$0xff]
    %v775 = vld [vmem:[%s771 + $0x18] sm:$0xff]
    %v776 = vld [vmem:[%s771 + $0x20] sm:$0xff]
    %v777 = vld [vmem:[%s771 + $0x28] sm:$0xff]
    %v778 = vld [vmem:[%s771 + $0x30] sm:$0xff]
    %v779 = vld [vmem:[%s771 + $0x38] sm:$0xff]
    %v780 = vld [vmem:[%s771 + $0x40] sm:$0xff]
    %v781 = vld [vmem:[%s771 + $0x48] sm:$0xff]
    %v782 = vld [vmem:[%s771 + $0x50] sm:$0xff]
    %v783 = vld [vmem:[%s771 + $0x58] sm:$0xff]
    %v784 = vld [vmem:[%s771 + $0x60] sm:$0xf]
    %v785 = vld [vmem:[%s771 + $0x68] sm:$0xf]
    %v786 = vld [vmem:[%s771 + $0x70] sm:$0xf]
    %v787 = vld [vmem:[%s771 + $0x78] sm:$0xf]
    %v788 = vrot.slane %v182, 4
    %v789 = vrot.slane %v183, 4
    %v790 = vsel %vm250, %v788, %v789
    %v791 = vrot.slane %v184, 4
    %v792 = vsel %vm250, %v789, %v791
    %v793 = vrot.slane %v185, 4
    %v794 = vsel %vm250, %v791, %v793
    %v795 = vrot.slane %v186, 4
    %v796 = vsel %vm250, %v793, %v795
    %v797 = vrot.slane %v187, 4
    %v798 = vsel %vm250, %v795, %v797
    %v799 = vrot.slane %v188, 4
    %v800 = vsel %vm250, %v797, %v799
    %v801 = vsel %vm231, %v790, 0
    %v803 = vsel %vm231, %v792, 0
    %v805 = vsel %vm231, %v794, 0
    %v807 = vsel %vm231, %v796, 0
    %v809 = vsel %vm231, %v798, 0
    %v811 = vsel %vm231, %v800, 0
    %v814 = vsel %vm250, %v784, 0
    %v817 = vsel %vm250, %v785, 0
    %v820 = vsel %vm250, %v786, 0
    %v823 = vsel %vm250, %v787, 0
    %825 = vmatprep.subr.mxu0 %v773
    %826 = vmatpush1.msra.mxu0 %v772
    %827 = vmatprep.subr.mxu0 %v777
    %828 = vmatpush1.msra.mxu0 %v776
    %829 = vmatprep.subr.mxu0 %v781
    %830 = vmatpush1.msra.mxu0 %v780
    %831 = vmatprep.subr.mxu0 %v817
    %832 = vmatpush1.msra.mxu0 %v814
    %833 = vmatprep.subr.mxu0 0.0
    %834 = vmatpush1.msra.mxu0 0.0
    %835 = vmatprep.subr.mxu0 0.0
    %836 = vmatpush1.msra.mxu0 0.0
    %837 = vmatprep.subr.mxu0 0.0
    %838 = vmatpush1.msra.mxu0 0.0
    %839 = vmatprep.subr.mxu0 0.0
    %840 = vmatpush1.msra.mxu0 0.0
    %841 = vmatprep.subr.mxu0 0.0
    %842 = vmatpush1.msra.mxu0 0.0
    %843 = vmatprep.subr.mxu0 0.0
    %844 = vmatpush1.msra.mxu0 0.0
    %845 = vmatprep.subr.mxu0 0.0
    %846 = vmatpush1.msra.mxu0 0.0
    %847 = vmatprep.subr.mxu0 0.0
    %848 = vmatpush1.msra.mxu0 0.0
    %849 = vmatprep.subr.mxu0 0.0
    %850 = vmatpush1.msra.mxu0 0.0
    %851 = vmatprep.subr.mxu0 0.0
    %852 = vmatpush1.msra.mxu0 0.0
    %853 = vmatprep.subr.mxu0 0.0
    %854 = vmatpush1.msra.mxu0 0.0
    %855 = vmatprep.subr.mxu0 0.0
    %856 = vmatpush1.msra.mxu0 0.0
    %857 = vmatprep.subr.mxu0 0.0
    %858 = vmatpush1.msra.mxu0 0.0
    %859 = vmatprep.subr.mxu0 0.0
    %860 = vmatpush1.msra.mxu0 0.0
    %861 = vmatprep.subr.mxu0 0.0
    %862 = vmatpush1.msra.mxu0 0.0
    %863 = vmatprep.subr.mxu0 0.0
    %864 = vmatpush1.msra.mxu0 0.0
    %865 = vmatprep.subr.mxu0 0.0
    %866 = vmatpush1.msra.mxu0 0.0
    %867 = vmatprep.subr.mxu0 0.0
    %868 = vmatpush1.msra.mxu0 0.0
    %869 = vmatprep.subr.mxu0 0.0
    %870 = vmatpush1.msra.mxu0 0.0
    %871 = vmatprep.subr.mxu0 0.0
    %872 = vmatpush1.msra.mxu0 0.0
    %873 = vmatprep.subr.mxu0 0.0
    %874 = vmatpush1.msra.mxu0 0.0
    %875 = vmatprep.subr.mxu0 0.0
    %876 = vmatpush1.msra.mxu0 0.0
    %877 = vmatprep.subr.mxu0 0.0
    %878 = vmatpush1.msra.mxu0 0.0
    %879 = vmatprep.subr.mxu0 0.0
    %880 = vmatpush1.msra.mxu0 0.0
    %881 = vmatprep.subr.mxu0 0.0
    %882 = vmatpush1.msra.mxu0 0.0
    %883 = vmatprep.subr.mxu0 0.0
    %884 = vmatpush1.msra.mxu0 0.0
    %885 = vmatprep.subr.mxu0 0.0
    %886 = vmatpush1.msra.mxu0 0.0
    %887 = vmatprep.subr.mxu0 0.0
    %888 = vmatpush1.msra.mxu0 0.0
    %889 = vmatprep.mubr.f32.mxu0 0.0
    %890 = vmatmul.mubr.f32.gmra.mrb[0].mxu0 %v801
    %v891 = vpop.f32.mrb[0].mxu0
    %v892 = vadd.f32 0.0, %v891
    %v893 = vpop.f32.mrb[0].mxu0
    %v894 = vadd.f32 0.0, %v893
    %895 = vmatprep.mubr.f32.mxu0 0.0
    %896 = vmatmul.mubr.f32.gmra.mrb[0].mxu0 %v803
    %v897 = vpop.f32.mrb[0].mxu0
    %v898 = vadd.f32 0.0, %v897
    %v899 = vpop.f32.mrb[0].mxu0
    %v900 = vadd.f32 0.0, %v899
    %901 = vmatprep.mubr.f32.mxu0 0.0
    %902 = vmatmul.mubr.f32.gmra.mrb[0].mxu0 %v805
    %v903 = vpop.f32.mrb[0].mxu0
    %v904 = vadd.f32 0.0, %v903
    %v905 = vpop.f32.mrb[0].mxu0
    %v906 = vadd.f32 0.0, %v905
    %907 = vmatprep.mubr.f32.mxu0 0.0
    %908 = vmatmul.mubr.f32.gmra.mrb[0].mxu0 %v807
    %v909 = vpop.f32.mrb[0].mxu0
    %v910 = vadd.f32 0.0, %v909
    %v911 = vpop.f32.mrb[0].mxu0
    %v912 = vadd.f32 0.0, %v911
    %913 = vmatprep.mubr.f32.mxu0 0.0
    %914 = vmatmul.mubr.f32.gmra.mrb[0].mxu0 %v809
    %v915 = vpop.f32.mrb[0].mxu0
    %v916 = vadd.f32 0.0, %v915
    %v917 = vpop.f32.mrb[0].mxu0
    %v918 = vadd.f32 0.0, %v917
    %919 = vmatprep.mubr.f32.mxu0 0.0
    %920 = vmatmul.mubr.f32.gmra.mrb[0].mxu0 %v811
    %v921 = vpop.f32.mrb[0].mxu0
    %v922 = vadd.f32 0.0, %v921
    %v923 = vpop.f32.mrb[0].mxu0
    %v924 = vadd.f32 0.0, %v923
    %925 = vdwg.mxu0
    %926 = vmatprep.subr.mxu0 %v775
    %927 = vmatpush1.msra.mxu0 %v774
    %928 = vmatprep.subr.mxu0 %v779
    %929 = vmatpush1.msra.mxu0 %v778
    %930 = vmatprep.subr.mxu0 %v783
    %931 = vmatpush1.msra.mxu0 %v782
    %932 = vmatprep.subr.mxu0 %v823
    %933 = vmatpush1.msra.mxu0 %v820
    %934 = vmatprep.subr.mxu0 0.0
    %935 = vmatpush1.msra.mxu0 0.0
    %936 = vmatprep.subr.mxu0 0.0
    %937 = vmatpush1.msra.mxu0 0.0
    %938 = vmatprep.subr.mxu0 0.0
    %939 = vmatpush1.msra.mxu0 0.0
    %940 = vmatprep.subr.mxu0 0.0
    %941 = vmatpush1.msra.mxu0 0.0
    %942 = vmatprep.subr.mxu0 0.0
    %943 = vmatpush1.msra.mxu0 0.0
    %944 = vmatprep.subr.mxu0 0.0
    %945 = vmatpush1.msra.mxu0 0.0
    %946 = vmatprep.subr.mxu0 0.0
    %947 = vmatpush1.msra.mxu0 0.0
    %948 = vmatprep.subr.mxu0 0.0
    %949 = vmatpush1.msra.mxu0 0.0
    %950 = vmatprep.subr.mxu0 0.0
    %951 = vmatpush1.msra.mxu0 0.0
    %952 = vmatprep.subr.mxu0 0.0
    %953 = vmatpush1.msra.mxu0 0.0
    %954 = vmatprep.subr.mxu0 0.0
    %955 = vmatpush1.msra.mxu0 0.0
    %956 = vmatprep.subr.mxu0 0.0
    %957 = vmatpush1.msra.mxu0 0.0
    %958 = vmatprep.subr.mxu0 0.0
    %959 = vmatpush1.msra.mxu0 0.0
    %960 = vmatprep.subr.mxu0 0.0
    %961 = vmatpush1.msra.mxu0 0.0
    %962 = vmatprep.subr.mxu0 0.0
    %963 = vmatpush1.msra.mxu0 0.0
    %964 = vmatprep.subr.mxu0 0.0
    %965 = vmatpush1.msra.mxu0 0.0
    %966 = vmatprep.subr.mxu0 0.0
    %967 = vmatpush1.msra.mxu0 0.0
    %968 = vmatprep.subr.mxu0 0.0
    %969 = vmatpush1.msra.mxu0 0.0
    %970 = vmatprep.subr.mxu0 0.0
    %971 = vmatpush1.msra.mxu0 0.0
    %972 = vmatprep.subr.mxu0 0.0
    %973 = vmatpush1.msra.mxu0 0.0
    %974 = vmatprep.subr.mxu0 0.0
    %975 = vmatpush1.msra.mxu0 0.0
    %976 = vmatprep.subr.mxu0 0.0
    %977 = vmatpush1.msra.mxu0 0.0
    %978 = vmatprep.subr.mxu0 0.0
    %979 = vmatpush1.msra.mxu0 0.0
    %980 = vmatprep.subr.mxu0 0.0
    %981 = vmatpush1.msra.mxu0 0.0
    %982 = vmatprep.subr.mxu0 0.0
    %983 = vmatpush1.msra.mxu0 0.0
    %984 = vmatprep.subr.mxu0 0.0
    %985 = vmatpush1.msra.mxu0 0.0
    %986 = vmatprep.subr.mxu0 0.0
    %987 = vmatpush1.msra.mxu0 0.0
    %988 = vmatprep.subr.mxu0 0.0
    %989 = vmatpush1.msra.mxu0 0.0
    %990 = vmatprep.mubr.f32.mxu0 0.0
    %991 = vmatmul.mubr.f32.gmra.mrb[0].mxu0 %v801
    %v992 = vpop.f32.mrb[0].mxu0
    %v993 = vadd.f32 0.0, %v992
    %v994 = vpop.f32.mrb[0].mxu0
    %v995 = vadd.f32 0.0, %v994
    %996 = vmatprep.mubr.f32.mxu0 0.0
    %997 = vmatmul.mubr.f32.gmra.mrb[0].mxu0 %v803
    %v998 = vpop.f32.mrb[0].mxu0
    %v999 = vadd.f32 0.0, %v998
    %v1000 = vpop.f32.mrb[0].mxu0
    %v1001 = vadd.f32 0.0, %v1000
    %1002 = vmatprep.mubr.f32.mxu0 0.0
    %1003 = vmatmul.mubr.f32.gmra.mrb[0].mxu0 %v805
    %v1004 = vpop.f32.mrb[0].mxu0
    %v1005 = vadd.f32 0.0, %v1004
    %v1006 = vpop.f32.mrb[0].mxu0
    %v1007 = vadd.f32 0.0, %v1006
    %1008 = vmatprep.mubr.f32.mxu0 0.0
    %1009 = vmatmul.mubr.f32.gmra.mrb[0].mxu0 %v807
    %v1010 = vpop.f32.mrb[0].mxu0
    %v1011 = vadd.f32 0.0, %v1010
    %v1012 = vpop.f32.mrb[0].mxu0
    %v1013 = vadd.f32 0.0, %v1012
    %1014 = vmatprep.mubr.f32.mxu0 0.0
    %1015 = vmatmul.mubr.f32.gmra.mrb[0].mxu0 %v809
    %v1016 = vpop.f32.mrb[0].mxu0
    %v1017 = vadd.f32 0.0, %v1016
    %v1018 = vpop.f32.mrb[0].mxu0
    %v1019 = vadd.f32 0.0, %v1018
    %1020 = vmatprep.mubr.f32.mxu0 0.0
    %1021 = vmatmul.mubr.f32.gmra.mrb[0].mxu0 %v811
    %v1022 = vpop.f32.mrb[0].mxu0
    %v1023 = vadd.f32 0.0, %v1022
    %v1024 = vpop.f32.mrb[0].mxu0
    %v1025 = vadd.f32 0.0, %v1024
    %1026 = vdwg.mxu0
    %v1027 = vadd.f32 %v747, %v892
    %v1028 = vadd.f32 %v748, %v894
    %v1029 = vadd.f32 %v749, %v993
    %v1030 = vadd.f32 %v750, %v995
    %v1031 = vadd.f32 %v751, %v898
    %v1032 = vadd.f32 %v752, %v900
    %v1033 = vadd.f32 %v753, %v999
    %v1034 = vadd.f32 %v754, %v1001
    %v1035 = vadd.f32 %v755, %v904
    %v1036 = vadd.f32 %v756, %v906
    %v1037 = vadd.f32 %v757, %v1005
    %v1038 = vadd.f32 %v758, %v1007
    %v1039 = vadd.f32 %v759, %v910
    %v1040 = vadd.f32 %v760, %v912
    %v1041 = vadd.f32 %v761, %v1011
    %v1042 = vadd.f32 %v762, %v1013
    %v1043 = vadd.f32 %v763, %v916
    %v1044 = vadd.f32 %v764, %v918
    %v1045 = vadd.f32 %v765, %v1017
    %v1046 = vadd.f32 %v766, %v1019
    %v1047 = vadd.f32 %v767, %v922
    %v1048 = vadd.f32 %v768, %v924
    %v1049 = vadd.f32 %v769, %v1023
    %v1050 = vadd.f32 %v770, %v1025
    %s1051 = scalar_lea.vmem [#allocation2], 384
    %v1052 = vld [vmem:[%s1051] sm:$0xff]
    %v1053 = vld [vmem:[%s1051 + $0x8] sm:$0xff]
    %v1054 = vld [vmem:[%s1051 + $0x10] sm:$0xff]
    %v1055 = vld [vmem:[%s1051 + $0x18] sm:$0xff]
    %v1056 = vld [vmem:[%s1051 + $0x20] sm:$0xff]
    %v1057 = vld [vmem:[%s1051 + $0x28] sm:$0xff]
    %v1058 = vld [vmem:[%s1051 + $0x30] sm:$0xff]
    %v1059 = vld [vmem:[%s1051 + $0x38] sm:$0xff]
    %v1060 = vld [vmem:[%s1051 + $0x40] sm:$0xff]
    %v1061 = vld [vmem:[%s1051 + $0x48] sm:$0xff]
    %v1062 = vld [vmem:[%s1051 + $0x50] sm:$0xff]
    %v1063 = vld [vmem:[%s1051 + $0x58] sm:$0xff]
    %v1064 = vld [vmem:[%s1051 + $0x60] sm:$0xf]
    %v1065 = vld [vmem:[%s1051 + $0x68] sm:$0xf]
    %v1066 = vld [vmem:[%s1051 + $0x70] sm:$0xf]
    %v1067 = vld [vmem:[%s1051 + $0x78] sm:$0xf]
    %vm1068 = vcmask 1041408
    %v1069 = vrot.slane %v182, 6
    %v1070 = vrot.slane %v183, 6
    %v1071 = vsel %vm1068, %v1069, %v1070
    %v1072 = vrot.slane %v184, 6
    %v1073 = vsel %vm1068, %v1070, %v1072
    %v1074 = vrot.slane %v185, 6
    %v1075 = vsel %vm1068, %v1072, %v1074
    %v1076 = vrot.slane %v186, 6
    %v1077 = vsel %vm1068, %v1074, %v1076
    %v1078 = vrot.slane %v187, 6
    %v1079 = vsel %vm1068, %v1076, %v1078
    %v1080 = vrot.slane %v188, 6
    %v1081 = vsel %vm1068, %v1078, %v1080
    %v1082 = vsel %vm231, %v1071, 0
    %v1084 = vsel %vm231, %v1073, 0
    %v1086 = vsel %vm231, %v1075, 0
    %v1088 = vsel %vm231, %v1077, 0
    %v1090 = vsel %vm231, %v1079, 0
    %v1092 = vsel %vm231, %v1081, 0
    %v1095 = vsel %vm250, %v1064, 0
    %v1098 = vsel %vm250, %v1065, 0
    %v1101 = vsel %vm250, %v1066, 0
    %v1104 = vsel %vm250, %v1067, 0
    %1106 = vmatprep.subr.mxu0 %v1053
    %1107 = vmatpush1.msra.mxu0 %v1052
    %1108 = vmatprep.subr.mxu0 %v1057
    %1109 = vmatpush1.msra.mxu0 %v1056
    %1110 = vmatprep.subr.mxu0 %v1061
    %1111 = vmatpush1.msra.mxu0 %v1060
    %1112 = vmatprep.subr.mxu0 %v1098
    %1113 = vmatpush1.msra.mxu0 %v1095
    %1114 = vmatprep.subr.mxu0 0.0
    %1115 = vmatpush1.msra.mxu0 0.0
    %1116 = vmatprep.subr.mxu0 0.0
    %1117 = vmatpush1.msra.mxu0 0.0
    %1118 = vmatprep.subr.mxu0 0.0
    %1119 = vmatpush1.msra.mxu0 0.0
    %1120 = vmatprep.subr.mxu0 0.0
    %1121 = vmatpush1.msra.mxu0 0.0
    %1122 = vmatprep.subr.mxu0 0.0
    %1123 = vmatpush1.msra.mxu0 0.0
    %1124 = vmatprep.subr.mxu0 0.0
    %1125 = vmatpush1.msra.mxu0 0.0
    %1126 = vmatprep.subr.mxu0 0.0
    %1127 = vmatpush1.msra.mxu0 0.0
    %1128 = vmatprep.subr.mxu0 0.0
    %1129 = vmatpush1.msra.mxu0 0.0
    %1130 = vmatprep.subr.mxu0 0.0
    %1131 = vmatpush1.msra.mxu0 0.0
    %1132 = vmatprep.subr.mxu0 0.0
    %1133 = vmatpush1.msra.mxu0 0.0
    %1134 = vmatprep.subr.mxu0 0.0
    %1135 = vmatpush1.msra.mxu0 0.0
    %1136 = vmatprep.subr.mxu0 0.0
    %1137 = vmatpush1.msra.mxu0 0.0
    %1138 = vmatprep.subr.mxu0 0.0
    %1139 = vmatpush1.msra.mxu0 0.0
    %1140 = vmatprep.subr.mxu0 0.0
    %1141 = vmatpush1.msra.mxu0 0.0
    %1142 = vmatprep.subr.mxu0 0.0
    %1143 = vmatpush1.msra.mxu0 0.0
    %1144 = vmatprep.subr.mxu0 0.0
    %1145 = vmatpush1.msra.mxu0 0.0
    %1146 = vmatprep.subr.mxu0 0.0
    %1147 = vmatpush1.msra.mxu0 0.0
    %1148 = vmatprep.subr.mxu0 0.0
    %1149 = vmatpush1.msra.mxu0 0.0
    %1150 = vmatprep.subr.mxu0 0.0
    %1151 = vmatpush1.msra.mxu0 0.0
    %1152 = vmatprep.subr.mxu0 0.0
    %1153 = vmatpush1.msra.mxu0 0.0
    %1154 = vmatprep.subr.mxu0 0.0
    %1155 = vmatpush1.msra.mxu0 0.0
    %1156 = vmatprep.subr.mxu0 0.0
    %1157 = vmatpush1.msra.mxu0 0.0
    %1158 = vmatprep.subr.mxu0 0.0
    %1159 = vmatpush1.msra.mxu0 0.0
    %1160 = vmatprep.subr.mxu0 0.0
    %1161 = vmatpush1.msra.mxu0 0.0
    %1162 = vmatprep.subr.mxu0 0.0
    %1163 = vmatpush1.msra.mxu0 0.0
    %1164 = vmatprep.subr.mxu0 0.0
    %1165 = vmatpush1.msra.mxu0 0.0
    %1166 = vmatprep.subr.mxu0 0.0
    %1167 = vmatpush1.msra.mxu0 0.0
    %1168 = vmatprep.subr.mxu0 0.0
    %1169 = vmatpush1.msra.mxu0 0.0
    %1170 = vmatprep.mubr.f32.mxu0 0.0
    %1171 = vmatmul.mubr.f32.gmra.mrb[0].mxu0 %v1082
    %v1172 = vpop.f32.mrb[0].mxu0
    %v1173 = vadd.f32 0.0, %v1172
    %v1174 = vpop.f32.mrb[0].mxu0
    %v1175 = vadd.f32 0.0, %v1174
    %1176 = vmatprep.mubr.f32.mxu0 0.0
    %1177 = vmatmul.mubr.f32.gmra.mrb[0].mxu0 %v1084
    %v1178 = vpop.f32.mrb[0].mxu0
    %v1179 = vadd.f32 0.0, %v1178
    %v1180 = vpop.f32.mrb[0].mxu0
    %v1181 = vadd.f32 0.0, %v1180
    %1182 = vmatprep.mubr.f32.mxu0 0.0
    %1183 = vmatmul.mubr.f32.gmra.mrb[0].mxu0 %v1086
    %v1184 = vpop.f32.mrb[0].mxu0
    %v1185 = vadd.f32 0.0, %v1184
    %v1186 = vpop.f32.mrb[0].mxu0
    %v1187 = vadd.f32 0.0, %v1186
    %1188 = vmatprep.mubr.f32.mxu0 0.0
    %1189 = vmatmul.mubr.f32.gmra.mrb[0].mxu0 %v1088
    %v1190 = vpop.f32.mrb[0].mxu0
    %v1191 = vadd.f32 0.0, %v1190
    %v1192 = vpop.f32.mrb[0].mxu0
    %v1193 = vadd.f32 0.0, %v1192
    %1194 = vmatprep.mubr.f32.mxu0 0.0
    %1195 = vmatmul.mubr.f32.gmra.mrb[0].mxu0 %v1090
    %v1196 = vpop.f32.mrb[0].mxu0
    %v1197 = vadd.f32 0.0, %v1196
    %v1198 = vpop.f32.mrb[0].mxu0
    %v1199 = vadd.f32 0.0, %v1198
    %1200 = vmatprep.mubr.f32.mxu0 0.0
    %1201 = vmatmul.mubr.f32.gmra.mrb[0].mxu0 %v1092
    %v1202 = vpop.f32.mrb[0].mxu0
    %v1203 = vadd.f32 0.0, %v1202
    %v1204 = vpop.f32.mrb[0].mxu0
    %v1205 = vadd.f32 0.0, %v1204
    %1206 = vdwg.mxu0
    %1207 = vmatprep.subr.mxu0 %v1055
    %1208 = vmatpush1.msra.mxu0 %v1054
    %1209 = vmatprep.subr.mxu0 %v1059
    %1210 = vmatpush1.msra.mxu0 %v1058
    %1211 = vmatprep.subr.mxu0 %v1063
    %1212 = vmatpush1.msra.mxu0 %v1062
    %1213 = vmatprep.subr.mxu0 %v1104
    %1214 = vmatpush1.msra.mxu0 %v1101
    %1215 = vmatprep.subr.mxu0 0.0
    %1216 = vmatpush1.msra.mxu0 0.0
    %1217 = vmatprep.subr.mxu0 0.0
    %1218 = vmatpush1.msra.mxu0 0.0
    %1219 = vmatprep.subr.mxu0 0.0
    %1220 = vmatpush1.msra.mxu0 0.0
    %1221 = vmatprep.subr.mxu0 0.0
    %1222 = vmatpush1.msra.mxu0 0.0
    %1223 = vmatprep.subr.mxu0 0.0
    %1224 = vmatpush1.msra.mxu0 0.0
    %1225 = vmatprep.subr.mxu0 0.0
    %1226 = vmatpush1.msra.mxu0 0.0
    %1227 = vmatprep.subr.mxu0 0.0
    %1228 = vmatpush1.msra.mxu0 0.0
    %1229 = vmatprep.subr.mxu0 0.0
    %1230 = vmatpush1.msra.mxu0 0.0
    %1231 = vmatprep.subr.mxu0 0.0
    %1232 = vmatpush1.msra.mxu0 0.0
    %1233 = vmatprep.subr.mxu0 0.0
    %1234 = vmatpush1.msra.mxu0 0.0
    %1235 = vmatprep.subr.mxu0 0.0
    %1236 = vmatpush1.msra.mxu0 0.0
    %1237 = vmatprep.subr.mxu0 0.0
    %1238 = vmatpush1.msra.mxu0 0.0
    %1239 = vmatprep.subr.mxu0 0.0
    %1240 = vmatpush1.msra.mxu0 0.0
    %1241 = vmatprep.subr.mxu0 0.0
    %1242 = vmatpush1.msra.mxu0 0.0
    %1243 = vmatprep.subr.mxu0 0.0
    %1244 = vmatpush1.msra.mxu0 0.0
    %1245 = vmatprep.subr.mxu0 0.0
    %1246 = vmatpush1.msra.mxu0 0.0
    %1247 = vmatprep.subr.mxu0 0.0
    %1248 = vmatpush1.msra.mxu0 0.0
    %1249 = vmatprep.subr.mxu0 0.0
    %1250 = vmatpush1.msra.mxu0 0.0
    %1251 = vmatprep.subr.mxu0 0.0
    %1252 = vmatpush1.msra.mxu0 0.0
    %1253 = vmatprep.subr.mxu0 0.0
    %1254 = vmatpush1.msra.mxu0 0.0
    %1255 = vmatprep.subr.mxu0 0.0
    %1256 = vmatpush1.msra.mxu0 0.0
    %1257 = vmatprep.subr.mxu0 0.0
    %1258 = vmatpush1.msra.mxu0 0.0
    %1259 = vmatprep.subr.mxu0 0.0
    %1260 = vmatpush1.msra.mxu0 0.0
    %1261 = vmatprep.subr.mxu0 0.0
    %1262 = vmatpush1.msra.mxu0 0.0
    %1263 = vmatprep.subr.mxu0 0.0
    %1264 = vmatpush1.msra.mxu0 0.0
    %1265 = vmatprep.subr.mxu0 0.0
    %1266 = vmatpush1.msra.mxu0 0.0
    %1267 = vmatprep.subr.mxu0 0.0
    %1268 = vmatpush1.msra.mxu0 0.0
    %1269 = vmatprep.subr.mxu0 0.0
    %1270 = vmatpush1.msra.mxu0 0.0
    %1271 = vmatprep.mubr.f32.mxu0 0.0
    %1272 = vmatmul.mubr.f32.gmra.mrb[0].mxu0 %v1082
    %v1273 = vpop.f32.mrb[0].mxu0
    %v1274 = vadd.f32 0.0, %v1273
    %v1275 = vpop.f32.mrb[0].mxu0
    %v1276 = vadd.f32 0.0, %v1275
    %1277 = vmatprep.mubr.f32.mxu0 0.0
    %1278 = vmatmul.mubr.f32.gmra.mrb[0].mxu0 %v1084
    %v1279 = vpop.f32.mrb[0].mxu0
    %v1280 = vadd.f32 0.0, %v1279
    %v1281 = vpop.f32.mrb[0].mxu0
    %v1282 = vadd.f32 0.0, %v1281
    %1283 = vmatprep.mubr.f32.mxu0 0.0
    %1284 = vmatmul.mubr.f32.gmra.mrb[0].mxu0 %v1086
    %v1285 = vpop.f32.mrb[0].mxu0
    %v1286 = vadd.f32 0.0, %v1285
    %v1287 = vpop.f32.mrb[0].mxu0
    %v1288 = vadd.f32 0.0, %v1287
    %1289 = vmatprep.mubr.f32.mxu0 0.0
    %1290 = vmatmul.mubr.f32.gmra.mrb[0].mxu0 %v1088
    %v1291 = vpop.f32.mrb[0].mxu0
    %v1292 = vadd.f32 0.0, %v1291
    %v1293 = vpop.f32.mrb[0].mxu0
    %v1294 = vadd.f32 0.0, %v1293
    %1295 = vmatprep.mubr.f32.mxu0 0.0
    %1296 = vmatmul.mubr.f32.gmra.mrb[0].mxu0 %v1090
    %v1297 = vpop.f32.mrb[0].mxu0
    %v1298 = vadd.f32 0.0, %v1297
    %v1299 = vpop.f32.mrb[0].mxu0
    %v1300 = vadd.f32 0.0, %v1299
    %1301 = vmatprep.mubr.f32.mxu0 0.0
    %1302 = vmatmul.mubr.f32.gmra.mrb[0].mxu0 %v1092
    %v1303 = vpop.f32.mrb[0].mxu0
    %v1304 = vadd.f32 0.0, %v1303
    %v1305 = vpop.f32.mrb[0].mxu0
    %v1306 = vadd.f32 0.0, %v1305
    %1307 = vdwg.mxu0
    %v1308 = vadd.f32 %v1027, %v1173
    %v1309 = vadd.f32 %v1028, %v1175
    %v1310 = vadd.f32 %v1029, %v1274
    %v1311 = vadd.f32 %v1030, %v1276
    %v1312 = vadd.f32 %v1031, %v1179
    %v1313 = vadd.f32 %v1032, %v1181
    %v1314 = vadd.f32 %v1033, %v1280
    %v1315 = vadd.f32 %v1034, %v1282
    %v1316 = vadd.f32 %v1035, %v1185
    %v1317 = vadd.f32 %v1036, %v1187
    %v1318 = vadd.f32 %v1037, %v1286
    %v1319 = vadd.f32 %v1038, %v1288
    %v1320 = vadd.f32 %v1039, %v1191
    %v1321 = vadd.f32 %v1040, %v1193
    %v1322 = vadd.f32 %v1041, %v1292
    %v1323 = vadd.f32 %v1042, %v1294
    %v1324 = vadd.f32 %v1043, %v1197
    %v1325 = vadd.f32 %v1044, %v1199
    %v1326 = vadd.f32 %v1045, %v1298
    %v1327 = vadd.f32 %v1046, %v1300
    %v1328 = vadd.f32 %v1047, %v1203
    %v1329 = vadd.f32 %v1048, %v1205
    %v1330 = vadd.f32 %v1049, %v1304
    %v1331 = vadd.f32 %v1050, %v1306
    %s1332 = scalar_lea.vmem [#allocation2], 512
    %v1333 = vld [vmem:[%s1332] sm:$0xff]
    %v1334 = vld [vmem:[%s1332 + $0x8] sm:$0xff]
    %v1335 = vld [vmem:[%s1332 + $0x10] sm:$0xff]
    %v1336 = vld [vmem:[%s1332 + $0x18] sm:$0xff]
    %v1337 = vld [vmem:[%s1332 + $0x20] sm:$0xff]
    %v1338 = vld [vmem:[%s1332 + $0x28] sm:$0xff]
    %v1339 = vld [vmem:[%s1332 + $0x30] sm:$0xff]
    %v1340 = vld [vmem:[%s1332 + $0x38] sm:$0xff]
    %v1341 = vld [vmem:[%s1332 + $0x40] sm:$0xff]
    %v1342 = vld [vmem:[%s1332 + $0x48] sm:$0xff]
    %v1343 = vld [vmem:[%s1332 + $0x50] sm:$0xff]
    %v1344 = vld [vmem:[%s1332 + $0x58] sm:$0xff]
    %v1345 = vld [vmem:[%s1332 + $0x60] sm:$0xf]
    %v1346 = vld [vmem:[%s1332 + $0x68] sm:$0xf]
    %v1347 = vld [vmem:[%s1332 + $0x70] sm:$0xf]
    %v1348 = vld [vmem:[%s1332 + $0x78] sm:$0xf]
    %v1349 = vsel %vm231, %v188, 0
    %v1352 = vsel %vm250, %v1345, 0
    %v1355 = vsel %vm250, %v1346, 0
    %v1358 = vsel %vm250, %v1347, 0
    %v1361 = vsel %vm250, %v1348, 0
    %1363 = vmatprep.subr.mxu0 %v1334
    %1364 = vmatpush1.msra.mxu0 %v1333
    %1365 = vmatprep.subr.mxu0 %v1338
    %1366 = vmatpush1.msra.mxu0 %v1337
    %1367 = vmatprep.subr.mxu0 %v1342
    %1368 = vmatpush1.msra.mxu0 %v1341
    %1369 = vmatprep.subr.mxu0 %v1355
    %1370 = vmatpush1.msra.mxu0 %v1352
    %1371 = vmatprep.subr.mxu0 0.0
    %1372 = vmatpush1.msra.mxu0 0.0
    %1373 = vmatprep.subr.mxu0 0.0
    %1374 = vmatpush1.msra.mxu0 0.0
    %1375 = vmatprep.subr.mxu0 0.0
    %1376 = vmatpush1.msra.mxu0 0.0
    %1377 = vmatprep.subr.mxu0 0.0
    %1378 = vmatpush1.msra.mxu0 0.0
    %1379 = vmatprep.subr.mxu0 0.0
    %1380 = vmatpush1.msra.mxu0 0.0
    %1381 = vmatprep.subr.mxu0 0.0
    %1382 = vmatpush1.msra.mxu0 0.0
    %1383 = vmatprep.subr.mxu0 0.0
    %1384 = vmatpush1.msra.mxu0 0.0
    %1385 = vmatprep.subr.mxu0 0.0
    %1386 = vmatpush1.msra.mxu0 0.0
    %1387 = vmatprep.subr.mxu0 0.0
    %1388 = vmatpush1.msra.mxu0 0.0
    %1389 = vmatprep.subr.mxu0 0.0
    %1390 = vmatpush1.msra.mxu0 0.0
    %1391 = vmatprep.subr.mxu0 0.0
    %1392 = vmatpush1.msra.mxu0 0.0
    %1393 = vmatprep.subr.mxu0 0.0
    %1394 = vmatpush1.msra.mxu0 0.0
    %1395 = vmatprep.subr.mxu0 0.0
    %1396 = vmatpush1.msra.mxu0 0.0
    %1397 = vmatprep.subr.mxu0 0.0
    %1398 = vmatpush1.msra.mxu0 0.0
    %1399 = vmatprep.subr.mxu0 0.0
    %1400 = vmatpush1.msra.mxu0 0.0
    %1401 = vmatprep.subr.mxu0 0.0
    %1402 = vmatpush1.msra.mxu0 0.0
    %1403 = vmatprep.subr.mxu0 0.0
    %1404 = vmatpush1.msra.mxu0 0.0
    %1405 = vmatprep.subr.mxu0 0.0
    %1406 = vmatpush1.msra.mxu0 0.0
    %1407 = vmatprep.subr.mxu0 0.0
    %1408 = vmatpush1.msra.mxu0 0.0
    %1409 = vmatprep.subr.mxu0 0.0
    %1410 = vmatpush1.msra.mxu0 0.0
    %1411 = vmatprep.subr.mxu0 0.0
    %1412 = vmatpush1.msra.mxu0 0.0
    %1413 = vmatprep.subr.mxu0 0.0
    %1414 = vmatpush1.msra.mxu0 0.0
    %1415 = vmatprep.subr.mxu0 0.0
    %1416 = vmatpush1.msra.mxu0 0.0
    %1417 = vmatprep.subr.mxu0 0.0
    %1418 = vmatpush1.msra.mxu0 0.0
    %1419 = vmatprep.subr.mxu0 0.0
    %1420 = vmatpush1.msra.mxu0 0.0
    %1421 = vmatprep.subr.mxu0 0.0
    %1422 = vmatpush1.msra.mxu0 0.0
    %1423 = vmatprep.subr.mxu0 0.0
    %1424 = vmatpush1.msra.mxu0 0.0
    %1425 = vmatprep.subr.mxu0 0.0
    %1426 = vmatpush1.msra.mxu0 0.0
    %1427 = vmatprep.mubr.f32.mxu0 0.0
    %1428 = vmatmul.mubr.f32.gmra.mrb[0].mxu0 %v236
    %v1429 = vpop.f32.mrb[0].mxu0
    %v1430 = vadd.f32 0.0, %v1429
    %v1431 = vpop.f32.mrb[0].mxu0
    %v1432 = vadd.f32 0.0, %v1431
    %1433 = vmatprep.mubr.f32.mxu0 0.0
    %1434 = vmatmul.mubr.f32.gmra.mrb[0].mxu0 %v239
    %v1435 = vpop.f32.mrb[0].mxu0
    %v1436 = vadd.f32 0.0, %v1435
    %v1437 = vpop.f32.mrb[0].mxu0
    %v1438 = vadd.f32 0.0, %v1437
    %1439 = vmatprep.mubr.f32.mxu0 0.0
    %1440 = vmatmul.mubr.f32.gmra.mrb[0].mxu0 %v242
    %v1441 = vpop.f32.mrb[0].mxu0
    %v1442 = vadd.f32 0.0, %v1441
    %v1443 = vpop.f32.mrb[0].mxu0
    %v1444 = vadd.f32 0.0, %v1443
    %1445 = vmatprep.mubr.f32.mxu0 0.0
    %1446 = vmatmul.mubr.f32.gmra.mrb[0].mxu0 %v245
    %v1447 = vpop.f32.mrb[0].mxu0
    %v1448 = vadd.f32 0.0, %v1447
    %v1449 = vpop.f32.mrb[0].mxu0
    %v1450 = vadd.f32 0.0, %v1449
    %1451 = vmatprep.mubr.f32.mxu0 0.0
    %1452 = vmatmul.mubr.f32.gmra.mrb[0].mxu0 %v248
    %v1453 = vpop.f32.mrb[0].mxu0
    %v1454 = vadd.f32 0.0, %v1453
    %v1455 = vpop.f32.mrb[0].mxu0
    %v1456 = vadd.f32 0.0, %v1455
    %1457 = vmatprep.mubr.f32.mxu0 0.0
    %1458 = vmatmul.mubr.f32.gmra.mrb[0].mxu0 %v1349
    %v1459 = vpop.f32.mrb[0].mxu0
    %v1460 = vadd.f32 0.0, %v1459
    %v1461 = vpop.f32.mrb[0].mxu0
    %v1462 = vadd.f32 0.0, %v1461
    %1463 = vdwg.mxu0
    %1464 = vmatprep.subr.mxu0 %v1336
    %1465 = vmatpush1.msra.mxu0 %v1335
    %1466 = vmatprep.subr.mxu0 %v1340
    %1467 = vmatpush1.msra.mxu0 %v1339
    %1468 = vmatprep.subr.mxu0 %v1344
    %1469 = vmatpush1.msra.mxu0 %v1343
    %1470 = vmatprep.subr.mxu0 %v1361
    %1471 = vmatpush1.msra.mxu0 %v1358
    %1472 = vmatprep.subr.mxu0 0.0
    %1473 = vmatpush1.msra.mxu0 0.0
    %1474 = vmatprep.subr.mxu0 0.0
    %1475 = vmatpush1.msra.mxu0 0.0
    %1476 = vmatprep.subr.mxu0 0.0
    %1477 = vmatpush1.msra.mxu0 0.0
    %1478 = vmatprep.subr.mxu0 0.0
    %1479 = vmatpush1.msra.mxu0 0.0
    %1480 = vmatprep.subr.mxu0 0.0
    %1481 = vmatpush1.msra.mxu0 0.0
    %1482 = vmatprep.subr.mxu0 0.0
    %1483 = vmatpush1.msra.mxu0 0.0
    %1484 = vmatprep.subr.mxu0 0.0
    %1485 = vmatpush1.msra.mxu0 0.0
    %1486 = vmatprep.subr.mxu0 0.0
    %1487 = vmatpush1.msra.mxu0 0.0
    %1488 = vmatprep.subr.mxu0 0.0
    %1489 = vmatpush1.msra.mxu0 0.0
    %1490 = vmatprep.subr.mxu0 0.0
    %1491 = vmatpush1.msra.mxu0 0.0
    %1492 = vmatprep.subr.mxu0 0.0
    %1493 = vmatpush1.msra.mxu0 0.0
    %1494 = vmatprep.subr.mxu0 0.0
    %1495 = vmatpush1.msra.mxu0 0.0
    %1496 = vmatprep.subr.mxu0 0.0
    %1497 = vmatpush1.msra.mxu0 0.0
    %1498 = vmatprep.subr.mxu0 0.0
    %1499 = vmatpush1.msra.mxu0 0.0
    %1500 = vmatprep.subr.mxu0 0.0
    %1501 = vmatpush1.msra.mxu0 0.0
    %1502 = vmatprep.subr.mxu0 0.0
    %1503 = vmatpush1.msra.mxu0 0.0
    %1504 = vmatprep.subr.mxu0 0.0
    %1505 = vmatpush1.msra.mxu0 0.0
    %1506 = vmatprep.subr.mxu0 0.0
    %1507 = vmatpush1.msra.mxu0 0.0
    %1508 = vmatprep.subr.mxu0 0.0
    %1509 = vmatpush1.msra.mxu0 0.0
    %1510 = vmatprep.subr.mxu0 0.0
    %1511 = vmatpush1.msra.mxu0 0.0
    %1512 = vmatprep.subr.mxu0 0.0
    %1513 = vmatpush1.msra.mxu0 0.0
    %1514 = vmatprep.subr.mxu0 0.0
    %1515 = vmatpush1.msra.mxu0 0.0
    %1516 = vmatprep.subr.mxu0 0.0
    %1517 = vmatpush1.msra.mxu0 0.0
    %1518 = vmatprep.subr.mxu0 0.0
    %1519 = vmatpush1.msra.mxu0 0.0
    %1520 = vmatprep.subr.mxu0 0.0
    %1521 = vmatpush1.msra.mxu0 0.0
    %1522 = vmatprep.subr.mxu0 0.0
    %1523 = vmatpush1.msra.mxu0 0.0
    %1524 = vmatprep.subr.mxu0 0.0
    %1525 = vmatpush1.msra.mxu0 0.0
    %1526 = vmatprep.subr.mxu0 0.0
    %1527 = vmatpush1.msra.mxu0 0.0
    %1528 = vmatprep.mubr.f32.mxu0 0.0
    %1529 = vmatmul.mubr.f32.gmra.mrb[0].mxu0 %v236
    %v1530 = vpop.f32.mrb[0].mxu0
    %v1531 = vadd.f32 0.0, %v1530
    %v1532 = vpop.f32.mrb[0].mxu0
    %v1533 = vadd.f32 0.0, %v1532
    %1534 = vmatprep.mubr.f32.mxu0 0.0
    %1535 = vmatmul.mubr.f32.gmra.mrb[0].mxu0 %v239
    %v1536 = vpop.f32.mrb[0].mxu0
    %v1537 = vadd.f32 0.0, %v1536
    %v1538 = vpop.f32.mrb[0].mxu0
    %v1539 = vadd.f32 0.0, %v1538
    %1540 = vmatprep.mubr.f32.mxu0 0.0
    %1541 = vmatmul.mubr.f32.gmra.mrb[0].mxu0 %v242
    %v1542 = vpop.f32.mrb[0].mxu0
    %v1543 = vadd.f32 0.0, %v1542
    %v1544 = vpop.f32.mrb[0].mxu0
    %v1545 = vadd.f32 0.0, %v1544
    %1546 = vmatprep.mubr.f32.mxu0 0.0
    %1547 = vmatmul.mubr.f32.gmra.mrb[0].mxu0 %v245
    %v1548 = vpop.f32.mrb[0].mxu0
    %v1549 = vadd.f32 0.0, %v1548
    %v1550 = vpop.f32.mrb[0].mxu0
    %v1551 = vadd.f32 0.0, %v1550
    %1552 = vmatprep.mubr.f32.mxu0 0.0
    %1553 = vmatmul.mubr.f32.gmra.mrb[0].mxu0 %v248
    %v1554 = vpop.f32.mrb[0].mxu0
    %v1555 = vadd.f32 0.0, %v1554
    %v1556 = vpop.f32.mrb[0].mxu0
    %v1557 = vadd.f32 0.0, %v1556
    %1558 = vmatprep.mubr.f32.mxu0 0.0
    %1559 = vmatmul.mubr.f32.gmra.mrb[0].mxu0 %v1349
    %v1560 = vpop.f32.mrb[0].mxu0
    %v1561 = vadd.f32 0.0, %v1560
    %v1562 = vpop.f32.mrb[0].mxu0
    %v1563 = vadd.f32 0.0, %v1562
    %1564 = vdwg.mxu0
    %v1565 = vadd.f32 %v1308, %v1430
    %v1566 = vadd.f32 %v1309, %v1432
    %v1567 = vadd.f32 %v1310, %v1531
    %v1568 = vadd.f32 %v1311, %v1533
    %v1569 = vadd.f32 %v1312, %v1436
    %v1570 = vadd.f32 %v1313, %v1438
    %v1571 = vadd.f32 %v1314, %v1537
    %v1572 = vadd.f32 %v1315, %v1539
    %v1573 = vadd.f32 %v1316, %v1442
    %v1574 = vadd.f32 %v1317, %v1444
    %v1575 = vadd.f32 %v1318, %v1543
    %v1576 = vadd.f32 %v1319, %v1545
    %v1577 = vadd.f32 %v1320, %v1448
    %v1578 = vadd.f32 %v1321, %v1450
    %v1579 = vadd.f32 %v1322, %v1549
    %v1580 = vadd.f32 %v1323, %v1551
    %v1581 = vadd.f32 %v1324, %v1454
    %v1582 = vadd.f32 %v1325, %v1456
    %v1583 = vadd.f32 %v1326, %v1555
    %v1584 = vadd.f32 %v1327, %v1557
    %v1585 = vadd.f32 %v1328, %v1460
    %v1586 = vadd.f32 %v1329, %v1462
    %v1587 = vadd.f32 %v1330, %v1561
    %v1588 = vadd.f32 %v1331, %v1563
    %v1589 = vmax.f32 %v1565, %v1567
    %v1590 = vmax.f32 %v1566, %v1568
    %v1591 = vmax.f32 %v1569, %v1571
    %v1592 = vmax.f32 %v1570, %v1572
    %v1593 = vmax.f32 %v1573, %v1575
    %v1594 = vmax.f32 %v1574, %v1576
    %v1595 = vmax.f32 %v1577, %v1579
    %v1596 = vmax.f32 %v1578, %v1580
    %v1597 = vmax.f32 %v1581, %v1583
    %v1598 = vmax.f32 %v1582, %v1584
    %v1599 = vmax.f32 %v1585, %v1587
    %v1600 = vmax.f32 %v1586, %v1588
    %v1601 = vmax.f32 %v1589, 0.0
    %v1602 = vmax.f32 %v1590, 0.0
    %v1603 = vmax.f32 %v1591, 0.0
    %v1604 = vmax.f32 %v1592, 0.0
    %v1605 = vmax.f32 %v1593, 0.0
    %v1606 = vmax.f32 %v1594, 0.0
    %v1607 = vmax.f32 %v1595, 0.0
    %v1608 = vmax.f32 %v1596, 0.0
    %v1609 = vmax.f32 %v1597, 0.0
    %v1610 = vmax.f32 %v1598, 0.0
    %v1611 = vmax.f32 %v1599, 0.0
    %v1612 = vmax.f32 %v1600, 0.0
    %v1613 = vld [vmem:[#allocation7] sm:$0xff]
    %v1614 = vld [vmem:[#allocation7 + $0x8] sm:$0xff]
    %v1615 = vld [vmem:[#allocation7 + $0x10] sm:$0xff]
    %vm1616 = vcmask 392192
    %v1618 = vsel %vm1616, %v1613, 0
    %v1621 = vsel %vm1616, %v1614, 0
    %v1624 = vsel %vm1616, %v1615, 0
    %1626 = vmatprep.subr.mxu0 %v1602
    %1627 = vmatpush1.msra.mxu0 %v1601
    %1628 = vmatprep.subr.mxu0 %v1604
    %1629 = vmatpush1.msra.mxu0 %v1603
    %1630 = vmatprep.subr.mxu0 %v1606
    %1631 = vmatpush1.msra.mxu0 %v1605
    %1632 = vmatprep.subr.mxu0 %v1608
    %1633 = vmatpush1.msra.mxu0 %v1607
    %1634 = vmatprep.subr.mxu0 %v1610
    %1635 = vmatpush1.msra.mxu0 %v1609
    %1636 = vmatprep.subr.mxu0 %v1612
    %1637 = vmatpush1.msra.mxu0 %v1611
    %1638 = vmatprep.subr.mxu0 0.0
    %1639 = vmatpush1.msra.mxu0 0.0
    %1640 = vmatprep.subr.mxu0 0.0
    %1641 = vmatpush1.msra.mxu0 0.0
    %1642 = vmatprep.subr.mxu0 0.0
    %1643 = vmatpush1.msra.mxu0 0.0
    %1644 = vmatprep.subr.mxu0 0.0
    %1645 = vmatpush1.msra.mxu0 0.0
    %1646 = vmatprep.subr.mxu0 0.0
    %1647 = vmatpush1.msra.mxu0 0.0
    %1648 = vmatprep.subr.mxu0 0.0
    %1649 = vmatpush1.msra.mxu0 0.0
    %1650 = vmatprep.subr.mxu0 0.0
    %1651 = vmatpush1.msra.mxu0 0.0
    %1652 = vmatprep.subr.mxu0 0.0
    %1653 = vmatpush1.msra.mxu0 0.0
    %1654 = vmatprep.subr.mxu0 0.0
    %1655 = vmatpush1.msra.mxu0 0.0
    %1656 = vmatprep.subr.mxu0 0.0
    %1657 = vmatpush1.msra.mxu0 0.0
    %1658 = vmatprep.subr.mxu0 0.0
    %1659 = vmatpush1.msra.mxu0 0.0
    %1660 = vmatprep.subr.mxu0 0.0
    %1661 = vmatpush1.msra.mxu0 0.0
    %1662 = vmatprep.subr.mxu0 0.0
    %1663 = vmatpush1.msra.mxu0 0.0
    %1664 = vmatprep.subr.mxu0 0.0
    %1665 = vmatpush1.msra.mxu0 0.0
    %1666 = vmatprep.subr.mxu0 0.0
    %1667 = vmatpush1.msra.mxu0 0.0
    %1668 = vmatprep.subr.mxu0 0.0
    %1669 = vmatpush1.msra.mxu0 0.0
    %1670 = vmatprep.subr.mxu0 0.0
    %1671 = vmatpush1.msra.mxu0 0.0
    %1672 = vmatprep.subr.mxu0 0.0
    %1673 = vmatpush1.msra.mxu0 0.0
    %1674 = vmatprep.subr.mxu0 0.0
    %1675 = vmatpush1.msra.mxu0 0.0
    %1676 = vmatprep.subr.mxu0 0.0
    %1677 = vmatpush1.msra.mxu0 0.0
    %1678 = vmatprep.subr.mxu0 0.0
    %1679 = vmatpush1.msra.mxu0 0.0
    %1680 = vmatprep.subr.mxu0 0.0
    %1681 = vmatpush1.msra.mxu0 0.0
    %1682 = vmatprep.subr.mxu0 0.0
    %1683 = vmatpush1.msra.mxu0 0.0
    %1684 = vmatprep.subr.mxu0 0.0
    %1685 = vmatpush1.msra.mxu0 0.0
    %1686 = vmatprep.subr.mxu0 0.0
    %1687 = vmatpush1.msra.mxu0 0.0
    %1688 = vmatprep.subr.mxu0 0.0
    %1689 = vmatpush1.msra.mxu0 0.0
    %1690 = vmatprep.mubr.f32.mxu0 0.0
    %1691 = vmatmul.mubr.f32.gmra.mrb[0].mxu0 %v1618
    %v1692 = vpop.f32.mrb[0].mxu0
    %v1693 = vadd.f32 0.0, %v1692
    %v1694 = vpop.f32.mrb[0].mxu0
    %v1695 = vadd.f32 0.0, %v1694
    %1696 = vmatprep.mubr.f32.mxu0 0.0
    %1697 = vmatmul.mubr.f32.gmra.mrb[0].mxu0 %v1621
    %v1698 = vpop.f32.mrb[0].mxu0
    %v1699 = vadd.f32 0.0, %v1698
    %v1700 = vpop.f32.mrb[0].mxu0
    %v1701 = vadd.f32 0.0, %v1700
    %1702 = vmatprep.mubr.f32.mxu0 0.0
    %1703 = vmatmul.mubr.f32.gmra.mrb[0].mxu0 %v1624
    %v1704 = vpop.f32.mrb[0].mxu0
    %v1705 = vadd.f32 0.0, %v1704
    %v1706 = vpop.f32.mrb[0].mxu0
    %v1707 = vadd.f32 0.0, %v1706
    %1708 = vdwg.mxu0
    %v1709 = vld [vmem:[#allocation8] sm:$0xff]
    %v1710 = vld [vmem:[#allocation8 + $0x8] sm:$0xff]
    %v1711 = vld [vmem:[#allocation8 + $0x10] sm:$0xff]
    %v1713 = vsel %vm1616, %v1709, 0
    %v1716 = vsel %vm1616, %v1710, 0
    %v1719 = vsel %vm1616, %v1711, 0
    %1721 = vmatprep.subr.mxu0 %v1602
    %1722 = vmatpush1.msra.mxu0 %v1601
    %1723 = vmatprep.subr.mxu0 %v1604
    %1724 = vmatpush1.msra.mxu0 %v1603
    %1725 = vmatprep.subr.mxu0 %v1606
    %1726 = vmatpush1.msra.mxu0 %v1605
    %1727 = vmatprep.subr.mxu0 %v1608
    %1728 = vmatpush1.msra.mxu0 %v1607
    %1729 = vmatprep.subr.mxu0 %v1610
    %1730 = vmatpush1.msra.mxu0 %v1609
    %1731 = vmatprep.subr.mxu0 %v1612
    %1732 = vmatpush1.msra.mxu0 %v1611
    %1733 = vmatprep.subr.mxu0 0.0
    %1734 = vmatpush1.msra.mxu0 0.0
    %1735 = vmatprep.subr.mxu0 0.0
    %1736 = vmatpush1.msra.mxu0 0.0
    %1737 = vmatprep.subr.mxu0 0.0
    %1738 = vmatpush1.msra.mxu0 0.0
    %1739 = vmatprep.subr.mxu0 0.0
    %1740 = vmatpush1.msra.mxu0 0.0
    %1741 = vmatprep.subr.mxu0 0.0
    %1742 = vmatpush1.msra.mxu0 0.0
    %1743 = vmatprep.subr.mxu0 0.0
    %1744 = vmatpush1.msra.mxu0 0.0
    %1745 = vmatprep.subr.mxu0 0.0
    %1746 = vmatpush1.msra.mxu0 0.0
    %1747 = vmatprep.subr.mxu0 0.0
    %1748 = vmatpush1.msra.mxu0 0.0
    %1749 = vmatprep.subr.mxu0 0.0
    %1750 = vmatpush1.msra.mxu0 0.0
    %1751 = vmatprep.subr.mxu0 0.0
    %1752 = vmatpush1.msra.mxu0 0.0
    %1753 = vmatprep.subr.mxu0 0.0
    %1754 = vmatpush1.msra.mxu0 0.0
    %1755 = vmatprep.subr.mxu0 0.0
    %1756 = vmatpush1.msra.mxu0 0.0
    %1757 = vmatprep.subr.mxu0 0.0
    %1758 = vmatpush1.msra.mxu0 0.0
    %1759 = vmatprep.subr.mxu0 0.0
    %1760 = vmatpush1.msra.mxu0 0.0
    %1761 = vmatprep.subr.mxu0 0.0
    %1762 = vmatpush1.msra.mxu0 0.0
    %1763 = vmatprep.subr.mxu0 0.0
    %1764 = vmatpush1.msra.mxu0 0.0
    %1765 = vmatprep.subr.mxu0 0.0
    %1766 = vmatpush1.msra.mxu0 0.0
    %1767 = vmatprep.subr.mxu0 0.0
    %1768 = vmatpush1.msra.mxu0 0.0
    %1769 = vmatprep.subr.mxu0 0.0
    %1770 = vmatpush1.msra.mxu0 0.0
    %1771 = vmatprep.subr.mxu0 0.0
    %1772 = vmatpush1.msra.mxu0 0.0
    %1773 = vmatprep.subr.mxu0 0.0
    %1774 = vmatpush1.msra.mxu0 0.0
    %1775 = vmatprep.subr.mxu0 0.0
    %1776 = vmatpush1.msra.mxu0 0.0
    %1777 = vmatprep.subr.mxu0 0.0
    %1778 = vmatpush1.msra.mxu0 0.0
    %1779 = vmatprep.subr.mxu0 0.0
    %1780 = vmatpush1.msra.mxu0 0.0
    %1781 = vmatprep.subr.mxu0 0.0
    %1782 = vmatpush1.msra.mxu0 0.0
    %1783 = vmatprep.subr.mxu0 0.0
    %1784 = vmatpush1.msra.mxu0 0.0
    %1785 = vmatprep.mubr.f32.mxu0 0.0
    %1786 = vmatmul.mubr.f32.gmra.mrb[0].mxu0 %v1713
    %v1787 = vpop.f32.mrb[0].mxu0
    %v1788 = vadd.f32 0.0, %v1787
    %v1789 = vpop.f32.mrb[0].mxu0
    %v1790 = vadd.f32 0.0, %v1789
    %1791 = vmatprep.mubr.f32.mxu0 0.0
    %1792 = vmatmul.mubr.f32.gmra.mrb[0].mxu0 %v1716
    %v1793 = vpop.f32.mrb[0].mxu0
    %v1794 = vadd.f32 0.0, %v1793
    %v1795 = vpop.f32.mrb[0].mxu0
    %v1796 = vadd.f32 0.0, %v1795
    %1797 = vmatprep.mubr.f32.mxu0 0.0
    %1798 = vmatmul.mubr.f32.gmra.mrb[0].mxu0 %v1719
    %v1799 = vpop.f32.mrb[0].mxu0
    %v1800 = vadd.f32 0.0, %v1799
    %v1801 = vpop.f32.mrb[0].mxu0
    %v1802 = vadd.f32 0.0, %v1801
    %1803 = vdwg.mxu0
    %v1804 = vmax.f32 %v1693, %v1788
    %v1805 = vmax.f32 %v1695, %v1790
    %v1806 = vmax.f32 %v1699, %v1794
    %v1807 = vmax.f32 %v1701, %v1796
    %v1808 = vmax.f32 %v1705, %v1800
    %v1809 = vmax.f32 %v1707, %v1802
    %v1810 = vld [vmem:[#allocation11] sm:$0xf]
    %v1812 = vlaneseq
    %v1813 = vshrl.u32 %v1812, 7
    %v1814 = vsub.s32 0, %v1813
    %v1815 = vrot.slane %v1810, %v1814
    %v1816 = vlaneseq
    %v1817 = vshrl.u32 %v1816, 7
    %v1818 = vsub.s32 1, %v1817
    %v1819 = vrot.slane %v1810, %v1818
    %v1820 = vlaneseq
    %v1821 = vshrl.u32 %v1820, 7
    %v1822 = vsub.s32 2, %v1821
    %v1823 = vrot.slane %v1810, %v1822
    %v1824 = vlaneseq
    %v1825 = vshrl.u32 %v1824, 7
    %v1826 = vsub.s32 3, %v1825
    %v1827 = vrot.slane %v1810, %v1826
    %v1832 = vadd.f32 %v1815, 0.0
    %v1833 = vadd.f32 %v1819, 0.0
    %v1834 = vadd.f32 %v1823, 0.0
    %v1835 = vadd.f32 %v1827, 0.0
    %v1836 = vld [vmem:[#allocation10] sm:$0xff]
    %v1837 = vld [vmem:[#allocation10 + $0x8] sm:$0xff]
    %v1838 = vld [vmem:[#allocation10 + $0x10] sm:$0xff]
    %v1839 = vld [vmem:[#allocation10 + $0x18] sm:$0xff]
    %v1840 = vld [vmem:[#allocation10 + $0x20] sm:$0xff]
    %v1841 = vld [vmem:[#allocation10 + $0x28] sm:$0xff]
    %v1842 = vld [vmem:[#allocation10 + $0x30] sm:$0xff]
    %v1843 = vld [vmem:[#allocation10 + $0x38] sm:$0xff]
    %v1844 = vld [vmem:[#allocation10 + $0x40] sm:$0xff]
    %v1845 = vld [vmem:[#allocation10 + $0x48] sm:$0xff]
    %v1846 = vld [vmem:[#allocation10 + $0x50] sm:$0xff]
    %v1847 = vld [vmem:[#allocation10 + $0x58] sm:$0xff]
    %v1848 = vld [vmem:[#allocation10 + $0x60] sm:$0xff]
    %v1849 = vld [vmem:[#allocation10 + $0x68] sm:$0xff]
    %v1850 = vld [vmem:[#allocation10 + $0x70] sm:$0xff]
    %v1851 = vld [vmem:[#allocation10 + $0x78] sm:$0xff]
    %v1852 = vld [vmem:[#allocation10 + $0x80] sm:$0xff]
    %v1853 = vld [vmem:[#allocation10 + $0x88] sm:$0xff]
    %v1854 = vld [vmem:[#allocation10 + $0x90] sm:$0xff]
    %v1855 = vld [vmem:[#allocation10 + $0x98] sm:$0xff]
    %v1856 = vld [vmem:[#allocation10 + $0xa0] sm:$0xff]
    %v1857 = vld [vmem:[#allocation10 + $0xa8] sm:$0xff]
    %v1858 = vld [vmem:[#allocation10 + $0xb0] sm:$0xff]
    %v1859 = vld [vmem:[#allocation10 + $0xb8] sm:$0xff]
    %v1860 = vld [vmem:[#allocation10 + $0xc0] sm:$0xff]
    %v1861 = vld [vmem:[#allocation10 + $0xc8] sm:$0xff]
    %v1862 = vld [vmem:[#allocation10 + $0xd0] sm:$0xff]
    %v1863 = vld [vmem:[#allocation10 + $0xd8] sm:$0xff]
    %v1864 = vld [vmem:[#allocation10 + $0xe0] sm:$0xff]
    %v1865 = vld [vmem:[#allocation10 + $0xe8] sm:$0xff]
    %v1866 = vld [vmem:[#allocation10 + $0xf0] sm:$0xff]
    %v1867 = vld [vmem:[#allocation10 + $0xf8] sm:$0xff]
    %v1868 = vld [vmem:[#allocation10 + $0x100] sm:$0xff]
    %v1869 = vld [vmem:[#allocation10 + $0x108] sm:$0xff]
    %v1870 = vld [vmem:[#allocation10 + $0x110] sm:$0xff]
    %v1871 = vld [vmem:[#allocation10 + $0x118] sm:$0xff]
    %v1872 = vld [vmem:[#allocation10 + $0x120] sm:$0xff]
    %v1873 = vld [vmem:[#allocation10 + $0x128] sm:$0xff]
    %v1874 = vld [vmem:[#allocation10 + $0x130] sm:$0xff]
    %v1875 = vld [vmem:[#allocation10 + $0x138] sm:$0xff]
    %v1876 = vld [vmem:[#allocation10 + $0x140] sm:$0xff]
    %v1877 = vld [vmem:[#allocation10 + $0x148] sm:$0xff]
    %v1878 = vld [vmem:[#allocation10 + $0x150] sm:$0xff]
    %v1879 = vld [vmem:[#allocation10 + $0x158] sm:$0xff]
    %v1880 = vld [vmem:[#allocation10 + $0x160] sm:$0xff]
    %v1881 = vld [vmem:[#allocation10 + $0x168] sm:$0xff]
    %v1882 = vld [vmem:[#allocation10 + $0x170] sm:$0xff]
    %v1883 = vld [vmem:[#allocation10 + $0x178] sm:$0xff]
    %v1884 = vld [vmem:[#allocation10 + $0x180] sm:$0xff]
    %v1885 = vld [vmem:[#allocation10 + $0x188] sm:$0xff]
    %v1886 = vld [vmem:[#allocation10 + $0x190] sm:$0xff]
    %v1887 = vld [vmem:[#allocation10 + $0x198] sm:$0xff]
    %v1888 = vld [vmem:[#allocation10 + $0x1a0] sm:$0xff]
    %v1889 = vld [vmem:[#allocation10 + $0x1a8] sm:$0xff]
    %v1890 = vld [vmem:[#allocation10 + $0x1b0] sm:$0xff]
    %v1891 = vld [vmem:[#allocation10 + $0x1b8] sm:$0xff]
    %v1892 = vld [vmem:[#allocation10 + $0x1c0] sm:$0xff]
    %v1893 = vld [vmem:[#allocation10 + $0x1c8] sm:$0xff]
    %v1894 = vld [vmem:[#allocation10 + $0x1d0] sm:$0xff]
    %v1895 = vld [vmem:[#allocation10 + $0x1d8] sm:$0xff]
    %v1896 = vld [vmem:[#allocation10 + $0x1e0] sm:$0xff]
    %v1897 = vld [vmem:[#allocation10 + $0x1e8] sm:$0xff]
    %v1898 = vld [vmem:[#allocation10 + $0x1f0] sm:$0xff]
    %v1899 = vld [vmem:[#allocation10 + $0x1f8] sm:$0xff]
    %v1900 = vld [vmem:[#allocation10 + $0x200] sm:$0xff]
    %v1901 = vld [vmem:[#allocation10 + $0x208] sm:$0xff]
    %v1902 = vld [vmem:[#allocation10 + $0x210] sm:$0xff]
    %v1903 = vld [vmem:[#allocation10 + $0x218] sm:$0xff]
    %v1904 = vld [vmem:[#allocation10 + $0x220] sm:$0xff]
    %v1905 = vld [vmem:[#allocation10 + $0x228] sm:$0xff]
    %v1906 = vld [vmem:[#allocation10 + $0x230] sm:$0xff]
    %v1907 = vld [vmem:[#allocation10 + $0x238] sm:$0xff]
    %v1908 = vld [vmem:[#allocation10 + $0x240] sm:$0xff]
    %v1909 = vld [vmem:[#allocation10 + $0x248] sm:$0xff]
    %v1910 = vld [vmem:[#allocation10 + $0x250] sm:$0xff]
    %v1911 = vld [vmem:[#allocation10 + $0x258] sm:$0xff]
    %v1912 = vld [vmem:[#allocation10 + $0x260] sm:$0xff]
    %v1913 = vld [vmem:[#allocation10 + $0x268] sm:$0xff]
    %v1914 = vld [vmem:[#allocation10 + $0x270] sm:$0xff]
    %v1915 = vld [vmem:[#allocation10 + $0x278] sm:$0xff]
    %v1916 = vld [vmem:[#allocation10 + $0x280] sm:$0xff]
    %v1917 = vld [vmem:[#allocation10 + $0x288] sm:$0xff]
    %v1918 = vld [vmem:[#allocation10 + $0x290] sm:$0xff]
    %v1919 = vld [vmem:[#allocation10 + $0x298] sm:$0xff]
    %v1920 = vld [vmem:[#allocation10 + $0x2a0] sm:$0xff]
    %v1921 = vld [vmem:[#allocation10 + $0x2a8] sm:$0xff]
    %v1922 = vld [vmem:[#allocation10 + $0x2b0] sm:$0xff]
    %v1923 = vld [vmem:[#allocation10 + $0x2b8] sm:$0xff]
    %v1924 = vld [vmem:[#allocation10 + $0x2c0] sm:$0xff]
    %v1925 = vld [vmem:[#allocation10 + $0x2c8] sm:$0xff]
    %v1926 = vld [vmem:[#allocation10 + $0x2d0] sm:$0xff]
    %v1927 = vld [vmem:[#allocation10 + $0x2d8] sm:$0xff]
    %v1928 = vld [vmem:[#allocation10 + $0x2e0] sm:$0xff]
    %v1929 = vld [vmem:[#allocation10 + $0x2e8] sm:$0xff]
    %v1930 = vld [vmem:[#allocation10 + $0x2f0] sm:$0xff]
    %v1931 = vld [vmem:[#allocation10 + $0x2f8] sm:$0xff]
    %v1932 = vld [vmem:[#allocation10 + $0x300] sm:$0xff]
    %v1933 = vld [vmem:[#allocation10 + $0x308] sm:$0xff]
    %v1934 = vld [vmem:[#allocation10 + $0x310] sm:$0xff]
    %v1935 = vld [vmem:[#allocation10 + $0x318] sm:$0xff]
    %v1936 = vld [vmem:[#allocation10 + $0x320] sm:$0xff]
    %v1937 = vld [vmem:[#allocation10 + $0x328] sm:$0xff]
    %v1938 = vld [vmem:[#allocation10 + $0x330] sm:$0xff]
    %v1939 = vld [vmem:[#allocation10 + $0x338] sm:$0xff]
    %v1940 = vld [vmem:[#allocation10 + $0x340] sm:$0xff]
    %v1941 = vld [vmem:[#allocation10 + $0x348] sm:$0xff]
    %v1942 = vld [vmem:[#allocation10 + $0x350] sm:$0xff]
    %v1943 = vld [vmem:[#allocation10 + $0x358] sm:$0xff]
    %v1944 = vld [vmem:[#allocation10 + $0x360] sm:$0xff]
    %v1945 = vld [vmem:[#allocation10 + $0x368] sm:$0xff]
    %v1946 = vld [vmem:[#allocation10 + $0x370] sm:$0xff]
    %v1947 = vld [vmem:[#allocation10 + $0x378] sm:$0xff]
    %v1948 = vld [vmem:[#allocation10 + $0x380] sm:$0xff]
    %v1949 = vld [vmem:[#allocation10 + $0x388] sm:$0xff]
    %v1950 = vld [vmem:[#allocation10 + $0x390] sm:$0xff]
    %v1951 = vld [vmem:[#allocation10 + $0x398] sm:$0xff]
    %v1952 = vld [vmem:[#allocation10 + $0x3a0] sm:$0xff]
    %v1953 = vld [vmem:[#allocation10 + $0x3a8] sm:$0xff]
    %v1954 = vld [vmem:[#allocation10 + $0x3b0] sm:$0xff]
    %v1955 = vld [vmem:[#allocation10 + $0x3b8] sm:$0xff]
    %v1956 = vld [vmem:[#allocation10 + $0x3c0] sm:$0xff]
    %v1957 = vld [vmem:[#allocation10 + $0x3c8] sm:$0xff]
    %v1958 = vld [vmem:[#allocation10 + $0x3d0] sm:$0xff]
    %v1959 = vld [vmem:[#allocation10 + $0x3d8] sm:$0xff]
    %v1960 = vld [vmem:[#allocation10 + $0x3e0] sm:$0xff]
    %v1961 = vld [vmem:[#allocation10 + $0x3e8] sm:$0xff]
    %v1962 = vld [vmem:[#allocation10 + $0x3f0] sm:$0xff]
    %v1963 = vld [vmem:[#allocation10 + $0x3f8] sm:$0xff]
    %1964 = vmatprep.subr.mxu0 %v1837
    %1965 = vmatpush1.msra.mxu0 %v1836
    %1966 = vmatprep.subr.mxu0 %v1841
    %1967 = vmatpush1.msra.mxu0 %v1840
    %1968 = vmatprep.subr.mxu0 %v1845
    %1969 = vmatpush1.msra.mxu0 %v1844
    %1970 = vmatprep.subr.mxu0 %v1849
    %1971 = vmatpush1.msra.mxu0 %v1848
    %1972 = vmatprep.subr.mxu0 %v1853
    %1973 = vmatpush1.msra.mxu0 %v1852
    %1974 = vmatprep.subr.mxu0 %v1857
    %1975 = vmatpush1.msra.mxu0 %v1856
    %1976 = vmatprep.subr.mxu0 %v1861
    %1977 = vmatpush1.msra.mxu0 %v1860
    %1978 = vmatprep.subr.mxu0 %v1865
    %1979 = vmatpush1.msra.mxu0 %v1864
    %1980 = vmatprep.subr.mxu0 %v1869
    %1981 = vmatpush1.msra.mxu0 %v1868
    %1982 = vmatprep.subr.mxu0 %v1873
    %1983 = vmatpush1.msra.mxu0 %v1872
    %1984 = vmatprep.subr.mxu0 %v1877
    %1985 = vmatpush1.msra.mxu0 %v1876
    %1986 = vmatprep.subr.mxu0 %v1881
    %1987 = vmatpush1.msra.mxu0 %v1880
    %1988 = vmatprep.subr.mxu0 %v1885
    %1989 = vmatpush1.msra.mxu0 %v1884
    %1990 = vmatprep.subr.mxu0 %v1889
    %1991 = vmatpush1.msra.mxu0 %v1888
    %1992 = vmatprep.subr.mxu0 %v1893
    %1993 = vmatpush1.msra.mxu0 %v1892
    %1994 = vmatprep.subr.mxu0 %v1897
    %1995 = vmatpush1.msra.mxu0 %v1896
    %1996 = vmatprep.subr.mxu0 %v1901
    %1997 = vmatpush1.msra.mxu0 %v1900
    %1998 = vmatprep.subr.mxu0 %v1905
    %1999 = vmatpush1.msra.mxu0 %v1904
    %2000 = vmatprep.subr.mxu0 %v1909
    %2001 = vmatpush1.msra.mxu0 %v1908
    %2002 = vmatprep.subr.mxu0 %v1913
    %2003 = vmatpush1.msra.mxu0 %v1912
    %2004 = vmatprep.subr.mxu0 %v1917
    %2005 = vmatpush1.msra.mxu0 %v1916
    %2006 = vmatprep.subr.mxu0 %v1921
    %2007 = vmatpush1.msra.mxu0 %v1920
    %2008 = vmatprep.subr.mxu0 %v1925
    %2009 = vmatpush1.msra.mxu0 %v1924
    %2010 = vmatprep.subr.mxu0 %v1929
    %2011 = vmatpush1.msra.mxu0 %v1928
    %2012 = vmatprep.subr.mxu0 %v1933
    %2013 = vmatpush1.msra.mxu0 %v1932
    %2014 = vmatprep.subr.mxu0 %v1937
    %2015 = vmatpush1.msra.mxu0 %v1936
    %2016 = vmatprep.subr.mxu0 %v1941
    %2017 = vmatpush1.msra.mxu0 %v1940
    %2018 = vmatprep.subr.mxu0 %v1945
    %2019 = vmatpush1.msra.mxu0 %v1944
    %2020 = vmatprep.subr.mxu0 %v1949
    %2021 = vmatpush1.msra.mxu0 %v1948
    %2022 = vmatprep.subr.mxu0 %v1953
    %2023 = vmatpush1.msra.mxu0 %v1952
    %2024 = vmatprep.subr.mxu0 %v1957
    %2025 = vmatpush1.msra.mxu0 %v1956
    %2026 = vmatprep.subr.mxu0 %v1961
    %2027 = vmatpush1.msra.mxu0 %v1960
    %2028 = vmatprep.mubr.f32.mxu0 %v1805
    %2029 = vmatmul.mubr.f32.gmra.mrb[0].mxu0 %v1804
    %v2030 = vpop.f32.mrb[0].mxu0
    %v2031 = vadd.f32 0.0, %v2030
    %v2032 = vpop.f32.mrb[0].mxu0
    %v2033 = vadd.f32 0.0, %v2032
    %2034 = vmatprep.mubr.f32.mxu0 %v1807
    %2035 = vmatmul.mubr.f32.gmra.mrb[0].mxu0 %v1806
    %v2036 = vpop.f32.mrb[0].mxu0
    %v2037 = vadd.f32 0.0, %v2036
    %v2038 = vpop.f32.mrb[0].mxu0
    %v2039 = vadd.f32 0.0, %v2038
    %2040 = vdwg.mxu0
    %2041 = vmatprep.subr.mxu0 %v1839
    %2042 = vmatpush1.msra.mxu0 %v1838
    %2043 = vmatprep.subr.mxu0 %v1843
    %2044 = vmatpush1.msra.mxu0 %v1842
    %2045 = vmatprep.subr.mxu0 %v1847
    %2046 = vmatpush1.msra.mxu0 %v1846
    %2047 = vmatprep.subr.mxu0 %v1851
    %2048 = vmatpush1.msra.mxu0 %v1850
    %2049 = vmatprep.subr.mxu0 %v1855
    %2050 = vmatpush1.msra.mxu0 %v1854
    %2051 = vmatprep.subr.mxu0 %v1859
    %2052 = vmatpush1.msra.mxu0 %v1858
    %2053 = vmatprep.subr.mxu0 %v1863
    %2054 = vmatpush1.msra.mxu0 %v1862
    %2055 = vmatprep.subr.mxu0 %v1867
    %2056 = vmatpush1.msra.mxu0 %v1866
    %2057 = vmatprep.subr.mxu0 %v1871
    %2058 = vmatpush1.msra.mxu0 %v1870
    %2059 = vmatprep.subr.mxu0 %v1875
    %2060 = vmatpush1.msra.mxu0 %v1874
    %2061 = vmatprep.subr.mxu0 %v1879
    %2062 = vmatpush1.msra.mxu0 %v1878
    %2063 = vmatprep.subr.mxu0 %v1883
    %2064 = vmatpush1.msra.mxu0 %v1882
    %2065 = vmatprep.subr.mxu0 %v1887
    %2066 = vmatpush1.msra.mxu0 %v1886
    %2067 = vmatprep.subr.mxu0 %v1891
    %2068 = vmatpush1.msra.mxu0 %v1890
    %2069 = vmatprep.subr.mxu0 %v1895
    %2070 = vmatpush1.msra.mxu0 %v1894
    %2071 = vmatprep.subr.mxu0 %v1899
    %2072 = vmatpush1.msra.mxu0 %v1898
    %2073 = vmatprep.subr.mxu0 %v1903
    %2074 = vmatpush1.msra.mxu0 %v1902
    %2075 = vmatprep.subr.mxu0 %v1907
    %2076 = vmatpush1.msra.mxu0 %v1906
    %2077 = vmatprep.subr.mxu0 %v1911
    %2078 = vmatpush1.msra.mxu0 %v1910
    %2079 = vmatprep.subr.mxu0 %v1915
    %2080 = vmatpush1.msra.mxu0 %v1914
    %2081 = vmatprep.subr.mxu0 %v1919
    %2082 = vmatpush1.msra.mxu0 %v1918
    %2083 = vmatprep.subr.mxu0 %v1923
    %2084 = vmatpush1.msra.mxu0 %v1922
    %2085 = vmatprep.subr.mxu0 %v1927
    %2086 = vmatpush1.msra.mxu0 %v1926
    %2087 = vmatprep.subr.mxu0 %v1931
    %2088 = vmatpush1.msra.mxu0 %v1930
    %2089 = vmatprep.subr.mxu0 %v1935
    %2090 = vmatpush1.msra.mxu0 %v1934
    %2091 = vmatprep.subr.mxu0 %v1939
    %2092 = vmatpush1.msra.mxu0 %v1938
    %2093 = vmatprep.subr.mxu0 %v1943
    %2094 = vmatpush1.msra.mxu0 %v1942
    %2095 = vmatprep.subr.mxu0 %v1947
    %2096 = vmatpush1.msra.mxu0 %v1946
    %2097 = vmatprep.subr.mxu0 %v1951
    %2098 = vmatpush1.msra.mxu0 %v1950
    %2099 = vmatprep.subr.mxu0 %v1955
    %2100 = vmatpush1.msra.mxu0 %v1954
    %2101 = vmatprep.subr.mxu0 %v1959
    %2102 = vmatpush1.msra.mxu0 %v1958
    %2103 = vmatprep.subr.mxu0 %v1963
    %2104 = vmatpush1.msra.mxu0 %v1962
    %2105 = vmatprep.mubr.f32.mxu0 %v1805
    %2106 = vmatmul.mubr.f32.gmra.mrb[0].mxu0 %v1804
    %v2107 = vpop.f32.mrb[0].mxu0
    %v2108 = vadd.f32 0.0, %v2107
    %v2109 = vpop.f32.mrb[0].mxu0
    %v2110 = vadd.f32 0.0, %v2109
    %2111 = vmatprep.mubr.f32.mxu0 %v1807
    %2112 = vmatmul.mubr.f32.gmra.mrb[0].mxu0 %v1806
    %v2113 = vpop.f32.mrb[0].mxu0
    %v2114 = vadd.f32 0.0, %v2113
    %v2115 = vpop.f32.mrb[0].mxu0
    %v2116 = vadd.f32 0.0, %v2115
    %2117 = vdwg.mxu0
    %v2118 = vadd.f32 %v1832, %v2031
    %v2119 = vadd.f32 %v1833, %v2033
    %v2120 = vadd.f32 %v1834, %v2108
    %v2121 = vadd.f32 %v1835, %v2110
    %v2122 = vadd.f32 %v1832, %v2037
    %v2123 = vadd.f32 %v1833, %v2039
    %v2124 = vadd.f32 %v1834, %v2114
    %v2125 = vadd.f32 %v1835, %v2116
    %s2126 = scalar_lea.vmem [#allocation10], 1024
    %v2127 = vld [vmem:[%s2126] sm:$0xff]
    %v2128 = vld [vmem:[%s2126 + $0x8] sm:$0xff]
    %v2129 = vld [vmem:[%s2126 + $0x10] sm:$0xff]
    %v2130 = vld [vmem:[%s2126 + $0x18] sm:$0xff]
    %v2131 = vld [vmem:[%s2126 + $0x20] sm:$0xff]
    %v2132 = vld [vmem:[%s2126 + $0x28] sm:$0xff]
    %v2133 = vld [vmem:[%s2126 + $0x30] sm:$0xff]
    %v2134 = vld [vmem:[%s2126 + $0x38] sm:$0xff]
    %v2135 = vld [vmem:[%s2126 + $0x40] sm:$0xff]
    %v2136 = vld [vmem:[%s2126 + $0x48] sm:$0xff]
    %v2137 = vld [vmem:[%s2126 + $0x50] sm:$0xff]
    %v2138 = vld [vmem:[%s2126 + $0x58] sm:$0xff]
    %v2139 = vld [vmem:[%s2126 + $0x60] sm:$0xff]
    %v2140 = vld [vmem:[%s2126 + $0x68] sm:$0xff]
    %v2141 = vld [vmem:[%s2126 + $0x70] sm:$0xff]
    %v2142 = vld [vmem:[%s2126 + $0x78] sm:$0xff]
    %v2143 = vld [vmem:[%s2126 + $0x80] sm:$0xff]
    %v2144 = vld [vmem:[%s2126 + $0x88] sm:$0xff]
    %v2145 = vld [vmem:[%s2126 + $0x90] sm:$0xff]
    %v2146 = vld [vmem:[%s2126 + $0x98] sm:$0xff]
    %v2147 = vld [vmem:[%s2126 + $0xa0] sm:$0xff]
    %v2148 = vld [vmem:[%s2126 + $0xa8] sm:$0xff]
    %v2149 = vld [vmem:[%s2126 + $0xb0] sm:$0xff]
    %v2150 = vld [vmem:[%s2126 + $0xb8] sm:$0xff]
    %v2151 = vld [vmem:[%s2126 + $0xc0] sm:$0xff]
    %v2152 = vld [vmem:[%s2126 + $0xc8] sm:$0xff]
    %v2153 = vld [vmem:[%s2126 + $0xd0] sm:$0xff]
    %v2154 = vld [vmem:[%s2126 + $0xd8] sm:$0xff]
    %v2155 = vld [vmem:[%s2126 + $0xe0] sm:$0xff]
    %v2156 = vld [vmem:[%s2126 + $0xe8] sm:$0xff]
    %v2157 = vld [vmem:[%s2126 + $0xf0] sm:$0xff]
    %v2158 = vld [vmem:[%s2126 + $0xf8] sm:$0xff]
    %v2159 = vld [vmem:[%s2126 + $0x100] sm:$0xff]
    %v2160 = vld [vmem:[%s2126 + $0x108] sm:$0xff]
    %v2161 = vld [vmem:[%s2126 + $0x110] sm:$0xff]
    %v2162 = vld [vmem:[%s2126 + $0x118] sm:$0xff]
    %v2163 = vld [vmem:[%s2126 + $0x120] sm:$0xff]
    %v2164 = vld [vmem:[%s2126 + $0x128] sm:$0xff]
    %v2165 = vld [vmem:[%s2126 + $0x130] sm:$0xff]
    %v2166 = vld [vmem:[%s2126 + $0x138] sm:$0xff]
    %v2167 = vld [vmem:[%s2126 + $0x140] sm:$0xff]
    %v2168 = vld [vmem:[%s2126 + $0x148] sm:$0xff]
    %v2169 = vld [vmem:[%s2126 + $0x150] sm:$0xff]
    %v2170 = vld [vmem:[%s2126 + $0x158] sm:$0xff]
    %v2171 = vld [vmem:[%s2126 + $0x160] sm:$0xff]
    %v2172 = vld [vmem:[%s2126 + $0x168] sm:$0xff]
    %v2173 = vld [vmem:[%s2126 + $0x170] sm:$0xff]
    %v2174 = vld [vmem:[%s2126 + $0x178] sm:$0xff]
    %v2175 = vld [vmem:[%s2126 + $0x180] sm:$0xff]
    %v2176 = vld [vmem:[%s2126 + $0x188] sm:$0xff]
    %v2177 = vld [vmem:[%s2126 + $0x190] sm:$0xff]
    %v2178 = vld [vmem:[%s2126 + $0x198] sm:$0xff]
    %v2179 = vld [vmem:[%s2126 + $0x1a0] sm:$0xff]
    %v2180 = vld [vmem:[%s2126 + $0x1a8] sm:$0xff]
    %v2181 = vld [vmem:[%s2126 + $0x1b0] sm:$0xff]
    %v2182 = vld [vmem:[%s2126 + $0x1b8] sm:$0xff]
    %v2183 = vld [vmem:[%s2126 + $0x1c0] sm:$0xff]
    %v2184 = vld [vmem:[%s2126 + $0x1c8] sm:$0xff]
    %v2185 = vld [vmem:[%s2126 + $0x1d0] sm:$0xff]
    %v2186 = vld [vmem:[%s2126 + $0x1d8] sm:$0xff]
    %v2187 = vld [vmem:[%s2126 + $0x1e0] sm:$0xff]
    %v2188 = vld [vmem:[%s2126 + $0x1e8] sm:$0xff]
    %v2189 = vld [vmem:[%s2126 + $0x1f0] sm:$0xff]
    %v2190 = vld [vmem:[%s2126 + $0x1f8] sm:$0xff]
    %v2191 = vld [vmem:[%s2126 + $0x200] sm:$0xff]
    %v2192 = vld [vmem:[%s2126 + $0x208] sm:$0xff]
    %v2193 = vld [vmem:[%s2126 + $0x210] sm:$0xff]
    %v2194 = vld [vmem:[%s2126 + $0x218] sm:$0xff]
    %v2195 = vld [vmem:[%s2126 + $0x220] sm:$0xff]
    %v2196 = vld [vmem:[%s2126 + $0x228] sm:$0xff]
    %v2197 = vld [vmem:[%s2126 + $0x230] sm:$0xff]
    %v2198 = vld [vmem:[%s2126 + $0x238] sm:$0xff]
    %v2199 = vld [vmem:[%s2126 + $0x240] sm:$0xff]
    %v2200 = vld [vmem:[%s2126 + $0x248] sm:$0xff]
    %v2201 = vld [vmem:[%s2126 + $0x250] sm:$0xff]
    %v2202 = vld [vmem:[%s2126 + $0x258] sm:$0xff]
    %v2203 = vld [vmem:[%s2126 + $0x260] sm:$0xff]
    %v2204 = vld [vmem:[%s2126 + $0x268] sm:$0xff]
    %v2205 = vld [vmem:[%s2126 + $0x270] sm:$0xff]
    %v2206 = vld [vmem:[%s2126 + $0x278] sm:$0xff]
    %v2207 = vld [vmem:[%s2126 + $0x280] sm:$0xff]
    %v2208 = vld [vmem:[%s2126 + $0x288] sm:$0xff]
    %v2209 = vld [vmem:[%s2126 + $0x290] sm:$0xff]
    %v2210 = vld [vmem:[%s2126 + $0x298] sm:$0xff]
    %v2211 = vld [vmem:[%s2126 + $0x2a0] sm:$0xff]
    %v2212 = vld [vmem:[%s2126 + $0x2a8] sm:$0xff]
    %v2213 = vld [vmem:[%s2126 + $0x2b0] sm:$0xff]
    %v2214 = vld [vmem:[%s2126 + $0x2b8] sm:$0xff]
    %v2215 = vld [vmem:[%s2126 + $0x2c0] sm:$0xff]
    %v2216 = vld [vmem:[%s2126 + $0x2c8] sm:$0xff]
    %v2217 = vld [vmem:[%s2126 + $0x2d0] sm:$0xff]
    %v2218 = vld [vmem:[%s2126 + $0x2d8] sm:$0xff]
    %v2219 = vld [vmem:[%s2126 + $0x2e0] sm:$0xff]
    %v2220 = vld [vmem:[%s2126 + $0x2e8] sm:$0xff]
    %v2221 = vld [vmem:[%s2126 + $0x2f0] sm:$0xff]
    %v2222 = vld [vmem:[%s2126 + $0x2f8] sm:$0xff]
    %v2223 = vld [vmem:[%s2126 + $0x300] sm:$0xff]
    %v2224 = vld [vmem:[%s2126 + $0x308] sm:$0xff]
    %v2225 = vld [vmem:[%s2126 + $0x310] sm:$0xff]
    %v2226 = vld [vmem:[%s2126 + $0x318] sm:$0xff]
    %v2227 = vld [vmem:[%s2126 + $0x320] sm:$0xff]
    %v2228 = vld [vmem:[%s2126 + $0x328] sm:$0xff]
    %v2229 = vld [vmem:[%s2126 + $0x330] sm:$0xff]
    %v2230 = vld [vmem:[%s2126 + $0x338] sm:$0xff]
    %v2231 = vld [vmem:[%s2126 + $0x340] sm:$0xff]
    %v2232 = vld [vmem:[%s2126 + $0x348] sm:$0xff]
    %v2233 = vld [vmem:[%s2126 + $0x350] sm:$0xff]
    %v2234 = vld [vmem:[%s2126 + $0x358] sm:$0xff]
    %v2235 = vld [vmem:[%s2126 + $0x360] sm:$0xff]
    %v2236 = vld [vmem:[%s2126 + $0x368] sm:$0xff]
    %v2237 = vld [vmem:[%s2126 + $0x370] sm:$0xff]
    %v2238 = vld [vmem:[%s2126 + $0x378] sm:$0xff]
    %v2239 = vld [vmem:[%s2126 + $0x380] sm:$0xff]
    %v2240 = vld [vmem:[%s2126 + $0x388] sm:$0xff]
    %v2241 = vld [vmem:[%s2126 + $0x390] sm:$0xff]
    %v2242 = vld [vmem:[%s2126 + $0x398] sm:$0xff]
    %v2243 = vld [vmem:[%s2126 + $0x3a0] sm:$0xff]
    %v2244 = vld [vmem:[%s2126 + $0x3a8] sm:$0xff]
    %v2245 = vld [vmem:[%s2126 + $0x3b0] sm:$0xff]
    %v2246 = vld [vmem:[%s2126 + $0x3b8] sm:$0xff]
    %v2247 = vld [vmem:[%s2126 + $0x3c0] sm:$0xff]
    %v2248 = vld [vmem:[%s2126 + $0x3c8] sm:$0xff]
    %v2249 = vld [vmem:[%s2126 + $0x3d0] sm:$0xff]
    %v2250 = vld [vmem:[%s2126 + $0x3d8] sm:$0xff]
    %v2251 = vld [vmem:[%s2126 + $0x3e0] sm:$0xff]
    %v2252 = vld [vmem:[%s2126 + $0x3e8] sm:$0xff]
    %v2253 = vld [vmem:[%s2126 + $0x3f0] sm:$0xff]
    %v2254 = vld [vmem:[%s2126 + $0x3f8] sm:$0xff]
    %v2261 = vrot.slane %v1804, 2
    %v2262 = vrot.slane %v1806, 2
    %v2263 = vsel %vm507, %v2261, %v2262
    %v2264 = vrot.slane %v1805, 2
    %v2265 = vrot.slane %v1807, 2
    %v2266 = vsel %vm507, %v2264, %v2265
    %v2267 = vrot.slane %v1808, 2
    %v2268 = vsel %vm507, %v2262, %v2267
    %v2269 = vrot.slane %v1809, 2
    %v2270 = vsel %vm507, %v2265, %v2269
    %2275 = vmatprep.subr.mxu0 %v2128
    %2276 = vmatpush1.msra.mxu0 %v2127
    %2277 = vmatprep.subr.mxu0 %v2132
    %2278 = vmatpush1.msra.mxu0 %v2131
    %2279 = vmatprep.subr.mxu0 %v2136
    %2280 = vmatpush1.msra.mxu0 %v2135
    %2281 = vmatprep.subr.mxu0 %v2140
    %2282 = vmatpush1.msra.mxu0 %v2139
    %2283 = vmatprep.subr.mxu0 %v2144
    %2284 = vmatpush1.msra.mxu0 %v2143
    %2285 = vmatprep.subr.mxu0 %v2148
    %2286 = vmatpush1.msra.mxu0 %v2147
    %2287 = vmatprep.subr.mxu0 %v2152
    %2288 = vmatpush1.msra.mxu0 %v2151
    %2289 = vmatprep.subr.mxu0 %v2156
    %2290 = vmatpush1.msra.mxu0 %v2155
    %2291 = vmatprep.subr.mxu0 %v2160
    %2292 = vmatpush1.msra.mxu0 %v2159
    %2293 = vmatprep.subr.mxu0 %v2164
    %2294 = vmatpush1.msra.mxu0 %v2163
    %2295 = vmatprep.subr.mxu0 %v2168
    %2296 = vmatpush1.msra.mxu0 %v2167
    %2297 = vmatprep.subr.mxu0 %v2172
    %2298 = vmatpush1.msra.mxu0 %v2171
    %2299 = vmatprep.subr.mxu0 %v2176
    %2300 = vmatpush1.msra.mxu0 %v2175
    %2301 = vmatprep.subr.mxu0 %v2180
    %2302 = vmatpush1.msra.mxu0 %v2179
    %2303 = vmatprep.subr.mxu0 %v2184
    %2304 = vmatpush1.msra.mxu0 %v2183
    %2305 = vmatprep.subr.mxu0 %v2188
    %2306 = vmatpush1.msra.mxu0 %v2187
    %2307 = vmatprep.subr.mxu0 %v2192
    %2308 = vmatpush1.msra.mxu0 %v2191
    %2309 = vmatprep.subr.mxu0 %v2196
    %2310 = vmatpush1.msra.mxu0 %v2195
    %2311 = vmatprep.subr.mxu0 %v2200
    %2312 = vmatpush1.msra.mxu0 %v2199
    %2313 = vmatprep.subr.mxu0 %v2204
    %2314 = vmatpush1.msra.mxu0 %v2203
    %2315 = vmatprep.subr.mxu0 %v2208
    %2316 = vmatpush1.msra.mxu0 %v2207
    %2317 = vmatprep.subr.mxu0 %v2212
    %2318 = vmatpush1.msra.mxu0 %v2211
    %2319 = vmatprep.subr.mxu0 %v2216
    %2320 = vmatpush1.msra.mxu0 %v2215
    %2321 = vmatprep.subr.mxu0 %v2220
    %2322 = vmatpush1.msra.mxu0 %v2219
    %2323 = vmatprep.subr.mxu0 %v2224
    %2324 = vmatpush1.msra.mxu0 %v2223
    %2325 = vmatprep.subr.mxu0 %v2228
    %2326 = vmatpush1.msra.mxu0 %v2227
    %2327 = vmatprep.subr.mxu0 %v2232
    %2328 = vmatpush1.msra.mxu0 %v2231
    %2329 = vmatprep.subr.mxu0 %v2236
    %2330 = vmatpush1.msra.mxu0 %v2235
    %2331 = vmatprep.subr.mxu0 %v2240
    %2332 = vmatpush1.msra.mxu0 %v2239
    %2333 = vmatprep.subr.mxu0 %v2244
    %2334 = vmatpush1.msra.mxu0 %v2243
    %2335 = vmatprep.subr.mxu0 %v2248
    %2336 = vmatpush1.msra.mxu0 %v2247
    %2337 = vmatprep.subr.mxu0 %v2252
    %2338 = vmatpush1.msra.mxu0 %v2251
    %2339 = vmatprep.mubr.f32.mxu0 %v2266
    %2340 = vmatmul.mubr.f32.gmra.mrb[0].mxu0 %v2263
    %v2341 = vpop.f32.mrb[0].mxu0
    %v2342 = vadd.f32 0.0, %v2341
    %v2343 = vpop.f32.mrb[0].mxu0
    %v2344 = vadd.f32 0.0, %v2343
    %2345 = vmatprep.mubr.f32.mxu0 %v2270
    %2346 = vmatmul.mubr.f32.gmra.mrb[0].mxu0 %v2268
    %v2347 = vpop.f32.mrb[0].mxu0
    %v2348 = vadd.f32 0.0, %v2347
    %v2349 = vpop.f32.mrb[0].mxu0
    %v2350 = vadd.f32 0.0, %v2349
    %2351 = vdwg.mxu0
    %2352 = vmatprep.subr.mxu0 %v2130
    %2353 = vmatpush1.msra.mxu0 %v2129
    %2354 = vmatprep.subr.mxu0 %v2134
    %2355 = vmatpush1.msra.mxu0 %v2133
    %2356 = vmatprep.subr.mxu0 %v2138
    %2357 = vmatpush1.msra.mxu0 %v2137
    %2358 = vmatprep.subr.mxu0 %v2142
    %2359 = vmatpush1.msra.mxu0 %v2141
    %2360 = vmatprep.subr.mxu0 %v2146
    %2361 = vmatpush1.msra.mxu0 %v2145
    %2362 = vmatprep.subr.mxu0 %v2150
    %2363 = vmatpush1.msra.mxu0 %v2149
    %2364 = vmatprep.subr.mxu0 %v2154
    %2365 = vmatpush1.msra.mxu0 %v2153
    %2366 = vmatprep.subr.mxu0 %v2158
    %2367 = vmatpush1.msra.mxu0 %v2157
    %2368 = vmatprep.subr.mxu0 %v2162
    %2369 = vmatpush1.msra.mxu0 %v2161
    %2370 = vmatprep.subr.mxu0 %v2166
    %2371 = vmatpush1.msra.mxu0 %v2165
    %2372 = vmatprep.subr.mxu0 %v2170
    %2373 = vmatpush1.msra.mxu0 %v2169
    %2374 = vmatprep.subr.mxu0 %v2174
    %2375 = vmatpush1.msra.mxu0 %v2173
    %2376 = vmatprep.subr.mxu0 %v2178
    %2377 = vmatpush1.msra.mxu0 %v2177
    %2378 = vmatprep.subr.mxu0 %v2182
    %2379 = vmatpush1.msra.mxu0 %v2181
    %2380 = vmatprep.subr.mxu0 %v2186
    %2381 = vmatpush1.msra.mxu0 %v2185
    %2382 = vmatprep.subr.mxu0 %v2190
    %2383 = vmatpush1.msra.mxu0 %v2189
    %2384 = vmatprep.subr.mxu0 %v2194
    %2385 = vmatpush1.msra.mxu0 %v2193
    %2386 = vmatprep.subr.mxu0 %v2198
    %2387 = vmatpush1.msra.mxu0 %v2197
    %2388 = vmatprep.subr.mxu0 %v2202
    %2389 = vmatpush1.msra.mxu0 %v2201
    %2390 = vmatprep.subr.mxu0 %v2206
    %2391 = vmatpush1.msra.mxu0 %v2205
    %2392 = vmatprep.subr.mxu0 %v2210
    %2393 = vmatpush1.msra.mxu0 %v2209
    %2394 = vmatprep.subr.mxu0 %v2214
    %2395 = vmatpush1.msra.mxu0 %v2213
    %2396 = vmatprep.subr.mxu0 %v2218
    %2397 = vmatpush1.msra.mxu0 %v2217
    %2398 = vmatprep.subr.mxu0 %v2222
    %2399 = vmatpush1.msra.mxu0 %v2221
    %2400 = vmatprep.subr.mxu0 %v2226
    %2401 = vmatpush1.msra.mxu0 %v2225
    %2402 = vmatprep.subr.mxu0 %v2230
    %2403 = vmatpush1.msra.mxu0 %v2229
    %2404 = vmatprep.subr.mxu0 %v2234
    %2405 = vmatpush1.msra.mxu0 %v2233
    %2406 = vmatprep.subr.mxu0 %v2238
    %2407 = vmatpush1.msra.mxu0 %v2237
    %2408 = vmatprep.subr.mxu0 %v2242
    %2409 = vmatpush1.msra.mxu0 %v2241
    %2410 = vmatprep.subr.mxu0 %v2246
    %2411 = vmatpush1.msra.mxu0 %v2245
    %2412 = vmatprep.subr.mxu0 %v2250
    %2413 = vmatpush1.msra.mxu0 %v2249
    %2414 = vmatprep.subr.mxu0 %v2254
    %2415 = vmatpush1.msra.mxu0 %v2253
    %2416 = vmatprep.mubr.f32.mxu0 %v2266
    %2417 = vmatmul.mubr.f32.gmra.mrb[0].mxu0 %v2263
    %v2418 = vpop.f32.mrb[0].mxu0
    %v2419 = vadd.f32 0.0, %v2418
    %v2420 = vpop.f32.mrb[0].mxu0
    %v2421 = vadd.f32 0.0, %v2420
    %2422 = vmatprep.mubr.f32.mxu0 %v2270
    %2423 = vmatmul.mubr.f32.gmra.mrb[0].mxu0 %v2268
    %v2424 = vpop.f32.mrb[0].mxu0
    %v2425 = vadd.f32 0.0, %v2424
    %v2426 = vpop.f32.mrb[0].mxu0
    %v2427 = vadd.f32 0.0, %v2426
    %2428 = vdwg.mxu0
    %v2429 = vadd.f32 %v2118, %v2342
    %v2430 = vadd.f32 %v2119, %v2344
    %v2431 = vadd.f32 %v2120, %v2419
    %v2432 = vadd.f32 %v2121, %v2421
    %v2433 = vadd.f32 %v2122, %v2348
    %v2434 = vadd.f32 %v2123, %v2350
    %v2435 = vadd.f32 %v2124, %v2425
    %v2436 = vadd.f32 %v2125, %v2427
    %s2437 = scalar_lea.vmem [#allocation10], 2048
    %v2438 = vld [vmem:[%s2437] sm:$0xff]
    %v2439 = vld [vmem:[%s2437 + $0x8] sm:$0xff]
    %v2440 = vld [vmem:[%s2437 + $0x10] sm:$0xff]
    %v2441 = vld [vmem:[%s2437 + $0x18] sm:$0xff]
    %v2442 = vld [vmem:[%s2437 + $0x20] sm:$0xff]
    %v2443 = vld [vmem:[%s2437 + $0x28] sm:$0xff]
    %v2444 = vld [vmem:[%s2437 + $0x30] sm:$0xff]
    %v2445 = vld [vmem:[%s2437 + $0x38] sm:$0xff]
    %v2446 = vld [vmem:[%s2437 + $0x40] sm:$0xff]
    %v2447 = vld [vmem:[%s2437 + $0x48] sm:$0xff]
    %v2448 = vld [vmem:[%s2437 + $0x50] sm:$0xff]
    %v2449 = vld [vmem:[%s2437 + $0x58] sm:$0xff]
    %v2450 = vld [vmem:[%s2437 + $0x60] sm:$0xff]
    %v2451 = vld [vmem:[%s2437 + $0x68] sm:$0xff]
    %v2452 = vld [vmem:[%s2437 + $0x70] sm:$0xff]
    %v2453 = vld [vmem:[%s2437 + $0x78] sm:$0xff]
    %v2454 = vld [vmem:[%s2437 + $0x80] sm:$0xff]
    %v2455 = vld [vmem:[%s2437 + $0x88] sm:$0xff]
    %v2456 = vld [vmem:[%s2437 + $0x90] sm:$0xff]
    %v2457 = vld [vmem:[%s2437 + $0x98] sm:$0xff]
    %v2458 = vld [vmem:[%s2437 + $0xa0] sm:$0xff]
    %v2459 = vld [vmem:[%s2437 + $0xa8] sm:$0xff]
    %v2460 = vld [vmem:[%s2437 + $0xb0] sm:$0xff]
    %v2461 = vld [vmem:[%s2437 + $0xb8] sm:$0xff]
    %v2462 = vld [vmem:[%s2437 + $0xc0] sm:$0xff]
    %v2463 = vld [vmem:[%s2437 + $0xc8] sm:$0xff]
    %v2464 = vld [vmem:[%s2437 + $0xd0] sm:$0xff]
    %v2465 = vld [vmem:[%s2437 + $0xd8] sm:$0xff]
    %v2466 = vld [vmem:[%s2437 + $0xe0] sm:$0xff]
    %v2467 = vld [vmem:[%s2437 + $0xe8] sm:$0xff]
    %v2468 = vld [vmem:[%s2437 + $0xf0] sm:$0xff]
    %v2469 = vld [vmem:[%s2437 + $0xf8] sm:$0xff]
    %v2470 = vld [vmem:[%s2437 + $0x100] sm:$0xff]
    %v2471 = vld [vmem:[%s2437 + $0x108] sm:$0xff]
    %v2472 = vld [vmem:[%s2437 + $0x110] sm:$0xff]
    %v2473 = vld [vmem:[%s2437 + $0x118] sm:$0xff]
    %v2474 = vld [vmem:[%s2437 + $0x120] sm:$0xff]
    %v2475 = vld [vmem:[%s2437 + $0x128] sm:$0xff]
    %v2476 = vld [vmem:[%s2437 + $0x130] sm:$0xff]
    %v2477 = vld [vmem:[%s2437 + $0x138] sm:$0xff]
    %v2478 = vld [vmem:[%s2437 + $0x140] sm:$0xff]
    %v2479 = vld [vmem:[%s2437 + $0x148] sm:$0xff]
    %v2480 = vld [vmem:[%s2437 + $0x150] sm:$0xff]
    %v2481 = vld [vmem:[%s2437 + $0x158] sm:$0xff]
    %v2482 = vld [vmem:[%s2437 + $0x160] sm:$0xff]
    %v2483 = vld [vmem:[%s2437 + $0x168] sm:$0xff]
    %v2484 = vld [vmem:[%s2437 + $0x170] sm:$0xff]
    %v2485 = vld [vmem:[%s2437 + $0x178] sm:$0xff]
    %v2486 = vld [vmem:[%s2437 + $0x180] sm:$0xff]
    %v2487 = vld [vmem:[%s2437 + $0x188] sm:$0xff]
    %v2488 = vld [vmem:[%s2437 + $0x190] sm:$0xff]
    %v2489 = vld [vmem:[%s2437 + $0x198] sm:$0xff]
    %v2490 = vld [vmem:[%s2437 + $0x1a0] sm:$0xff]
    %v2491 = vld [vmem:[%s2437 + $0x1a8] sm:$0xff]
    %v2492 = vld [vmem:[%s2437 + $0x1b0] sm:$0xff]
    %v2493 = vld [vmem:[%s2437 + $0x1b8] sm:$0xff]
    %v2494 = vld [vmem:[%s2437 + $0x1c0] sm:$0xff]
    %v2495 = vld [vmem:[%s2437 + $0x1c8] sm:$0xff]
    %v2496 = vld [vmem:[%s2437 + $0x1d0] sm:$0xff]
    %v2497 = vld [vmem:[%s2437 + $0x1d8] sm:$0xff]
    %v2498 = vld [vmem:[%s2437 + $0x1e0] sm:$0xff]
    %v2499 = vld [vmem:[%s2437 + $0x1e8] sm:$0xff]
    %v2500 = vld [vmem:[%s2437 + $0x1f0] sm:$0xff]
    %v2501 = vld [vmem:[%s2437 + $0x1f8] sm:$0xff]
    %v2502 = vld [vmem:[%s2437 + $0x200] sm:$0xff]
    %v2503 = vld [vmem:[%s2437 + $0x208] sm:$0xff]
    %v2504 = vld [vmem:[%s2437 + $0x210] sm:$0xff]
    %v2505 = vld [vmem:[%s2437 + $0x218] sm:$0xff]
    %v2506 = vld [vmem:[%s2437 + $0x220] sm:$0xff]
    %v2507 = vld [vmem:[%s2437 + $0x228] sm:$0xff]
    %v2508 = vld [vmem:[%s2437 + $0x230] sm:$0xff]
    %v2509 = vld [vmem:[%s2437 + $0x238] sm:$0xff]
    %v2510 = vld [vmem:[%s2437 + $0x240] sm:$0xff]
    %v2511 = vld [vmem:[%s2437 + $0x248] sm:$0xff]
    %v2512 = vld [vmem:[%s2437 + $0x250] sm:$0xff]
    %v2513 = vld [vmem:[%s2437 + $0x258] sm:$0xff]
    %v2514 = vld [vmem:[%s2437 + $0x260] sm:$0xff]
    %v2515 = vld [vmem:[%s2437 + $0x268] sm:$0xff]
    %v2516 = vld [vmem:[%s2437 + $0x270] sm:$0xff]
    %v2517 = vld [vmem:[%s2437 + $0x278] sm:$0xff]
    %v2518 = vld [vmem:[%s2437 + $0x280] sm:$0xff]
    %v2519 = vld [vmem:[%s2437 + $0x288] sm:$0xff]
    %v2520 = vld [vmem:[%s2437 + $0x290] sm:$0xff]
    %v2521 = vld [vmem:[%s2437 + $0x298] sm:$0xff]
    %v2522 = vld [vmem:[%s2437 + $0x2a0] sm:$0xff]
    %v2523 = vld [vmem:[%s2437 + $0x2a8] sm:$0xff]
    %v2524 = vld [vmem:[%s2437 + $0x2b0] sm:$0xff]
    %v2525 = vld [vmem:[%s2437 + $0x2b8] sm:$0xff]
    %v2526 = vld [vmem:[%s2437 + $0x2c0] sm:$0xff]
    %v2527 = vld [vmem:[%s2437 + $0x2c8] sm:$0xff]
    %v2528 = vld [vmem:[%s2437 + $0x2d0] sm:$0xff]
    %v2529 = vld [vmem:[%s2437 + $0x2d8] sm:$0xff]
    %v2530 = vld [vmem:[%s2437 + $0x2e0] sm:$0xff]
    %v2531 = vld [vmem:[%s2437 + $0x2e8] sm:$0xff]
    %v2532 = vld [vmem:[%s2437 + $0x2f0] sm:$0xff]
    %v2533 = vld [vmem:[%s2437 + $0x2f8] sm:$0xff]
    %v2534 = vld [vmem:[%s2437 + $0x300] sm:$0xff]
    %v2535 = vld [vmem:[%s2437 + $0x308] sm:$0xff]
    %v2536 = vld [vmem:[%s2437 + $0x310] sm:$0xff]
    %v2537 = vld [vmem:[%s2437 + $0x318] sm:$0xff]
    %v2538 = vld [vmem:[%s2437 + $0x320] sm:$0xff]
    %v2539 = vld [vmem:[%s2437 + $0x328] sm:$0xff]
    %v2540 = vld [vmem:[%s2437 + $0x330] sm:$0xff]
    %v2541 = vld [vmem:[%s2437 + $0x338] sm:$0xff]
    %v2542 = vld [vmem:[%s2437 + $0x340] sm:$0xff]
    %v2543 = vld [vmem:[%s2437 + $0x348] sm:$0xff]
    %v2544 = vld [vmem:[%s2437 + $0x350] sm:$0xff]
    %v2545 = vld [vmem:[%s2437 + $0x358] sm:$0xff]
    %v2546 = vld [vmem:[%s2437 + $0x360] sm:$0xff]
    %v2547 = vld [vmem:[%s2437 + $0x368] sm:$0xff]
    %v2548 = vld [vmem:[%s2437 + $0x370] sm:$0xff]
    %v2549 = vld [vmem:[%s2437 + $0x378] sm:$0xff]
    %v2550 = vld [vmem:[%s2437 + $0x380] sm:$0xff]
    %v2551 = vld [vmem:[%s2437 + $0x388] sm:$0xff]
    %v2552 = vld [vmem:[%s2437 + $0x390] sm:$0xff]
    %v2553 = vld [vmem:[%s2437 + $0x398] sm:$0xff]
    %v2554 = vld [vmem:[%s2437 + $0x3a0] sm:$0xff]
    %v2555 = vld [vmem:[%s2437 + $0x3a8] sm:$0xff]
    %v2556 = vld [vmem:[%s2437 + $0x3b0] sm:$0xff]
    %v2557 = vld [vmem:[%s2437 + $0x3b8] sm:$0xff]
    %v2558 = vld [vmem:[%s2437 + $0x3c0] sm:$0xff]
    %v2559 = vld [vmem:[%s2437 + $0x3c8] sm:$0xff]
    %v2560 = vld [vmem:[%s2437 + $0x3d0] sm:$0xff]
    %v2561 = vld [vmem:[%s2437 + $0x3d8] sm:$0xff]
    %v2562 = vld [vmem:[%s2437 + $0x3e0] sm:$0xff]
    %v2563 = vld [vmem:[%s2437 + $0x3e8] sm:$0xff]
    %v2564 = vld [vmem:[%s2437 + $0x3f0] sm:$0xff]
    %v2565 = vld [vmem:[%s2437 + $0x3f8] sm:$0xff]
    %v2566 = vrot.slane %v1804, 4
    %v2567 = vrot.slane %v1806, 4
    %v2568 = vsel %vm250, %v2566, %v2567
    %v2569 = vrot.slane %v1805, 4
    %v2570 = vrot.slane %v1807, 4
    %v2571 = vsel %vm250, %v2569, %v2570
    %v2572 = vrot.slane %v1808, 4
    %v2573 = vsel %vm250, %v2567, %v2572
    %v2574 = vrot.slane %v1809, 4
    %v2575 = vsel %vm250, %v2570, %v2574
    %2580 = vmatprep.subr.mxu0 %v2439
    %2581 = vmatpush1.msra.mxu0 %v2438
    %2582 = vmatprep.subr.mxu0 %v2443
    %2583 = vmatpush1.msra.mxu0 %v2442
    %2584 = vmatprep.subr.mxu0 %v2447
    %2585 = vmatpush1.msra.mxu0 %v2446
    %2586 = vmatprep.subr.mxu0 %v2451
    %2587 = vmatpush1.msra.mxu0 %v2450
    %2588 = vmatprep.subr.mxu0 %v2455
    %2589 = vmatpush1.msra.mxu0 %v2454
    %2590 = vmatprep.subr.mxu0 %v2459
    %2591 = vmatpush1.msra.mxu0 %v2458
    %2592 = vmatprep.subr.mxu0 %v2463
    %2593 = vmatpush1.msra.mxu0 %v2462
    %2594 = vmatprep.subr.mxu0 %v2467
    %2595 = vmatpush1.msra.mxu0 %v2466
    %2596 = vmatprep.subr.mxu0 %v2471
    %2597 = vmatpush1.msra.mxu0 %v2470
    %2598 = vmatprep.subr.mxu0 %v2475
    %2599 = vmatpush1.msra.mxu0 %v2474
    %2600 = vmatprep.subr.mxu0 %v2479
    %2601 = vmatpush1.msra.mxu0 %v2478
    %2602 = vmatprep.subr.mxu0 %v2483
    %2603 = vmatpush1.msra.mxu0 %v2482
    %2604 = vmatprep.subr.mxu0 %v2487
    %2605 = vmatpush1.msra.mxu0 %v2486
    %2606 = vmatprep.subr.mxu0 %v2491
    %2607 = vmatpush1.msra.mxu0 %v2490
    %2608 = vmatprep.subr.mxu0 %v2495
    %2609 = vmatpush1.msra.mxu0 %v2494
    %2610 = vmatprep.subr.mxu0 %v2499
    %2611 = vmatpush1.msra.mxu0 %v2498
    %2612 = vmatprep.subr.mxu0 %v2503
    %2613 = vmatpush1.msra.mxu0 %v2502
    %2614 = vmatprep.subr.mxu0 %v2507
    %2615 = vmatpush1.msra.mxu0 %v2506
    %2616 = vmatprep.subr.mxu0 %v2511
    %2617 = vmatpush1.msra.mxu0 %v2510
    %2618 = vmatprep.subr.mxu0 %v2515
    %2619 = vmatpush1.msra.mxu0 %v2514
    %2620 = vmatprep.subr.mxu0 %v2519
    %2621 = vmatpush1.msra.mxu0 %v2518
    %2622 = vmatprep.subr.mxu0 %v2523
    %2623 = vmatpush1.msra.mxu0 %v2522
    %2624 = vmatprep.subr.mxu0 %v2527
    %2625 = vmatpush1.msra.mxu0 %v2526
    %2626 = vmatprep.subr.mxu0 %v2531
    %2627 = vmatpush1.msra.mxu0 %v2530
    %2628 = vmatprep.subr.mxu0 %v2535
    %2629 = vmatpush1.msra.mxu0 %v2534
    %2630 = vmatprep.subr.mxu0 %v2539
    %2631 = vmatpush1.msra.mxu0 %v2538
    %2632 = vmatprep.subr.mxu0 %v2543
    %2633 = vmatpush1.msra.mxu0 %v2542
    %2634 = vmatprep.subr.mxu0 %v2547
    %2635 = vmatpush1.msra.mxu0 %v2546
    %2636 = vmatprep.subr.mxu0 %v2551
    %2637 = vmatpush1.msra.mxu0 %v2550
    %2638 = vmatprep.subr.mxu0 %v2555
    %2639 = vmatpush1.msra.mxu0 %v2554
    %2640 = vmatprep.subr.mxu0 %v2559
    %2641 = vmatpush1.msra.mxu0 %v2558
    %2642 = vmatprep.subr.mxu0 %v2563
    %2643 = vmatpush1.msra.mxu0 %v2562
    %2644 = vmatprep.mubr.f32.mxu0 %v2571
    %2645 = vmatmul.mubr.f32.gmra.mrb[0].mxu0 %v2568
    %v2646 = vpop.f32.mrb[0].mxu0
    %v2647 = vadd.f32 0.0, %v2646
    %v2648 = vpop.f32.mrb[0].mxu0
    %v2649 = vadd.f32 0.0, %v2648
    %2650 = vmatprep.mubr.f32.mxu0 %v2575
    %2651 = vmatmul.mubr.f32.gmra.mrb[0].mxu0 %v2573
    %v2652 = vpop.f32.mrb[0].mxu0
    %v2653 = vadd.f32 0.0, %v2652
    %v2654 = vpop.f32.mrb[0].mxu0
    %v2655 = vadd.f32 0.0, %v2654
    %2656 = vdwg.mxu0
    %2657 = vmatprep.subr.mxu0 %v2441
    %2658 = vmatpush1.msra.mxu0 %v2440
    %2659 = vmatprep.subr.mxu0 %v2445
    %2660 = vmatpush1.msra.mxu0 %v2444
    %2661 = vmatprep.subr.mxu0 %v2449
    %2662 = vmatpush1.msra.mxu0 %v2448
    %2663 = vmatprep.subr.mxu0 %v2453
    %2664 = vmatpush1.msra.mxu0 %v2452
    %2665 = vmatprep.subr.mxu0 %v2457
    %2666 = vmatpush1.msra.mxu0 %v2456
    %2667 = vmatprep.subr.mxu0 %v2461
    %2668 = vmatpush1.msra.mxu0 %v2460
    %2669 = vmatprep.subr.mxu0 %v2465
    %2670 = vmatpush1.msra.mxu0 %v2464
    %2671 = vmatprep.subr.mxu0 %v2469
    %2672 = vmatpush1.msra.mxu0 %v2468
    %2673 = vmatprep.subr.mxu0 %v2473
    %2674 = vmatpush1.msra.mxu0 %v2472
    %2675 = vmatprep.subr.mxu0 %v2477
    %2676 = vmatpush1.msra.mxu0 %v2476
    %2677 = vmatprep.subr.mxu0 %v2481
    %2678 = vmatpush1.msra.mxu0 %v2480
    %2679 = vmatprep.subr.mxu0 %v2485
    %2680 = vmatpush1.msra.mxu0 %v2484
    %2681 = vmatprep.subr.mxu0 %v2489
    %2682 = vmatpush1.msra.mxu0 %v2488
    %2683 = vmatprep.subr.mxu0 %v2493
    %2684 = vmatpush1.msra.mxu0 %v2492
    %2685 = vmatprep.subr.mxu0 %v2497
    %2686 = vmatpush1.msra.mxu0 %v2496
    %2687 = vmatprep.subr.mxu0 %v2501
    %2688 = vmatpush1.msra.mxu0 %v2500
    %2689 = vmatprep.subr.mxu0 %v2505
    %2690 = vmatpush1.msra.mxu0 %v2504
    %2691 = vmatprep.subr.mxu0 %v2509
    %2692 = vmatpush1.msra.mxu0 %v2508
    %2693 = vmatprep.subr.mxu0 %v2513
    %2694 = vmatpush1.msra.mxu0 %v2512
    %2695 = vmatprep.subr.mxu0 %v2517
    %2696 = vmatpush1.msra.mxu0 %v2516
    %2697 = vmatprep.subr.mxu0 %v2521
    %2698 = vmatpush1.msra.mxu0 %v2520
    %2699 = vmatprep.subr.mxu0 %v2525
    %2700 = vmatpush1.msra.mxu0 %v2524
    %2701 = vmatprep.subr.mxu0 %v2529
    %2702 = vmatpush1.msra.mxu0 %v2528
    %2703 = vmatprep.subr.mxu0 %v2533
    %2704 = vmatpush1.msra.mxu0 %v2532
    %2705 = vmatprep.subr.mxu0 %v2537
    %2706 = vmatpush1.msra.mxu0 %v2536
    %2707 = vmatprep.subr.mxu0 %v2541
    %2708 = vmatpush1.msra.mxu0 %v2540
    %2709 = vmatprep.subr.mxu0 %v2545
    %2710 = vmatpush1.msra.mxu0 %v2544
    %2711 = vmatprep.subr.mxu0 %v2549
    %2712 = vmatpush1.msra.mxu0 %v2548
    %2713 = vmatprep.subr.mxu0 %v2553
    %2714 = vmatpush1.msra.mxu0 %v2552
    %2715 = vmatprep.subr.mxu0 %v2557
    %2716 = vmatpush1.msra.mxu0 %v2556
    %2717 = vmatprep.subr.mxu0 %v2561
    %2718 = vmatpush1.msra.mxu0 %v2560
    %2719 = vmatprep.subr.mxu0 %v2565
    %2720 = vmatpush1.msra.mxu0 %v2564
    %2721 = vmatprep.mubr.f32.mxu0 %v2571
    %2722 = vmatmul.mubr.f32.gmra.mrb[0].mxu0 %v2568
    %v2723 = vpop.f32.mrb[0].mxu0
    %v2724 = vadd.f32 0.0, %v2723
    %v2725 = vpop.f32.mrb[0].mxu0
    %v2726 = vadd.f32 0.0, %v2725
    %2727 = vmatprep.mubr.f32.mxu0 %v2575
    %2728 = vmatmul.mubr.f32.gmra.mrb[0].mxu0 %v2573
    %v2729 = vpop.f32.mrb[0].mxu0
    %v2730 = vadd.f32 0.0, %v2729
    %v2731 = vpop.f32.mrb[0].mxu0
    %v2732 = vadd.f32 0.0, %v2731
    %2733 = vdwg.mxu0
    %v2734 = vadd.f32 %v2429, %v2647
    %v2735 = vadd.f32 %v2430, %v2649
    %v2736 = vadd.f32 %v2431, %v2724
    %v2737 = vadd.f32 %v2432, %v2726
    %v2738 = vadd.f32 %v2433, %v2653
    %v2739 = vadd.f32 %v2434, %v2655
    %v2740 = vadd.f32 %v2435, %v2730
    %v2741 = vadd.f32 %v2436, %v2732
    %s2742 = scalar_lea.vmem [#allocation10], 3072
    %v2743 = vld [vmem:[%s2742] sm:$0xff]
    %v2744 = vld [vmem:[%s2742 + $0x8] sm:$0xff]
    %v2745 = vld [vmem:[%s2742 + $0x10] sm:$0xff]
    %v2746 = vld [vmem:[%s2742 + $0x18] sm:$0xff]
    %v2747 = vld [vmem:[%s2742 + $0x20] sm:$0xff]
    %v2748 = vld [vmem:[%s2742 + $0x28] sm:$0xff]
    %v2749 = vld [vmem:[%s2742 + $0x30] sm:$0xff]
    %v2750 = vld [vmem:[%s2742 + $0x38] sm:$0xff]
    %v2751 = vld [vmem:[%s2742 + $0x40] sm:$0xff]
    %v2752 = vld [vmem:[%s2742 + $0x48] sm:$0xff]
    %v2753 = vld [vmem:[%s2742 + $0x50] sm:$0xff]
    %v2754 = vld [vmem:[%s2742 + $0x58] sm:$0xff]
    %v2755 = vld [vmem:[%s2742 + $0x60] sm:$0xff]
    %v2756 = vld [vmem:[%s2742 + $0x68] sm:$0xff]
    %v2757 = vld [vmem:[%s2742 + $0x70] sm:$0xff]
    %v2758 = vld [vmem:[%s2742 + $0x78] sm:$0xff]
    %v2759 = vld [vmem:[%s2742 + $0x80] sm:$0xff]
    %v2760 = vld [vmem:[%s2742 + $0x88] sm:$0xff]
    %v2761 = vld [vmem:[%s2742 + $0x90] sm:$0xff]
    %v2762 = vld [vmem:[%s2742 + $0x98] sm:$0xff]
    %v2763 = vld [vmem:[%s2742 + $0xa0] sm:$0xff]
    %v2764 = vld [vmem:[%s2742 + $0xa8] sm:$0xff]
    %v2765 = vld [vmem:[%s2742 + $0xb0] sm:$0xff]
    %v2766 = vld [vmem:[%s2742 + $0xb8] sm:$0xff]
    %v2767 = vld [vmem:[%s2742 + $0xc0] sm:$0xff]
    %v2768 = vld [vmem:[%s2742 + $0xc8] sm:$0xff]
    %v2769 = vld [vmem:[%s2742 + $0xd0] sm:$0xff]
    %v2770 = vld [vmem:[%s2742 + $0xd8] sm:$0xff]
    %v2771 = vld [vmem:[%s2742 + $0xe0] sm:$0xff]
    %v2772 = vld [vmem:[%s2742 + $0xe8] sm:$0xff]
    %v2773 = vld [vmem:[%s2742 + $0xf0] sm:$0xff]
    %v2774 = vld [vmem:[%s2742 + $0xf8] sm:$0xff]
    %v2775 = vld [vmem:[%s2742 + $0x100] sm:$0xff]
    %v2776 = vld [vmem:[%s2742 + $0x108] sm:$0xff]
    %v2777 = vld [vmem:[%s2742 + $0x110] sm:$0xff]
    %v2778 = vld [vmem:[%s2742 + $0x118] sm:$0xff]
    %v2779 = vld [vmem:[%s2742 + $0x120] sm:$0xff]
    %v2780 = vld [vmem:[%s2742 + $0x128] sm:$0xff]
    %v2781 = vld [vmem:[%s2742 + $0x130] sm:$0xff]
    %v2782 = vld [vmem:[%s2742 + $0x138] sm:$0xff]
    %v2783 = vld [vmem:[%s2742 + $0x140] sm:$0xff]
    %v2784 = vld [vmem:[%s2742 + $0x148] sm:$0xff]
    %v2785 = vld [vmem:[%s2742 + $0x150] sm:$0xff]
    %v2786 = vld [vmem:[%s2742 + $0x158] sm:$0xff]
    %v2787 = vld [vmem:[%s2742 + $0x160] sm:$0xff]
    %v2788 = vld [vmem:[%s2742 + $0x168] sm:$0xff]
    %v2789 = vld [vmem:[%s2742 + $0x170] sm:$0xff]
    %v2790 = vld [vmem:[%s2742 + $0x178] sm:$0xff]
    %v2791 = vld [vmem:[%s2742 + $0x180] sm:$0xff]
    %v2792 = vld [vmem:[%s2742 + $0x188] sm:$0xff]
    %v2793 = vld [vmem:[%s2742 + $0x190] sm:$0xff]
    %v2794 = vld [vmem:[%s2742 + $0x198] sm:$0xff]
    %v2795 = vld [vmem:[%s2742 + $0x1a0] sm:$0xff]
    %v2796 = vld [vmem:[%s2742 + $0x1a8] sm:$0xff]
    %v2797 = vld [vmem:[%s2742 + $0x1b0] sm:$0xff]
    %v2798 = vld [vmem:[%s2742 + $0x1b8] sm:$0xff]
    %v2799 = vld [vmem:[%s2742 + $0x1c0] sm:$0xff]
    %v2800 = vld [vmem:[%s2742 + $0x1c8] sm:$0xff]
    %v2801 = vld [vmem:[%s2742 + $0x1d0] sm:$0xff]
    %v2802 = vld [vmem:[%s2742 + $0x1d8] sm:$0xff]
    %v2803 = vld [vmem:[%s2742 + $0x1e0] sm:$0xff]
    %v2804 = vld [vmem:[%s2742 + $0x1e8] sm:$0xff]
    %v2805 = vld [vmem:[%s2742 + $0x1f0] sm:$0xff]
    %v2806 = vld [vmem:[%s2742 + $0x1f8] sm:$0xff]
    %v2807 = vld [vmem:[%s2742 + $0x200] sm:$0xff]
    %v2808 = vld [vmem:[%s2742 + $0x208] sm:$0xff]
    %v2809 = vld [vmem:[%s2742 + $0x210] sm:$0xff]
    %v2810 = vld [vmem:[%s2742 + $0x218] sm:$0xff]
    %v2811 = vld [vmem:[%s2742 + $0x220] sm:$0xff]
    %v2812 = vld [vmem:[%s2742 + $0x228] sm:$0xff]
    %v2813 = vld [vmem:[%s2742 + $0x230] sm:$0xff]
    %v2814 = vld [vmem:[%s2742 + $0x238] sm:$0xff]
    %v2815 = vld [vmem:[%s2742 + $0x240] sm:$0xff]
    %v2816 = vld [vmem:[%s2742 + $0x248] sm:$0xff]
    %v2817 = vld [vmem:[%s2742 + $0x250] sm:$0xff]
    %v2818 = vld [vmem:[%s2742 + $0x258] sm:$0xff]
    %v2819 = vld [vmem:[%s2742 + $0x260] sm:$0xff]
    %v2820 = vld [vmem:[%s2742 + $0x268] sm:$0xff]
    %v2821 = vld [vmem:[%s2742 + $0x270] sm:$0xff]
    %v2822 = vld [vmem:[%s2742 + $0x278] sm:$0xff]
    %v2823 = vld [vmem:[%s2742 + $0x280] sm:$0xff]
    %v2824 = vld [vmem:[%s2742 + $0x288] sm:$0xff]
    %v2825 = vld [vmem:[%s2742 + $0x290] sm:$0xff]
    %v2826 = vld [vmem:[%s2742 + $0x298] sm:$0xff]
    %v2827 = vld [vmem:[%s2742 + $0x2a0] sm:$0xff]
    %v2828 = vld [vmem:[%s2742 + $0x2a8] sm:$0xff]
    %v2829 = vld [vmem:[%s2742 + $0x2b0] sm:$0xff]
    %v2830 = vld [vmem:[%s2742 + $0x2b8] sm:$0xff]
    %v2831 = vld [vmem:[%s2742 + $0x2c0] sm:$0xff]
    %v2832 = vld [vmem:[%s2742 + $0x2c8] sm:$0xff]
    %v2833 = vld [vmem:[%s2742 + $0x2d0] sm:$0xff]
    %v2834 = vld [vmem:[%s2742 + $0x2d8] sm:$0xff]
    %v2835 = vld [vmem:[%s2742 + $0x2e0] sm:$0xff]
    %v2836 = vld [vmem:[%s2742 + $0x2e8] sm:$0xff]
    %v2837 = vld [vmem:[%s2742 + $0x2f0] sm:$0xff]
    %v2838 = vld [vmem:[%s2742 + $0x2f8] sm:$0xff]
    %v2839 = vld [vmem:[%s2742 + $0x300] sm:$0xff]
    %v2840 = vld [vmem:[%s2742 + $0x308] sm:$0xff]
    %v2841 = vld [vmem:[%s2742 + $0x310] sm:$0xff]
    %v2842 = vld [vmem:[%s2742 + $0x318] sm:$0xff]
    %v2843 = vld [vmem:[%s2742 + $0x320] sm:$0xff]
    %v2844 = vld [vmem:[%s2742 + $0x328] sm:$0xff]
    %v2845 = vld [vmem:[%s2742 + $0x330] sm:$0xff]
    %v2846 = vld [vmem:[%s2742 + $0x338] sm:$0xff]
    %v2847 = vld [vmem:[%s2742 + $0x340] sm:$0xff]
    %v2848 = vld [vmem:[%s2742 + $0x348] sm:$0xff]
    %v2849 = vld [vmem:[%s2742 + $0x350] sm:$0xff]
    %v2850 = vld [vmem:[%s2742 + $0x358] sm:$0xff]
    %v2851 = vld [vmem:[%s2742 + $0x360] sm:$0xff]
    %v2852 = vld [vmem:[%s2742 + $0x368] sm:$0xff]
    %v2853 = vld [vmem:[%s2742 + $0x370] sm:$0xff]
    %v2854 = vld [vmem:[%s2742 + $0x378] sm:$0xff]
    %v2855 = vld [vmem:[%s2742 + $0x380] sm:$0xff]
    %v2856 = vld [vmem:[%s2742 + $0x388] sm:$0xff]
    %v2857 = vld [vmem:[%s2742 + $0x390] sm:$0xff]
    %v2858 = vld [vmem:[%s2742 + $0x398] sm:$0xff]
    %v2859 = vld [vmem:[%s2742 + $0x3a0] sm:$0xff]
    %v2860 = vld [vmem:[%s2742 + $0x3a8] sm:$0xff]
    %v2861 = vld [vmem:[%s2742 + $0x3b0] sm:$0xff]
    %v2862 = vld [vmem:[%s2742 + $0x3b8] sm:$0xff]
    %v2863 = vld [vmem:[%s2742 + $0x3c0] sm:$0xff]
    %v2864 = vld [vmem:[%s2742 + $0x3c8] sm:$0xff]
    %v2865 = vld [vmem:[%s2742 + $0x3d0] sm:$0xff]
    %v2866 = vld [vmem:[%s2742 + $0x3d8] sm:$0xff]
    %v2867 = vld [vmem:[%s2742 + $0x3e0] sm:$0xff]
    %v2868 = vld [vmem:[%s2742 + $0x3e8] sm:$0xff]
    %v2869 = vld [vmem:[%s2742 + $0x3f0] sm:$0xff]
    %v2870 = vld [vmem:[%s2742 + $0x3f8] sm:$0xff]
    %v2871 = vrot.slane %v1804, 6
    %v2872 = vrot.slane %v1806, 6
    %v2873 = vsel %vm1068, %v2871, %v2872
    %v2874 = vrot.slane %v1805, 6
    %v2875 = vrot.slane %v1807, 6
    %v2876 = vsel %vm1068, %v2874, %v2875
    %v2877 = vrot.slane %v1808, 6
    %v2878 = vsel %vm1068, %v2872, %v2877
    %v2879 = vrot.slane %v1809, 6
    %v2880 = vsel %vm1068, %v2875, %v2879
    %2885 = vmatprep.subr.mxu0 %v2744
    %2886 = vmatpush1.msra.mxu0 %v2743
    %2887 = vmatprep.subr.mxu0 %v2748
    %2888 = vmatpush1.msra.mxu0 %v2747
    %2889 = vmatprep.subr.mxu0 %v2752
    %2890 = vmatpush1.msra.mxu0 %v2751
    %2891 = vmatprep.subr.mxu0 %v2756
    %2892 = vmatpush1.msra.mxu0 %v2755
    %2893 = vmatprep.subr.mxu0 %v2760
    %2894 = vmatpush1.msra.mxu0 %v2759
    %2895 = vmatprep.subr.mxu0 %v2764
    %2896 = vmatpush1.msra.mxu0 %v2763
    %2897 = vmatprep.subr.mxu0 %v2768
    %2898 = vmatpush1.msra.mxu0 %v2767
    %2899 = vmatprep.subr.mxu0 %v2772
    %2900 = vmatpush1.msra.mxu0 %v2771
    %2901 = vmatprep.subr.mxu0 %v2776
    %2902 = vmatpush1.msra.mxu0 %v2775
    %2903 = vmatprep.subr.mxu0 %v2780
    %2904 = vmatpush1.msra.mxu0 %v2779
    %2905 = vmatprep.subr.mxu0 %v2784
    %2906 = vmatpush1.msra.mxu0 %v2783
    %2907 = vmatprep.subr.mxu0 %v2788
    %2908 = vmatpush1.msra.mxu0 %v2787
    %2909 = vmatprep.subr.mxu0 %v2792
    %2910 = vmatpush1.msra.mxu0 %v2791
    %2911 = vmatprep.subr.mxu0 %v2796
    %2912 = vmatpush1.msra.mxu0 %v2795
    %2913 = vmatprep.subr.mxu0 %v2800
    %2914 = vmatpush1.msra.mxu0 %v2799
    %2915 = vmatprep.subr.mxu0 %v2804
    %2916 = vmatpush1.msra.mxu0 %v2803
    %2917 = vmatprep.subr.mxu0 %v2808
    %2918 = vmatpush1.msra.mxu0 %v2807
    %2919 = vmatprep.subr.mxu0 %v2812
    %2920 = vmatpush1.msra.mxu0 %v2811
    %2921 = vmatprep.subr.mxu0 %v2816
    %2922 = vmatpush1.msra.mxu0 %v2815
    %2923 = vmatprep.subr.mxu0 %v2820
    %2924 = vmatpush1.msra.mxu0 %v2819
    %2925 = vmatprep.subr.mxu0 %v2824
    %2926 = vmatpush1.msra.mxu0 %v2823
    %2927 = vmatprep.subr.mxu0 %v2828
    %2928 = vmatpush1.msra.mxu0 %v2827
    %2929 = vmatprep.subr.mxu0 %v2832
    %2930 = vmatpush1.msra.mxu0 %v2831
    %2931 = vmatprep.subr.mxu0 %v2836
    %2932 = vmatpush1.msra.mxu0 %v2835
    %2933 = vmatprep.subr.mxu0 %v2840
    %2934 = vmatpush1.msra.mxu0 %v2839
    %2935 = vmatprep.subr.mxu0 %v2844
    %2936 = vmatpush1.msra.mxu0 %v2843
    %2937 = vmatprep.subr.mxu0 %v2848
    %2938 = vmatpush1.msra.mxu0 %v2847
    %2939 = vmatprep.subr.mxu0 %v2852
    %2940 = vmatpush1.msra.mxu0 %v2851
    %2941 = vmatprep.subr.mxu0 %v2856
    %2942 = vmatpush1.msra.mxu0 %v2855
    %2943 = vmatprep.subr.mxu0 %v2860
    %2944 = vmatpush1.msra.mxu0 %v2859
    %2945 = vmatprep.subr.mxu0 %v2864
    %2946 = vmatpush1.msra.mxu0 %v2863
    %2947 = vmatprep.subr.mxu0 %v2868
    %2948 = vmatpush1.msra.mxu0 %v2867
    %2949 = vmatprep.mubr.f32.mxu0 %v2876
    %2950 = vmatmul.mubr.f32.gmra.mrb[0].mxu0 %v2873
    %v2951 = vpop.f32.mrb[0].mxu0
    %v2952 = vadd.f32 0.0, %v2951
    %v2953 = vpop.f32.mrb[0].mxu0
    %v2954 = vadd.f32 0.0, %v2953
    %2955 = vmatprep.mubr.f32.mxu0 %v2880
    %2956 = vmatmul.mubr.f32.gmra.mrb[0].mxu0 %v2878
    %v2957 = vpop.f32.mrb[0].mxu0
    %v2958 = vadd.f32 0.0, %v2957
    %v2959 = vpop.f32.mrb[0].mxu0
    %v2960 = vadd.f32 0.0, %v2959
    %2961 = vdwg.mxu0
    %2962 = vmatprep.subr.mxu0 %v2746
    %2963 = vmatpush1.msra.mxu0 %v2745
    %2964 = vmatprep.subr.mxu0 %v2750
    %2965 = vmatpush1.msra.mxu0 %v2749
    %2966 = vmatprep.subr.mxu0 %v2754
    %2967 = vmatpush1.msra.mxu0 %v2753
    %2968 = vmatprep.subr.mxu0 %v2758
    %2969 = vmatpush1.msra.mxu0 %v2757
    %2970 = vmatprep.subr.mxu0 %v2762
    %2971 = vmatpush1.msra.mxu0 %v2761
    %2972 = vmatprep.subr.mxu0 %v2766
    %2973 = vmatpush1.msra.mxu0 %v2765
    %2974 = vmatprep.subr.mxu0 %v2770
    %2975 = vmatpush1.msra.mxu0 %v2769
    %2976 = vmatprep.subr.mxu0 %v2774
    %2977 = vmatpush1.msra.mxu0 %v2773
    %2978 = vmatprep.subr.mxu0 %v2778
    %2979 = vmatpush1.msra.mxu0 %v2777
    %2980 = vmatprep.subr.mxu0 %v2782
    %2981 = vmatpush1.msra.mxu0 %v2781
    %2982 = vmatprep.subr.mxu0 %v2786
    %2983 = vmatpush1.msra.mxu0 %v2785
    %2984 = vmatprep.subr.mxu0 %v2790
    %2985 = vmatpush1.msra.mxu0 %v2789
    %2986 = vmatprep.subr.mxu0 %v2794
    %2987 = vmatpush1.msra.mxu0 %v2793
    %2988 = vmatprep.subr.mxu0 %v2798
    %2989 = vmatpush1.msra.mxu0 %v2797
    %2990 = vmatprep.subr.mxu0 %v2802
    %2991 = vmatpush1.msra.mxu0 %v2801
    %2992 = vmatprep.subr.mxu0 %v2806
    %2993 = vmatpush1.msra.mxu0 %v2805
    %2994 = vmatprep.subr.mxu0 %v2810
    %2995 = vmatpush1.msra.mxu0 %v2809
    %2996 = vmatprep.subr.mxu0 %v2814
    %2997 = vmatpush1.msra.mxu0 %v2813
    %2998 = vmatprep.subr.mxu0 %v2818
    %2999 = vmatpush1.msra.mxu0 %v2817
    %3000 = vmatprep.subr.mxu0 %v2822
    %3001 = vmatpush1.msra.mxu0 %v2821
    %3002 = vmatprep.subr.mxu0 %v2826
    %3003 = vmatpush1.msra.mxu0 %v2825
    %3004 = vmatprep.subr.mxu0 %v2830
    %3005 = vmatpush1.msra.mxu0 %v2829
    %3006 = vmatprep.subr.mxu0 %v2834
    %3007 = vmatpush1.msra.mxu0 %v2833
    %3008 = vmatprep.subr.mxu0 %v2838
    %3009 = vmatpush1.msra.mxu0 %v2837
    %3010 = vmatprep.subr.mxu0 %v2842
    %3011 = vmatpush1.msra.mxu0 %v2841
    %3012 = vmatprep.subr.mxu0 %v2846
    %3013 = vmatpush1.msra.mxu0 %v2845
    %3014 = vmatprep.subr.mxu0 %v2850
    %3015 = vmatpush1.msra.mxu0 %v2849
    %3016 = vmatprep.subr.mxu0 %v2854
    %3017 = vmatpush1.msra.mxu0 %v2853
    %3018 = vmatprep.subr.mxu0 %v2858
    %3019 = vmatpush1.msra.mxu0 %v2857
    %3020 = vmatprep.subr.mxu0 %v2862
    %3021 = vmatpush1.msra.mxu0 %v2861
    %3022 = vmatprep.subr.mxu0 %v2866
    %3023 = vmatpush1.msra.mxu0 %v2865
    %3024 = vmatprep.subr.mxu0 %v2870
    %3025 = vmatpush1.msra.mxu0 %v2869
    %3026 = vmatprep.mubr.f32.mxu0 %v2876
    %3027 = vmatmul.mubr.f32.gmra.mrb[0].mxu0 %v2873
    %v3028 = vpop.f32.mrb[0].mxu0
    %v3029 = vadd.f32 0.0, %v3028
    %v3030 = vpop.f32.mrb[0].mxu0
    %v3031 = vadd.f32 0.0, %v3030
    %3032 = vmatprep.mubr.f32.mxu0 %v2880
    %3033 = vmatmul.mubr.f32.gmra.mrb[0].mxu0 %v2878
    %v3034 = vpop.f32.mrb[0].mxu0
    %v3035 = vadd.f32 0.0, %v3034
    %v3036 = vpop.f32.mrb[0].mxu0
    %v3037 = vadd.f32 0.0, %v3036
    %3038 = vdwg.mxu0
    %v3039 = vadd.f32 %v2734, %v2952
    %v3040 = vadd.f32 %v2735, %v2954
    %v3041 = vadd.f32 %v2736, %v3029
    %v3042 = vadd.f32 %v2737, %v3031
    %v3043 = vadd.f32 %v2738, %v2958
    %v3044 = vadd.f32 %v2739, %v2960
    %v3045 = vadd.f32 %v2740, %v3035
    %v3046 = vadd.f32 %v2741, %v3037
    %s3047 = scalar_lea.vmem [#allocation10], 4096
    %v3048 = vld [vmem:[%s3047] sm:$0xff]
    %v3049 = vld [vmem:[%s3047 + $0x8] sm:$0xff]
    %v3050 = vld [vmem:[%s3047 + $0x10] sm:$0xff]
    %v3051 = vld [vmem:[%s3047 + $0x18] sm:$0xff]
    %v3052 = vld [vmem:[%s3047 + $0x20] sm:$0xff]
    %v3053 = vld [vmem:[%s3047 + $0x28] sm:$0xff]
    %v3054 = vld [vmem:[%s3047 + $0x30] sm:$0xff]
    %v3055 = vld [vmem:[%s3047 + $0x38] sm:$0xff]
    %v3056 = vld [vmem:[%s3047 + $0x40] sm:$0xff]
    %v3057 = vld [vmem:[%s3047 + $0x48] sm:$0xff]
    %v3058 = vld [vmem:[%s3047 + $0x50] sm:$0xff]
    %v3059 = vld [vmem:[%s3047 + $0x58] sm:$0xff]
    %v3060 = vld [vmem:[%s3047 + $0x60] sm:$0xff]
    %v3061 = vld [vmem:[%s3047 + $0x68] sm:$0xff]
    %v3062 = vld [vmem:[%s3047 + $0x70] sm:$0xff]
    %v3063 = vld [vmem:[%s3047 + $0x78] sm:$0xff]
    %v3064 = vld [vmem:[%s3047 + $0x80] sm:$0xff]
    %v3065 = vld [vmem:[%s3047 + $0x88] sm:$0xff]
    %v3066 = vld [vmem:[%s3047 + $0x90] sm:$0xff]
    %v3067 = vld [vmem:[%s3047 + $0x98] sm:$0xff]
    %v3068 = vld [vmem:[%s3047 + $0xa0] sm:$0xff]
    %v3069 = vld [vmem:[%s3047 + $0xa8] sm:$0xff]
    %v3070 = vld [vmem:[%s3047 + $0xb0] sm:$0xff]
    %v3071 = vld [vmem:[%s3047 + $0xb8] sm:$0xff]
    %v3072 = vld [vmem:[%s3047 + $0xc0] sm:$0xff]
    %v3073 = vld [vmem:[%s3047 + $0xc8] sm:$0xff]
    %v3074 = vld [vmem:[%s3047 + $0xd0] sm:$0xff]
    %v3075 = vld [vmem:[%s3047 + $0xd8] sm:$0xff]
    %v3076 = vld [vmem:[%s3047 + $0xe0] sm:$0xff]
    %v3077 = vld [vmem:[%s3047 + $0xe8] sm:$0xff]
    %v3078 = vld [vmem:[%s3047 + $0xf0] sm:$0xff]
    %v3079 = vld [vmem:[%s3047 + $0xf8] sm:$0xff]
    %v3080 = vld [vmem:[%s3047 + $0x100] sm:$0xff]
    %v3081 = vld [vmem:[%s3047 + $0x108] sm:$0xff]
    %v3082 = vld [vmem:[%s3047 + $0x110] sm:$0xff]
    %v3083 = vld [vmem:[%s3047 + $0x118] sm:$0xff]
    %v3084 = vld [vmem:[%s3047 + $0x120] sm:$0xff]
    %v3085 = vld [vmem:[%s3047 + $0x128] sm:$0xff]
    %v3086 = vld [vmem:[%s3047 + $0x130] sm:$0xff]
    %v3087 = vld [vmem:[%s3047 + $0x138] sm:$0xff]
    %v3088 = vld [vmem:[%s3047 + $0x140] sm:$0xff]
    %v3089 = vld [vmem:[%s3047 + $0x148] sm:$0xff]
    %v3090 = vld [vmem:[%s3047 + $0x150] sm:$0xff]
    %v3091 = vld [vmem:[%s3047 + $0x158] sm:$0xff]
    %v3092 = vld [vmem:[%s3047 + $0x160] sm:$0xff]
    %v3093 = vld [vmem:[%s3047 + $0x168] sm:$0xff]
    %v3094 = vld [vmem:[%s3047 + $0x170] sm:$0xff]
    %v3095 = vld [vmem:[%s3047 + $0x178] sm:$0xff]
    %v3096 = vld [vmem:[%s3047 + $0x180] sm:$0xff]
    %v3097 = vld [vmem:[%s3047 + $0x188] sm:$0xff]
    %v3098 = vld [vmem:[%s3047 + $0x190] sm:$0xff]
    %v3099 = vld [vmem:[%s3047 + $0x198] sm:$0xff]
    %v3100 = vld [vmem:[%s3047 + $0x1a0] sm:$0xff]
    %v3101 = vld [vmem:[%s3047 + $0x1a8] sm:$0xff]
    %v3102 = vld [vmem:[%s3047 + $0x1b0] sm:$0xff]
    %v3103 = vld [vmem:[%s3047 + $0x1b8] sm:$0xff]
    %v3104 = vld [vmem:[%s3047 + $0x1c0] sm:$0xff]
    %v3105 = vld [vmem:[%s3047 + $0x1c8] sm:$0xff]
    %v3106 = vld [vmem:[%s3047 + $0x1d0] sm:$0xff]
    %v3107 = vld [vmem:[%s3047 + $0x1d8] sm:$0xff]
    %v3108 = vld [vmem:[%s3047 + $0x1e0] sm:$0xff]
    %v3109 = vld [vmem:[%s3047 + $0x1e8] sm:$0xff]
    %v3110 = vld [vmem:[%s3047 + $0x1f0] sm:$0xff]
    %v3111 = vld [vmem:[%s3047 + $0x1f8] sm:$0xff]
    %v3112 = vld [vmem:[%s3047 + $0x200] sm:$0xff]
    %v3113 = vld [vmem:[%s3047 + $0x208] sm:$0xff]
    %v3114 = vld [vmem:[%s3047 + $0x210] sm:$0xff]
    %v3115 = vld [vmem:[%s3047 + $0x218] sm:$0xff]
    %v3116 = vld [vmem:[%s3047 + $0x220] sm:$0xff]
    %v3117 = vld [vmem:[%s3047 + $0x228] sm:$0xff]
    %v3118 = vld [vmem:[%s3047 + $0x230] sm:$0xff]
    %v3119 = vld [vmem:[%s3047 + $0x238] sm:$0xff]
    %v3120 = vld [vmem:[%s3047 + $0x240] sm:$0xff]
    %v3121 = vld [vmem:[%s3047 + $0x248] sm:$0xff]
    %v3122 = vld [vmem:[%s3047 + $0x250] sm:$0xff]
    %v3123 = vld [vmem:[%s3047 + $0x258] sm:$0xff]
    %v3124 = vld [vmem:[%s3047 + $0x260] sm:$0xff]
    %v3125 = vld [vmem:[%s3047 + $0x268] sm:$0xff]
    %v3126 = vld [vmem:[%s3047 + $0x270] sm:$0xff]
    %v3127 = vld [vmem:[%s3047 + $0x278] sm:$0xff]
    %v3128 = vld [vmem:[%s3047 + $0x280] sm:$0xff]
    %v3129 = vld [vmem:[%s3047 + $0x288] sm:$0xff]
    %v3130 = vld [vmem:[%s3047 + $0x290] sm:$0xff]
    %v3131 = vld [vmem:[%s3047 + $0x298] sm:$0xff]
    %v3132 = vld [vmem:[%s3047 + $0x2a0] sm:$0xff]
    %v3133 = vld [vmem:[%s3047 + $0x2a8] sm:$0xff]
    %v3134 = vld [vmem:[%s3047 + $0x2b0] sm:$0xff]
    %v3135 = vld [vmem:[%s3047 + $0x2b8] sm:$0xff]
    %v3136 = vld [vmem:[%s3047 + $0x2c0] sm:$0xff]
    %v3137 = vld [vmem:[%s3047 + $0x2c8] sm:$0xff]
    %v3138 = vld [vmem:[%s3047 + $0x2d0] sm:$0xff]
    %v3139 = vld [vmem:[%s3047 + $0x2d8] sm:$0xff]
    %v3140 = vld [vmem:[%s3047 + $0x2e0] sm:$0xff]
    %v3141 = vld [vmem:[%s3047 + $0x2e8] sm:$0xff]
    %v3142 = vld [vmem:[%s3047 + $0x2f0] sm:$0xff]
    %v3143 = vld [vmem:[%s3047 + $0x2f8] sm:$0xff]
    %v3144 = vld [vmem:[%s3047 + $0x300] sm:$0xff]
    %v3145 = vld [vmem:[%s3047 + $0x308] sm:$0xff]
    %v3146 = vld [vmem:[%s3047 + $0x310] sm:$0xff]
    %v3147 = vld [vmem:[%s3047 + $0x318] sm:$0xff]
    %v3148 = vld [vmem:[%s3047 + $0x320] sm:$0xff]
    %v3149 = vld [vmem:[%s3047 + $0x328] sm:$0xff]
    %v3150 = vld [vmem:[%s3047 + $0x330] sm:$0xff]
    %v3151 = vld [vmem:[%s3047 + $0x338] sm:$0xff]
    %v3152 = vld [vmem:[%s3047 + $0x340] sm:$0xff]
    %v3153 = vld [vmem:[%s3047 + $0x348] sm:$0xff]
    %v3154 = vld [vmem:[%s3047 + $0x350] sm:$0xff]
    %v3155 = vld [vmem:[%s3047 + $0x358] sm:$0xff]
    %v3156 = vld [vmem:[%s3047 + $0x360] sm:$0xff]
    %v3157 = vld [vmem:[%s3047 + $0x368] sm:$0xff]
    %v3158 = vld [vmem:[%s3047 + $0x370] sm:$0xff]
    %v3159 = vld [vmem:[%s3047 + $0x378] sm:$0xff]
    %v3160 = vld [vmem:[%s3047 + $0x380] sm:$0xff]
    %v3161 = vld [vmem:[%s3047 + $0x388] sm:$0xff]
    %v3162 = vld [vmem:[%s3047 + $0x390] sm:$0xff]
    %v3163 = vld [vmem:[%s3047 + $0x398] sm:$0xff]
    %v3164 = vld [vmem:[%s3047 + $0x3a0] sm:$0xff]
    %v3165 = vld [vmem:[%s3047 + $0x3a8] sm:$0xff]
    %v3166 = vld [vmem:[%s3047 + $0x3b0] sm:$0xff]
    %v3167 = vld [vmem:[%s3047 + $0x3b8] sm:$0xff]
    %v3168 = vld [vmem:[%s3047 + $0x3c0] sm:$0xff]
    %v3169 = vld [vmem:[%s3047 + $0x3c8] sm:$0xff]
    %v3170 = vld [vmem:[%s3047 + $0x3d0] sm:$0xff]
    %v3171 = vld [vmem:[%s3047 + $0x3d8] sm:$0xff]
    %v3172 = vld [vmem:[%s3047 + $0x3e0] sm:$0xff]
    %v3173 = vld [vmem:[%s3047 + $0x3e8] sm:$0xff]
    %v3174 = vld [vmem:[%s3047 + $0x3f0] sm:$0xff]
    %v3175 = vld [vmem:[%s3047 + $0x3f8] sm:$0xff]
    %3176 = vmatprep.subr.mxu0 %v3049
    %3177 = vmatpush1.msra.mxu0 %v3048
    %3178 = vmatprep.subr.mxu0 %v3053
    %3179 = vmatpush1.msra.mxu0 %v3052
    %3180 = vmatprep.subr.mxu0 %v3057
    %3181 = vmatpush1.msra.mxu0 %v3056
    %3182 = vmatprep.subr.mxu0 %v3061
    %3183 = vmatpush1.msra.mxu0 %v3060
    %3184 = vmatprep.subr.mxu0 %v3065
    %3185 = vmatpush1.msra.mxu0 %v3064
    %3186 = vmatprep.subr.mxu0 %v3069
    %3187 = vmatpush1.msra.mxu0 %v3068
    %3188 = vmatprep.subr.mxu0 %v3073
    %3189 = vmatpush1.msra.mxu0 %v3072
    %3190 = vmatprep.subr.mxu0 %v3077
    %3191 = vmatpush1.msra.mxu0 %v3076
    %3192 = vmatprep.subr.mxu0 %v3081
    %3193 = vmatpush1.msra.mxu0 %v3080
    %3194 = vmatprep.subr.mxu0 %v3085
    %3195 = vmatpush1.msra.mxu0 %v3084
    %3196 = vmatprep.subr.mxu0 %v3089
    %3197 = vmatpush1.msra.mxu0 %v3088
    %3198 = vmatprep.subr.mxu0 %v3093
    %3199 = vmatpush1.msra.mxu0 %v3092
    %3200 = vmatprep.subr.mxu0 %v3097
    %3201 = vmatpush1.msra.mxu0 %v3096
    %3202 = vmatprep.subr.mxu0 %v3101
    %3203 = vmatpush1.msra.mxu0 %v3100
    %3204 = vmatprep.subr.mxu0 %v3105
    %3205 = vmatpush1.msra.mxu0 %v3104
    %3206 = vmatprep.subr.mxu0 %v3109
    %3207 = vmatpush1.msra.mxu0 %v3108
    %3208 = vmatprep.subr.mxu0 %v3113
    %3209 = vmatpush1.msra.mxu0 %v3112
    %3210 = vmatprep.subr.mxu0 %v3117
    %3211 = vmatpush1.msra.mxu0 %v3116
    %3212 = vmatprep.subr.mxu0 %v3121
    %3213 = vmatpush1.msra.mxu0 %v3120
    %3214 = vmatprep.subr.mxu0 %v3125
    %3215 = vmatpush1.msra.mxu0 %v3124
    %3216 = vmatprep.subr.mxu0 %v3129
    %3217 = vmatpush1.msra.mxu0 %v3128
    %3218 = vmatprep.subr.mxu0 %v3133
    %3219 = vmatpush1.msra.mxu0 %v3132
    %3220 = vmatprep.subr.mxu0 %v3137
    %3221 = vmatpush1.msra.mxu0 %v3136
    %3222 = vmatprep.subr.mxu0 %v3141
    %3223 = vmatpush1.msra.mxu0 %v3140
    %3224 = vmatprep.subr.mxu0 %v3145
    %3225 = vmatpush1.msra.mxu0 %v3144
    %3226 = vmatprep.subr.mxu0 %v3149
    %3227 = vmatpush1.msra.mxu0 %v3148
    %3228 = vmatprep.subr.mxu0 %v3153
    %3229 = vmatpush1.msra.mxu0 %v3152
    %3230 = vmatprep.subr.mxu0 %v3157
    %3231 = vmatpush1.msra.mxu0 %v3156
    %3232 = vmatprep.subr.mxu0 %v3161
    %3233 = vmatpush1.msra.mxu0 %v3160
    %3234 = vmatprep.subr.mxu0 %v3165
    %3235 = vmatpush1.msra.mxu0 %v3164
    %3236 = vmatprep.subr.mxu0 %v3169
    %3237 = vmatpush1.msra.mxu0 %v3168
    %3238 = vmatprep.subr.mxu0 %v3173
    %3239 = vmatpush1.msra.mxu0 %v3172
    %3240 = vmatprep.mubr.f32.mxu0 %v1807
    %3241 = vmatmul.mubr.f32.gmra.mrb[0].mxu0 %v1806
    %v3242 = vpop.f32.mrb[0].mxu0
    %v3243 = vadd.f32 0.0, %v3242
    %v3244 = vpop.f32.mrb[0].mxu0
    %v3245 = vadd.f32 0.0, %v3244
    %3246 = vmatprep.mubr.f32.mxu0 %v1809
    %3247 = vmatmul.mubr.f32.gmra.mrb[0].mxu0 %v1808
    %v3248 = vpop.f32.mrb[0].mxu0
    %v3249 = vadd.f32 0.0, %v3248
    %v3250 = vpop.f32.mrb[0].mxu0
    %v3251 = vadd.f32 0.0, %v3250
    %3252 = vdwg.mxu0
    %3253 = vmatprep.subr.mxu0 %v3051
    %3254 = vmatpush1.msra.mxu0 %v3050
    %3255 = vmatprep.subr.mxu0 %v3055
    %3256 = vmatpush1.msra.mxu0 %v3054
    %3257 = vmatprep.subr.mxu0 %v3059
    %3258 = vmatpush1.msra.mxu0 %v3058
    %3259 = vmatprep.subr.mxu0 %v3063
    %3260 = vmatpush1.msra.mxu0 %v3062
    %3261 = vmatprep.subr.mxu0 %v3067
    %3262 = vmatpush1.msra.mxu0 %v3066
    %3263 = vmatprep.subr.mxu0 %v3071
    %3264 = vmatpush1.msra.mxu0 %v3070
    %3265 = vmatprep.subr.mxu0 %v3075
    %3266 = vmatpush1.msra.mxu0 %v3074
    %3267 = vmatprep.subr.mxu0 %v3079
    %3268 = vmatpush1.msra.mxu0 %v3078
    %3269 = vmatprep.subr.mxu0 %v3083
    %3270 = vmatpush1.msra.mxu0 %v3082
    %3271 = vmatprep.subr.mxu0 %v3087
    %3272 = vmatpush1.msra.mxu0 %v3086
    %3273 = vmatprep.subr.mxu0 %v3091
    %3274 = vmatpush1.msra.mxu0 %v3090
    %3275 = vmatprep.subr.mxu0 %v3095
    %3276 = vmatpush1.msra.mxu0 %v3094
    %3277 = vmatprep.subr.mxu0 %v3099
    %3278 = vmatpush1.msra.mxu0 %v3098
    %3279 = vmatprep.subr.mxu0 %v3103
    %3280 = vmatpush1.msra.mxu0 %v3102
    %3281 = vmatprep.subr.mxu0 %v3107
    %3282 = vmatpush1.msra.mxu0 %v3106
    %3283 = vmatprep.subr.mxu0 %v3111
    %3284 = vmatpush1.msra.mxu0 %v3110
    %3285 = vmatprep.subr.mxu0 %v3115
    %3286 = vmatpush1.msra.mxu0 %v3114
    %3287 = vmatprep.subr.mxu0 %v3119
    %3288 = vmatpush1.msra.mxu0 %v3118
    %3289 = vmatprep.subr.mxu0 %v3123
    %3290 = vmatpush1.msra.mxu0 %v3122
    %3291 = vmatprep.subr.mxu0 %v3127
    %3292 = vmatpush1.msra.mxu0 %v3126
    %3293 = vmatprep.subr.mxu0 %v3131
    %3294 = vmatpush1.msra.mxu0 %v3130
    %3295 = vmatprep.subr.mxu0 %v3135
    %3296 = vmatpush1.msra.mxu0 %v3134
    %3297 = vmatprep.subr.mxu0 %v3139
    %3298 = vmatpush1.msra.mxu0 %v3138
    %3299 = vmatprep.subr.mxu0 %v3143
    %3300 = vmatpush1.msra.mxu0 %v3142
    %3301 = vmatprep.subr.mxu0 %v3147
    %3302 = vmatpush1.msra.mxu0 %v3146
    %3303 = vmatprep.subr.mxu0 %v3151
    %3304 = vmatpush1.msra.mxu0 %v3150
    %3305 = vmatprep.subr.mxu0 %v3155
    %3306 = vmatpush1.msra.mxu0 %v3154
    %3307 = vmatprep.subr.mxu0 %v3159
    %3308 = vmatpush1.msra.mxu0 %v3158
    %3309 = vmatprep.subr.mxu0 %v3163
    %3310 = vmatpush1.msra.mxu0 %v3162
    %3311 = vmatprep.subr.mxu0 %v3167
    %3312 = vmatpush1.msra.mxu0 %v3166
    %3313 = vmatprep.subr.mxu0 %v3171
    %3314 = vmatpush1.msra.mxu0 %v3170
    %3315 = vmatprep.subr.mxu0 %v3175
    %3316 = vmatpush1.msra.mxu0 %v3174
    %3317 = vmatprep.mubr.f32.mxu0 %v1807
    %3318 = vmatmul.mubr.f32.gmra.mrb[0].mxu0 %v1806
    %v3319 = vpop.f32.mrb[0].mxu0
    %v3320 = vadd.f32 0.0, %v3319
    %v3321 = vpop.f32.mrb[0].mxu0
    %v3322 = vadd.f32 0.0, %v3321
    %3323 = vmatprep.mubr.f32.mxu0 %v1809
    %3324 = vmatmul.mubr.f32.gmra.mrb[0].mxu0 %v1808
    %v3325 = vpop.f32.mrb[0].mxu0
    %v3326 = vadd.f32 0.0, %v3325
    %v3327 = vpop.f32.mrb[0].mxu0
    %v3328 = vadd.f32 0.0, %v3327
    %3329 = vdwg.mxu0
    %v3330 = vadd.f32 %v3039, %v3243
    %v3331 = vadd.f32 %v3040, %v3245
    %v3332 = vadd.f32 %v3041, %v3320
    %v3333 = vadd.f32 %v3042, %v3322
    %v3334 = vadd.f32 %v3043, %v3249
    %v3335 = vadd.f32 %v3044, %v3251
    %v3336 = vadd.f32 %v3045, %v3326
    %v3337 = vadd.f32 %v3046, %v3328
    %v3338 = vmax.f32 %v3330, %v3332
    %v3339 = vmax.f32 %v3331, %v3333
    %v3340 = vmax.f32 %v3334, %v3336
    %v3341 = vmax.f32 %v3335, %v3337
    %v3342 = vmax.f32 %v3338, 0.0
    %v3343 = vmax.f32 %v3339, 0.0
    %v3344 = vmax.f32 %v3340, 0.0
    %v3345 = vmax.f32 %v3341, 0.0
    %v3346 = vld [vmem:[#allocation13] sm:$0xff]
    %vm3347 = vcmask 130048
    %v3349 = vsel %vm3347, %v3346, 0
    %3351 = vmatprep.subr.mxu0 %v3343
    %3352 = vmatpush1.msra.mxu0 %v3342
    %3353 = vmatprep.subr.mxu0 %v3345
    %3354 = vmatpush1.msra.mxu0 %v3344
    %3355 = vmatprep.subr.mxu0 0.0
    %3356 = vmatpush1.msra.mxu0 0.0
    %3357 = vmatprep.subr.mxu0 0.0
    %3358 = vmatpush1.msra.mxu0 0.0
    %3359 = vmatprep.subr.mxu0 0.0
    %3360 = vmatpush1.msra.mxu0 0.0
    %3361 = vmatprep.subr.mxu0 0.0
    %3362 = vmatpush1.msra.mxu0 0.0
    %3363 = vmatprep.subr.mxu0 0.0
    %3364 = vmatpush1.msra.mxu0 0.0
    %3365 = vmatprep.subr.mxu0 0.0
    %3366 = vmatpush1.msra.mxu0 0.0
    %3367 = vmatprep.subr.mxu0 0.0
    %3368 = vmatpush1.msra.mxu0 0.0
    %3369 = vmatprep.subr.mxu0 0.0
    %3370 = vmatpush1.msra.mxu0 0.0
    %3371 = vmatprep.subr.mxu0 0.0
    %3372 = vmatpush1.msra.mxu0 0.0
    %3373 = vmatprep.subr.mxu0 0.0
    %3374 = vmatpush1.msra.mxu0 0.0
    %3375 = vmatprep.subr.mxu0 0.0
    %3376 = vmatpush1.msra.mxu0 0.0
    %3377 = vmatprep.subr.mxu0 0.0
    %3378 = vmatpush1.msra.mxu0 0.0
    %3379 = vmatprep.subr.mxu0 0.0
    %3380 = vmatpush1.msra.mxu0 0.0
    %3381 = vmatprep.subr.mxu0 0.0
    %3382 = vmatpush1.msra.mxu0 0.0
    %3383 = vmatprep.subr.mxu0 0.0
    %3384 = vmatpush1.msra.mxu0 0.0
    %3385 = vmatprep.subr.mxu0 0.0
    %3386 = vmatpush1.msra.mxu0 0.0
    %3387 = vmatprep.subr.mxu0 0.0
    %3388 = vmatpush1.msra.mxu0 0.0
    %3389 = vmatprep.subr.mxu0 0.0
    %3390 = vmatpush1.msra.mxu0 0.0
    %3391 = vmatprep.subr.mxu0 0.0
    %3392 = vmatpush1.msra.mxu0 0.0
    %3393 = vmatprep.subr.mxu0 0.0
    %3394 = vmatpush1.msra.mxu0 0.0
    %3395 = vmatprep.subr.mxu0 0.0
    %3396 = vmatpush1.msra.mxu0 0.0
    %3397 = vmatprep.subr.mxu0 0.0
    %3398 = vmatpush1.msra.mxu0 0.0
    %3399 = vmatprep.subr.mxu0 0.0
    %3400 = vmatpush1.msra.mxu0 0.0
    %3401 = vmatprep.subr.mxu0 0.0
    %3402 = vmatpush1.msra.mxu0 0.0
    %3403 = vmatprep.subr.mxu0 0.0
    %3404 = vmatpush1.msra.mxu0 0.0
    %3405 = vmatprep.subr.mxu0 0.0
    %3406 = vmatpush1.msra.mxu0 0.0
    %3407 = vmatprep.subr.mxu0 0.0
    %3408 = vmatpush1.msra.mxu0 0.0
    %3409 = vmatprep.subr.mxu0 0.0
    %3410 = vmatpush1.msra.mxu0 0.0
    %3411 = vmatprep.subr.mxu0 0.0
    %3412 = vmatpush1.msra.mxu0 0.0
    %3413 = vmatprep.subr.mxu0 0.0
    %3414 = vmatpush1.msra.mxu0 0.0
    %3415 = vmatprep.mubr.f32.mxu0 0.0
    %3416 = vmatmul.mubr.f32.gmra.mrb[0].mxu0 %v3349
    %v3417 = vpop.f32.mrb[0].mxu0
    %v3418 = vadd.f32 0.0, %v3417
    %v3419 = vpop.f32.mrb[0].mxu0
    %v3420 = vadd.f32 0.0, %v3419
    %3421 = vdwg.mxu0
    %v3422 = vld [vmem:[#allocation14] sm:$0xff]
    %v3424 = vsel %vm3347, %v3422, 0
    %3426 = vmatprep.subr.mxu0 %v3343
    %3427 = vmatpush1.msra.mxu0 %v3342
    %3428 = vmatprep.subr.mxu0 %v3345
    %3429 = vmatpush1.msra.mxu0 %v3344
    %3430 = vmatprep.subr.mxu0 0.0
    %3431 = vmatpush1.msra.mxu0 0.0
    %3432 = vmatprep.subr.mxu0 0.0
    %3433 = vmatpush1.msra.mxu0 0.0
    %3434 = vmatprep.subr.mxu0 0.0
    %3435 = vmatpush1.msra.mxu0 0.0
    %3436 = vmatprep.subr.mxu0 0.0
    %3437 = vmatpush1.msra.mxu0 0.0
    %3438 = vmatprep.subr.mxu0 0.0
    %3439 = vmatpush1.msra.mxu0 0.0
    %3440 = vmatprep.subr.mxu0 0.0
    %3441 = vmatpush1.msra.mxu0 0.0
    %3442 = vmatprep.subr.mxu0 0.0
    %3443 = vmatpush1.msra.mxu0 0.0
    %3444 = vmatprep.subr.mxu0 0.0
    %3445 = vmatpush1.msra.mxu0 0.0
    %3446 = vmatprep.subr.mxu0 0.0
    %3447 = vmatpush1.msra.mxu0 0.0
    %3448 = vmatprep.subr.mxu0 0.0
    %3449 = vmatpush1.msra.mxu0 0.0
    %3450 = vmatprep.subr.mxu0 0.0
    %3451 = vmatpush1.msra.mxu0 0.0
    %3452 = vmatprep.subr.mxu0 0.0
    %3453 = vmatpush1.msra.mxu0 0.0
    %3454 = vmatprep.subr.mxu0 0.0
    %3455 = vmatpush1.msra.mxu0 0.0
    %3456 = vmatprep.subr.mxu0 0.0
    %3457 = vmatpush1.msra.mxu0 0.0
    %3458 = vmatprep.subr.mxu0 0.0
    %3459 = vmatpush1.msra.mxu0 0.0
    %3460 = vmatprep.subr.mxu0 0.0
    %3461 = vmatpush1.msra.mxu0 0.0
    %3462 = vmatprep.subr.mxu0 0.0
    %3463 = vmatpush1.msra.mxu0 0.0
    %3464 = vmatprep.subr.mxu0 0.0
    %3465 = vmatpush1.msra.mxu0 0.0
    %3466 = vmatprep.subr.mxu0 0.0
    %3467 = vmatpush1.msra.mxu0 0.0
    %3468 = vmatprep.subr.mxu0 0.0
    %3469 = vmatpush1.msra.mxu0 0.0
    %3470 = vmatprep.subr.mxu0 0.0
    %3471 = vmatpush1.msra.mxu0 0.0
    %3472 = vmatprep.subr.mxu0 0.0
    %3473 = vmatpush1.msra.mxu0 0.0
    %3474 = vmatprep.subr.mxu0 0.0
    %3475 = vmatpush1.msra.mxu0 0.0
    %3476 = vmatprep.subr.mxu0 0.0
    %3477 = vmatpush1.msra.mxu0 0.0
    %3478 = vmatprep.subr.mxu0 0.0
    %3479 = vmatpush1.msra.mxu0 0.0
    %3480 = vmatprep.subr.mxu0 0.0
    %3481 = vmatpush1.msra.mxu0 0.0
    %3482 = vmatprep.subr.mxu0 0.0
    %3483 = vmatpush1.msra.mxu0 0.0
    %3484 = vmatprep.subr.mxu0 0.0
    %3485 = vmatpush1.msra.mxu0 0.0
    %3486 = vmatprep.subr.mxu0 0.0
    %3487 = vmatpush1.msra.mxu0 0.0
    %3488 = vmatprep.subr.mxu0 0.0
    %3489 = vmatpush1.msra.mxu0 0.0
    %3490 = vmatprep.mubr.f32.mxu0 0.0
    %3491 = vmatmul.mubr.f32.gmra.mrb[0].mxu0 %v3424
    %v3492 = vpop.f32.mrb[0].mxu0
    %v3493 = vadd.f32 0.0, %v3492
    %v3494 = vpop.f32.mrb[0].mxu0
    %v3495 = vadd.f32 0.0, %v3494
    %3496 = vdwg.mxu0
    %v3497 = vmax.f32 %v3418, %v3493
    %v3498 = vmax.f32 %v3420, %v3495
    %v3499 = vld [vmem:[#allocation17] sm:$0xf]
    %v3501 = vlaneseq
    %v3502 = vshrl.u32 %v3501, 7
    %v3503 = vsub.s32 0, %v3502
    %v3504 = vrot.slane %v3499, %v3503
    %v3505 = vlaneseq
    %v3506 = vshrl.u32 %v3505, 7
    %v3507 = vsub.s32 1, %v3506
    %v3508 = vrot.slane %v3499, %v3507
    %v3509 = vlaneseq
    %v3510 = vshrl.u32 %v3509, 7
    %v3511 = vsub.s32 2, %v3510
    %v3512 = vrot.slane %v3499, %v3511
    %v3513 = vlaneseq
    %v3514 = vshrl.u32 %v3513, 7
    %v3515 = vsub.s32 3, %v3514
    %v3516 = vrot.slane %v3499, %v3515
    %v3521 = vadd.f32 %v3504, 0.0
    %v3522 = vadd.f32 %v3508, 0.0
    %v3523 = vadd.f32 %v3512, 0.0
    %v3524 = vadd.f32 %v3516, 0.0
    %v3525 = vld [vmem:[#allocation16] sm:$0xff]
    %v3526 = vld [vmem:[#allocation16 + $0x8] sm:$0xff]
    %v3527 = vld [vmem:[#allocation16 + $0x10] sm:$0xff]
    %v3528 = vld [vmem:[#allocation16 + $0x18] sm:$0xff]
    %v3529 = vld [vmem:[#allocation16 + $0x20] sm:$0xff]
    %v3530 = vld [vmem:[#allocation16 + $0x28] sm:$0xff]
    %v3531 = vld [vmem:[#allocation16 + $0x30] sm:$0xff]
    %v3532 = vld [vmem:[#allocation16 + $0x38] sm:$0xff]
    %v3533 = vld [vmem:[#allocation16 + $0x40] sm:$0xff]
    %v3534 = vld [vmem:[#allocation16 + $0x48] sm:$0xff]
    %v3535 = vld [vmem:[#allocation16 + $0x50] sm:$0xff]
    %v3536 = vld [vmem:[#allocation16 + $0x58] sm:$0xff]
    %v3537 = vld [vmem:[#allocation16 + $0x60] sm:$0xff]
    %v3538 = vld [vmem:[#allocation16 + $0x68] sm:$0xff]
    %v3539 = vld [vmem:[#allocation16 + $0x70] sm:$0xff]
    %v3540 = vld [vmem:[#allocation16 + $0x78] sm:$0xff]
    %v3541 = vld [vmem:[#allocation16 + $0x80] sm:$0xff]
    %v3542 = vld [vmem:[#allocation16 + $0x88] sm:$0xff]
    %v3543 = vld [vmem:[#allocation16 + $0x90] sm:$0xff]
    %v3544 = vld [vmem:[#allocation16 + $0x98] sm:$0xff]
    %v3545 = vld [vmem:[#allocation16 + $0xa0] sm:$0xff]
    %v3546 = vld [vmem:[#allocation16 + $0xa8] sm:$0xff]
    %v3547 = vld [vmem:[#allocation16 + $0xb0] sm:$0xff]
    %v3548 = vld [vmem:[#allocation16 + $0xb8] sm:$0xff]
    %v3549 = vld [vmem:[#allocation16 + $0xc0] sm:$0xff]
    %v3550 = vld [vmem:[#allocation16 + $0xc8] sm:$0xff]
    %v3551 = vld [vmem:[#allocation16 + $0xd0] sm:$0xff]
    %v3552 = vld [vmem:[#allocation16 + $0xd8] sm:$0xff]
    %v3553 = vld [vmem:[#allocation16 + $0xe0] sm:$0xff]
    %v3554 = vld [vmem:[#allocation16 + $0xe8] sm:$0xff]
    %v3555 = vld [vmem:[#allocation16 + $0xf0] sm:$0xff]
    %v3556 = vld [vmem:[#allocation16 + $0xf8] sm:$0xff]
    %v3557 = vld [vmem:[#allocation16 + $0x100] sm:$0xff]
    %v3558 = vld [vmem:[#allocation16 + $0x108] sm:$0xff]
    %v3559 = vld [vmem:[#allocation16 + $0x110] sm:$0xff]
    %v3560 = vld [vmem:[#allocation16 + $0x118] sm:$0xff]
    %v3561 = vld [vmem:[#allocation16 + $0x120] sm:$0xff]
    %v3562 = vld [vmem:[#allocation16 + $0x128] sm:$0xff]
    %v3563 = vld [vmem:[#allocation16 + $0x130] sm:$0xff]
    %v3564 = vld [vmem:[#allocation16 + $0x138] sm:$0xff]
    %v3565 = vld [vmem:[#allocation16 + $0x140] sm:$0xff]
    %v3566 = vld [vmem:[#allocation16 + $0x148] sm:$0xff]
    %v3567 = vld [vmem:[#allocation16 + $0x150] sm:$0xff]
    %v3568 = vld [vmem:[#allocation16 + $0x158] sm:$0xff]
    %v3569 = vld [vmem:[#allocation16 + $0x160] sm:$0xff]
    %v3570 = vld [vmem:[#allocation16 + $0x168] sm:$0xff]
    %v3571 = vld [vmem:[#allocation16 + $0x170] sm:$0xff]
    %v3572 = vld [vmem:[#allocation16 + $0x178] sm:$0xff]
    %v3573 = vld [vmem:[#allocation16 + $0x180] sm:$0xff]
    %v3574 = vld [vmem:[#allocation16 + $0x188] sm:$0xff]
    %v3575 = vld [vmem:[#allocation16 + $0x190] sm:$0xff]
    %v3576 = vld [vmem:[#allocation16 + $0x198] sm:$0xff]
    %v3577 = vld [vmem:[#allocation16 + $0x1a0] sm:$0xff]
    %v3578 = vld [vmem:[#allocation16 + $0x1a8] sm:$0xff]
    %v3579 = vld [vmem:[#allocation16 + $0x1b0] sm:$0xff]
    %v3580 = vld [vmem:[#allocation16 + $0x1b8] sm:$0xff]
    %v3581 = vld [vmem:[#allocation16 + $0x1c0] sm:$0xff]
    %v3582 = vld [vmem:[#allocation16 + $0x1c8] sm:$0xff]
    %v3583 = vld [vmem:[#allocation16 + $0x1d0] sm:$0xff]
    %v3584 = vld [vmem:[#allocation16 + $0x1d8] sm:$0xff]
    %v3585 = vld [vmem:[#allocation16 + $0x1e0] sm:$0xff]
    %v3586 = vld [vmem:[#allocation16 + $0x1e8] sm:$0xff]
    %v3587 = vld [vmem:[#allocation16 + $0x1f0] sm:$0xff]
    %v3588 = vld [vmem:[#allocation16 + $0x1f8] sm:$0xff]
    %v3589 = vld [vmem:[#allocation16 + $0x200] sm:$0xff]
    %v3590 = vld [vmem:[#allocation16 + $0x208] sm:$0xff]
    %v3591 = vld [vmem:[#allocation16 + $0x210] sm:$0xff]
    %v3592 = vld [vmem:[#allocation16 + $0x218] sm:$0xff]
    %v3593 = vld [vmem:[#allocation16 + $0x220] sm:$0xff]
    %v3594 = vld [vmem:[#allocation16 + $0x228] sm:$0xff]
    %v3595 = vld [vmem:[#allocation16 + $0x230] sm:$0xff]
    %v3596 = vld [vmem:[#allocation16 + $0x238] sm:$0xff]
    %v3597 = vld [vmem:[#allocation16 + $0x240] sm:$0xff]
    %v3598 = vld [vmem:[#allocation16 + $0x248] sm:$0xff]
    %v3599 = vld [vmem:[#allocation16 + $0x250] sm:$0xff]
    %v3600 = vld [vmem:[#allocation16 + $0x258] sm:$0xff]
    %v3601 = vld [vmem:[#allocation16 + $0x260] sm:$0xff]
    %v3602 = vld [vmem:[#allocation16 + $0x268] sm:$0xff]
    %v3603 = vld [vmem:[#allocation16 + $0x270] sm:$0xff]
    %v3604 = vld [vmem:[#allocation16 + $0x278] sm:$0xff]
    %v3605 = vld [vmem:[#allocation16 + $0x280] sm:$0xff]
    %v3606 = vld [vmem:[#allocation16 + $0x288] sm:$0xff]
    %v3607 = vld [vmem:[#allocation16 + $0x290] sm:$0xff]
    %v3608 = vld [vmem:[#allocation16 + $0x298] sm:$0xff]
    %v3609 = vld [vmem:[#allocation16 + $0x2a0] sm:$0xff]
    %v3610 = vld [vmem:[#allocation16 + $0x2a8] sm:$0xff]
    %v3611 = vld [vmem:[#allocation16 + $0x2b0] sm:$0xff]
    %v3612 = vld [vmem:[#allocation16 + $0x2b8] sm:$0xff]
    %v3613 = vld [vmem:[#allocation16 + $0x2c0] sm:$0xff]
    %v3614 = vld [vmem:[#allocation16 + $0x2c8] sm:$0xff]
    %v3615 = vld [vmem:[#allocation16 + $0x2d0] sm:$0xff]
    %v3616 = vld [vmem:[#allocation16 + $0x2d8] sm:$0xff]
    %v3617 = vld [vmem:[#allocation16 + $0x2e0] sm:$0xff]
    %v3618 = vld [vmem:[#allocation16 + $0x2e8] sm:$0xff]
    %v3619 = vld [vmem:[#allocation16 + $0x2f0] sm:$0xff]
    %v3620 = vld [vmem:[#allocation16 + $0x2f8] sm:$0xff]
    %v3621 = vld [vmem:[#allocation16 + $0x300] sm:$0xff]
    %v3622 = vld [vmem:[#allocation16 + $0x308] sm:$0xff]
    %v3623 = vld [vmem:[#allocation16 + $0x310] sm:$0xff]
    %v3624 = vld [vmem:[#allocation16 + $0x318] sm:$0xff]
    %v3625 = vld [vmem:[#allocation16 + $0x320] sm:$0xff]
    %v3626 = vld [vmem:[#allocation16 + $0x328] sm:$0xff]
    %v3627 = vld [vmem:[#allocation16 + $0x330] sm:$0xff]
    %v3628 = vld [vmem:[#allocation16 + $0x338] sm:$0xff]
    %v3629 = vld [vmem:[#allocation16 + $0x340] sm:$0xff]
    %v3630 = vld [vmem:[#allocation16 + $0x348] sm:$0xff]
    %v3631 = vld [vmem:[#allocation16 + $0x350] sm:$0xff]
    %v3632 = vld [vmem:[#allocation16 + $0x358] sm:$0xff]
    %v3633 = vld [vmem:[#allocation16 + $0x360] sm:$0xff]
    %v3634 = vld [vmem:[#allocation16 + $0x368] sm:$0xff]
    %v3635 = vld [vmem:[#allocation16 + $0x370] sm:$0xff]
    %v3636 = vld [vmem:[#allocation16 + $0x378] sm:$0xff]
    %v3637 = vld [vmem:[#allocation16 + $0x380] sm:$0xff]
    %v3638 = vld [vmem:[#allocation16 + $0x388] sm:$0xff]
    %v3639 = vld [vmem:[#allocation16 + $0x390] sm:$0xff]
    %v3640 = vld [vmem:[#allocation16 + $0x398] sm:$0xff]
    %v3641 = vld [vmem:[#allocation16 + $0x3a0] sm:$0xff]
    %v3642 = vld [vmem:[#allocation16 + $0x3a8] sm:$0xff]
    %v3643 = vld [vmem:[#allocation16 + $0x3b0] sm:$0xff]
    %v3644 = vld [vmem:[#allocation16 + $0x3b8] sm:$0xff]
    %v3645 = vld [vmem:[#allocation16 + $0x3c0] sm:$0xff]
    %v3646 = vld [vmem:[#allocation16 + $0x3c8] sm:$0xff]
    %v3647 = vld [vmem:[#allocation16 + $0x3d0] sm:$0xff]
    %v3648 = vld [vmem:[#allocation16 + $0x3d8] sm:$0xff]
    %v3649 = vld [vmem:[#allocation16 + $0x3e0] sm:$0xff]
    %v3650 = vld [vmem:[#allocation16 + $0x3e8] sm:$0xff]
    %v3651 = vld [vmem:[#allocation16 + $0x3f0] sm:$0xff]
    %v3652 = vld [vmem:[#allocation16 + $0x3f8] sm:$0xff]
    %3653 = vmatprep.subr.mxu0 %v3526
    %3654 = vmatpush1.msra.mxu0 %v3525
    %3655 = vmatprep.subr.mxu0 %v3530
    %3656 = vmatpush1.msra.mxu0 %v3529
    %3657 = vmatprep.subr.mxu0 %v3534
    %3658 = vmatpush1.msra.mxu0 %v3533
    %3659 = vmatprep.subr.mxu0 %v3538
    %3660 = vmatpush1.msra.mxu0 %v3537
    %3661 = vmatprep.subr.mxu0 %v3542
    %3662 = vmatpush1.msra.mxu0 %v3541
    %3663 = vmatprep.subr.mxu0 %v3546
    %3664 = vmatpush1.msra.mxu0 %v3545
    %3665 = vmatprep.subr.mxu0 %v3550
    %3666 = vmatpush1.msra.mxu0 %v3549
    %3667 = vmatprep.subr.mxu0 %v3554
    %3668 = vmatpush1.msra.mxu0 %v3553
    %3669 = vmatprep.subr.mxu0 %v3558
    %3670 = vmatpush1.msra.mxu0 %v3557
    %3671 = vmatprep.subr.mxu0 %v3562
    %3672 = vmatpush1.msra.mxu0 %v3561
    %3673 = vmatprep.subr.mxu0 %v3566
    %3674 = vmatpush1.msra.mxu0 %v3565
    %3675 = vmatprep.subr.mxu0 %v3570
    %3676 = vmatpush1.msra.mxu0 %v3569
    %3677 = vmatprep.subr.mxu0 %v3574
    %3678 = vmatpush1.msra.mxu0 %v3573
    %3679 = vmatprep.subr.mxu0 %v3578
    %3680 = vmatpush1.msra.mxu0 %v3577
    %3681 = vmatprep.subr.mxu0 %v3582
    %3682 = vmatpush1.msra.mxu0 %v3581
    %3683 = vmatprep.subr.mxu0 %v3586
    %3684 = vmatpush1.msra.mxu0 %v3585
    %3685 = vmatprep.subr.mxu0 %v3590
    %3686 = vmatpush1.msra.mxu0 %v3589
    %3687 = vmatprep.subr.mxu0 %v3594
    %3688 = vmatpush1.msra.mxu0 %v3593
    %3689 = vmatprep.subr.mxu0 %v3598
    %3690 = vmatpush1.msra.mxu0 %v3597
    %3691 = vmatprep.subr.mxu0 %v3602
    %3692 = vmatpush1.msra.mxu0 %v3601
    %3693 = vmatprep.subr.mxu0 %v3606
    %3694 = vmatpush1.msra.mxu0 %v3605
    %3695 = vmatprep.subr.mxu0 %v3610
    %3696 = vmatpush1.msra.mxu0 %v3609
    %3697 = vmatprep.subr.mxu0 %v3614
    %3698 = vmatpush1.msra.mxu0 %v3613
    %3699 = vmatprep.subr.mxu0 %v3618
    %3700 = vmatpush1.msra.mxu0 %v3617
    %3701 = vmatprep.subr.mxu0 %v3622
    %3702 = vmatpush1.msra.mxu0 %v3621
    %3703 = vmatprep.subr.mxu0 %v3626
    %3704 = vmatpush1.msra.mxu0 %v3625
    %3705 = vmatprep.subr.mxu0 %v3630
    %3706 = vmatpush1.msra.mxu0 %v3629
    %3707 = vmatprep.subr.mxu0 %v3634
    %3708 = vmatpush1.msra.mxu0 %v3633
    %3709 = vmatprep.subr.mxu0 %v3638
    %3710 = vmatpush1.msra.mxu0 %v3637
    %3711 = vmatprep.subr.mxu0 %v3642
    %3712 = vmatpush1.msra.mxu0 %v3641
    %3713 = vmatprep.subr.mxu0 %v3646
    %3714 = vmatpush1.msra.mxu0 %v3645
    %3715 = vmatprep.subr.mxu0 %v3650
    %3716 = vmatpush1.msra.mxu0 %v3649
    %3717 = vmatprep.mubr.f32.mxu0 %v3498
    %3718 = vmatmul.mubr.f32.gmra.mrb[0].mxu0 %v3497
    %v3719 = vpop.f32.mrb[0].mxu0
    %v3720 = vadd.f32 0.0, %v3719
    %v3721 = vpop.f32.mrb[0].mxu0
    %v3722 = vadd.f32 0.0, %v3721
    %3723 = vdwg.mxu0
    %3724 = vmatprep.subr.mxu0 %v3528
    %3725 = vmatpush1.msra.mxu0 %v3527
    %3726 = vmatprep.subr.mxu0 %v3532
    %3727 = vmatpush1.msra.mxu0 %v3531
    %3728 = vmatprep.subr.mxu0 %v3536
    %3729 = vmatpush1.msra.mxu0 %v3535
    %3730 = vmatprep.subr.mxu0 %v3540
    %3731 = vmatpush1.msra.mxu0 %v3539
    %3732 = vmatprep.subr.mxu0 %v3544
    %3733 = vmatpush1.msra.mxu0 %v3543
    %3734 = vmatprep.subr.mxu0 %v3548
    %3735 = vmatpush1.msra.mxu0 %v3547
    %3736 = vmatprep.subr.mxu0 %v3552
    %3737 = vmatpush1.msra.mxu0 %v3551
    %3738 = vmatprep.subr.mxu0 %v3556
    %3739 = vmatpush1.msra.mxu0 %v3555
    %3740 = vmatprep.subr.mxu0 %v3560
    %3741 = vmatpush1.msra.mxu0 %v3559
    %3742 = vmatprep.subr.mxu0 %v3564
    %3743 = vmatpush1.msra.mxu0 %v3563
    %3744 = vmatprep.subr.mxu0 %v3568
    %3745 = vmatpush1.msra.mxu0 %v3567
    %3746 = vmatprep.subr.mxu0 %v3572
    %3747 = vmatpush1.msra.mxu0 %v3571
    %3748 = vmatprep.subr.mxu0 %v3576
    %3749 = vmatpush1.msra.mxu0 %v3575
    %3750 = vmatprep.subr.mxu0 %v3580
    %3751 = vmatpush1.msra.mxu0 %v3579
    %3752 = vmatprep.subr.mxu0 %v3584
    %3753 = vmatpush1.msra.mxu0 %v3583
    %3754 = vmatprep.subr.mxu0 %v3588
    %3755 = vmatpush1.msra.mxu0 %v3587
    %3756 = vmatprep.subr.mxu0 %v3592
    %3757 = vmatpush1.msra.mxu0 %v3591
    %3758 = vmatprep.subr.mxu0 %v3596
    %3759 = vmatpush1.msra.mxu0 %v3595
    %3760 = vmatprep.subr.mxu0 %v3600
    %3761 = vmatpush1.msra.mxu0 %v3599
    %3762 = vmatprep.subr.mxu0 %v3604
    %3763 = vmatpush1.msra.mxu0 %v3603
    %3764 = vmatprep.subr.mxu0 %v3608
    %3765 = vmatpush1.msra.mxu0 %v3607
    %3766 = vmatprep.subr.mxu0 %v3612
    %3767 = vmatpush1.msra.mxu0 %v3611
    %3768 = vmatprep.subr.mxu0 %v3616
    %3769 = vmatpush1.msra.mxu0 %v3615
    %3770 = vmatprep.subr.mxu0 %v3620
    %3771 = vmatpush1.msra.mxu0 %v3619
    %3772 = vmatprep.subr.mxu0 %v3624
    %3773 = vmatpush1.msra.mxu0 %v3623
    %3774 = vmatprep.subr.mxu0 %v3628
    %3775 = vmatpush1.msra.mxu0 %v3627
    %3776 = vmatprep.subr.mxu0 %v3632
    %3777 = vmatpush1.msra.mxu0 %v3631
    %3778 = vmatprep.subr.mxu0 %v3636
    %3779 = vmatpush1.msra.mxu0 %v3635
    %3780 = vmatprep.subr.mxu0 %v3640
    %3781 = vmatpush1.msra.mxu0 %v3639
    %3782 = vmatprep.subr.mxu0 %v3644
    %3783 = vmatpush1.msra.mxu0 %v3643
    %3784 = vmatprep.subr.mxu0 %v3648
    %3785 = vmatpush1.msra.mxu0 %v3647
    %3786 = vmatprep.subr.mxu0 %v3652
    %3787 = vmatpush1.msra.mxu0 %v3651
    %3788 = vmatprep.mubr.f32.mxu0 %v3498
    %3789 = vmatmul.mubr.f32.gmra.mrb[0].mxu0 %v3497
    %v3790 = vpop.f32.mrb[0].mxu0
    %v3791 = vadd.f32 0.0, %v3790
    %v3792 = vpop.f32.mrb[0].mxu0
    %v3793 = vadd.f32 0.0, %v3792
    %3794 = vdwg.mxu0
    %v3795 = vadd.f32 %v3521, %v3720
    %v3796 = vadd.f32 %v3522, %v3722
    %v3797 = vadd.f32 %v3523, %v3791
    %v3798 = vadd.f32 %v3524, %v3793
    %s3799 = scalar_lea.vmem [#allocation16], 1024
    %v3800 = vld [vmem:[%s3799] sm:$0xff]
    %v3801 = vld [vmem:[%s3799 + $0x8] sm:$0xff]
    %v3802 = vld [vmem:[%s3799 + $0x10] sm:$0xff]
    %v3803 = vld [vmem:[%s3799 + $0x18] sm:$0xff]
    %v3804 = vld [vmem:[%s3799 + $0x20] sm:$0xff]
    %v3805 = vld [vmem:[%s3799 + $0x28] sm:$0xff]
    %v3806 = vld [vmem:[%s3799 + $0x30] sm:$0xff]
    %v3807 = vld [vmem:[%s3799 + $0x38] sm:$0xff]
    %v3808 = vld [vmem:[%s3799 + $0x40] sm:$0xff]
    %v3809 = vld [vmem:[%s3799 + $0x48] sm:$0xff]
    %v3810 = vld [vmem:[%s3799 + $0x50] sm:$0xff]
    %v3811 = vld [vmem:[%s3799 + $0x58] sm:$0xff]
    %v3812 = vld [vmem:[%s3799 + $0x60] sm:$0xff]
    %v3813 = vld [vmem:[%s3799 + $0x68] sm:$0xff]
    %v3814 = vld [vmem:[%s3799 + $0x70] sm:$0xff]
    %v3815 = vld [vmem:[%s3799 + $0x78] sm:$0xff]
    %v3816 = vld [vmem:[%s3799 + $0x80] sm:$0xff]
    %v3817 = vld [vmem:[%s3799 + $0x88] sm:$0xff]
    %v3818 = vld [vmem:[%s3799 + $0x90] sm:$0xff]
    %v3819 = vld [vmem:[%s3799 + $0x98] sm:$0xff]
    %v3820 = vld [vmem:[%s3799 + $0xa0] sm:$0xff]
    %v3821 = vld [vmem:[%s3799 + $0xa8] sm:$0xff]
    %v3822 = vld [vmem:[%s3799 + $0xb0] sm:$0xff]
    %v3823 = vld [vmem:[%s3799 + $0xb8] sm:$0xff]
    %v3824 = vld [vmem:[%s3799 + $0xc0] sm:$0xff]
    %v3825 = vld [vmem:[%s3799 + $0xc8] sm:$0xff]
    %v3826 = vld [vmem:[%s3799 + $0xd0] sm:$0xff]
    %v3827 = vld [vmem:[%s3799 + $0xd8] sm:$0xff]
    %v3828 = vld [vmem:[%s3799 + $0xe0] sm:$0xff]
    %v3829 = vld [vmem:[%s3799 + $0xe8] sm:$0xff]
    %v3830 = vld [vmem:[%s3799 + $0xf0] sm:$0xff]
    %v3831 = vld [vmem:[%s3799 + $0xf8] sm:$0xff]
    %v3832 = vld [vmem:[%s3799 + $0x100] sm:$0xff]
    %v3833 = vld [vmem:[%s3799 + $0x108] sm:$0xff]
    %v3834 = vld [vmem:[%s3799 + $0x110] sm:$0xff]
    %v3835 = vld [vmem:[%s3799 + $0x118] sm:$0xff]
    %v3836 = vld [vmem:[%s3799 + $0x120] sm:$0xff]
    %v3837 = vld [vmem:[%s3799 + $0x128] sm:$0xff]
    %v3838 = vld [vmem:[%s3799 + $0x130] sm:$0xff]
    %v3839 = vld [vmem:[%s3799 + $0x138] sm:$0xff]
    %v3840 = vld [vmem:[%s3799 + $0x140] sm:$0xff]
    %v3841 = vld [vmem:[%s3799 + $0x148] sm:$0xff]
    %v3842 = vld [vmem:[%s3799 + $0x150] sm:$0xff]
    %v3843 = vld [vmem:[%s3799 + $0x158] sm:$0xff]
    %v3844 = vld [vmem:[%s3799 + $0x160] sm:$0xff]
    %v3845 = vld [vmem:[%s3799 + $0x168] sm:$0xff]
    %v3846 = vld [vmem:[%s3799 + $0x170] sm:$0xff]
    %v3847 = vld [vmem:[%s3799 + $0x178] sm:$0xff]
    %v3848 = vld [vmem:[%s3799 + $0x180] sm:$0xff]
    %v3849 = vld [vmem:[%s3799 + $0x188] sm:$0xff]
    %v3850 = vld [vmem:[%s3799 + $0x190] sm:$0xff]
    %v3851 = vld [vmem:[%s3799 + $0x198] sm:$0xff]
    %v3852 = vld [vmem:[%s3799 + $0x1a0] sm:$0xff]
    %v3853 = vld [vmem:[%s3799 + $0x1a8] sm:$0xff]
    %v3854 = vld [vmem:[%s3799 + $0x1b0] sm:$0xff]
    %v3855 = vld [vmem:[%s3799 + $0x1b8] sm:$0xff]
    %v3856 = vld [vmem:[%s3799 + $0x1c0] sm:$0xff]
    %v3857 = vld [vmem:[%s3799 + $0x1c8] sm:$0xff]
    %v3858 = vld [vmem:[%s3799 + $0x1d0] sm:$0xff]
    %v3859 = vld [vmem:[%s3799 + $0x1d8] sm:$0xff]
    %v3860 = vld [vmem:[%s3799 + $0x1e0] sm:$0xff]
    %v3861 = vld [vmem:[%s3799 + $0x1e8] sm:$0xff]
    %v3862 = vld [vmem:[%s3799 + $0x1f0] sm:$0xff]
    %v3863 = vld [vmem:[%s3799 + $0x1f8] sm:$0xff]
    %v3864 = vld [vmem:[%s3799 + $0x200] sm:$0xff]
    %v3865 = vld [vmem:[%s3799 + $0x208] sm:$0xff]
    %v3866 = vld [vmem:[%s3799 + $0x210] sm:$0xff]
    %v3867 = vld [vmem:[%s3799 + $0x218] sm:$0xff]
    %v3868 = vld [vmem:[%s3799 + $0x220] sm:$0xff]
    %v3869 = vld [vmem:[%s3799 + $0x228] sm:$0xff]
    %v3870 = vld [vmem:[%s3799 + $0x230] sm:$0xff]
    %v3871 = vld [vmem:[%s3799 + $0x238] sm:$0xff]
    %v3872 = vld [vmem:[%s3799 + $0x240] sm:$0xff]
    %v3873 = vld [vmem:[%s3799 + $0x248] sm:$0xff]
    %v3874 = vld [vmem:[%s3799 + $0x250] sm:$0xff]
    %v3875 = vld [vmem:[%s3799 + $0x258] sm:$0xff]
    %v3876 = vld [vmem:[%s3799 + $0x260] sm:$0xff]
    %v3877 = vld [vmem:[%s3799 + $0x268] sm:$0xff]
    %v3878 = vld [vmem:[%s3799 + $0x270] sm:$0xff]
    %v3879 = vld [vmem:[%s3799 + $0x278] sm:$0xff]
    %v3880 = vld [vmem:[%s3799 + $0x280] sm:$0xff]
    %v3881 = vld [vmem:[%s3799 + $0x288] sm:$0xff]
    %v3882 = vld [vmem:[%s3799 + $0x290] sm:$0xff]
    %v3883 = vld [vmem:[%s3799 + $0x298] sm:$0xff]
    %v3884 = vld [vmem:[%s3799 + $0x2a0] sm:$0xff]
    %v3885 = vld [vmem:[%s3799 + $0x2a8] sm:$0xff]
    %v3886 = vld [vmem:[%s3799 + $0x2b0] sm:$0xff]
    %v3887 = vld [vmem:[%s3799 + $0x2b8] sm:$0xff]
    %v3888 = vld [vmem:[%s3799 + $0x2c0] sm:$0xff]
    %v3889 = vld [vmem:[%s3799 + $0x2c8] sm:$0xff]
    %v3890 = vld [vmem:[%s3799 + $0x2d0] sm:$0xff]
    %v3891 = vld [vmem:[%s3799 + $0x2d8] sm:$0xff]
    %v3892 = vld [vmem:[%s3799 + $0x2e0] sm:$0xff]
    %v3893 = vld [vmem:[%s3799 + $0x2e8] sm:$0xff]
    %v3894 = vld [vmem:[%s3799 + $0x2f0] sm:$0xff]
    %v3895 = vld [vmem:[%s3799 + $0x2f8] sm:$0xff]
    %v3896 = vld [vmem:[%s3799 + $0x300] sm:$0xff]
    %v3897 = vld [vmem:[%s3799 + $0x308] sm:$0xff]
    %v3898 = vld [vmem:[%s3799 + $0x310] sm:$0xff]
    %v3899 = vld [vmem:[%s3799 + $0x318] sm:$0xff]
    %v3900 = vld [vmem:[%s3799 + $0x320] sm:$0xff]
    %v3901 = vld [vmem:[%s3799 + $0x328] sm:$0xff]
    %v3902 = vld [vmem:[%s3799 + $0x330] sm:$0xff]
    %v3903 = vld [vmem:[%s3799 + $0x338] sm:$0xff]
    %v3904 = vld [vmem:[%s3799 + $0x340] sm:$0xff]
    %v3905 = vld [vmem:[%s3799 + $0x348] sm:$0xff]
    %v3906 = vld [vmem:[%s3799 + $0x350] sm:$0xff]
    %v3907 = vld [vmem:[%s3799 + $0x358] sm:$0xff]
    %v3908 = vld [vmem:[%s3799 + $0x360] sm:$0xff]
    %v3909 = vld [vmem:[%s3799 + $0x368] sm:$0xff]
    %v3910 = vld [vmem:[%s3799 + $0x370] sm:$0xff]
    %v3911 = vld [vmem:[%s3799 + $0x378] sm:$0xff]
    %v3912 = vld [vmem:[%s3799 + $0x380] sm:$0xff]
    %v3913 = vld [vmem:[%s3799 + $0x388] sm:$0xff]
    %v3914 = vld [vmem:[%s3799 + $0x390] sm:$0xff]
    %v3915 = vld [vmem:[%s3799 + $0x398] sm:$0xff]
    %v3916 = vld [vmem:[%s3799 + $0x3a0] sm:$0xff]
    %v3917 = vld [vmem:[%s3799 + $0x3a8] sm:$0xff]
    %v3918 = vld [vmem:[%s3799 + $0x3b0] sm:$0xff]
    %v3919 = vld [vmem:[%s3799 + $0x3b8] sm:$0xff]
    %v3920 = vld [vmem:[%s3799 + $0x3c0] sm:$0xff]
    %v3921 = vld [vmem:[%s3799 + $0x3c8] sm:$0xff]
    %v3922 = vld [vmem:[%s3799 + $0x3d0] sm:$0xff]
    %v3923 = vld [vmem:[%s3799 + $0x3d8] sm:$0xff]
    %v3924 = vld [vmem:[%s3799 + $0x3e0] sm:$0xff]
    %v3925 = vld [vmem:[%s3799 + $0x3e8] sm:$0xff]
    %v3926 = vld [vmem:[%s3799 + $0x3f0] sm:$0xff]
    %v3927 = vld [vmem:[%s3799 + $0x3f8] sm:$0xff]
    %v3930 = vrot.slane %v3497, 2
    %v3931 = vrot.slane %v3498, 2
    %3934 = vmatprep.subr.mxu0 %v3801
    %3935 = vmatpush1.msra.mxu0 %v3800
    %3936 = vmatprep.subr.mxu0 %v3805
    %3937 = vmatpush1.msra.mxu0 %v3804
    %3938 = vmatprep.subr.mxu0 %v3809
    %3939 = vmatpush1.msra.mxu0 %v3808
    %3940 = vmatprep.subr.mxu0 %v3813
    %3941 = vmatpush1.msra.mxu0 %v3812
    %3942 = vmatprep.subr.mxu0 %v3817
    %3943 = vmatpush1.msra.mxu0 %v3816
    %3944 = vmatprep.subr.mxu0 %v3821
    %3945 = vmatpush1.msra.mxu0 %v3820
    %3946 = vmatprep.subr.mxu0 %v3825
    %3947 = vmatpush1.msra.mxu0 %v3824
    %3948 = vmatprep.subr.mxu0 %v3829
    %3949 = vmatpush1.msra.mxu0 %v3828
    %3950 = vmatprep.subr.mxu0 %v3833
    %3951 = vmatpush1.msra.mxu0 %v3832
    %3952 = vmatprep.subr.mxu0 %v3837
    %3953 = vmatpush1.msra.mxu0 %v3836
    %3954 = vmatprep.subr.mxu0 %v3841
    %3955 = vmatpush1.msra.mxu0 %v3840
    %3956 = vmatprep.subr.mxu0 %v3845
    %3957 = vmatpush1.msra.mxu0 %v3844
    %3958 = vmatprep.subr.mxu0 %v3849
    %3959 = vmatpush1.msra.mxu0 %v3848
    %3960 = vmatprep.subr.mxu0 %v3853
    %3961 = vmatpush1.msra.mxu0 %v3852
    %3962 = vmatprep.subr.mxu0 %v3857
    %3963 = vmatpush1.msra.mxu0 %v3856
    %3964 = vmatprep.subr.mxu0 %v3861
    %3965 = vmatpush1.msra.mxu0 %v3860
    %3966 = vmatprep.subr.mxu0 %v3865
    %3967 = vmatpush1.msra.mxu0 %v3864
    %3968 = vmatprep.subr.mxu0 %v3869
    %3969 = vmatpush1.msra.mxu0 %v3868
    %3970 = vmatprep.subr.mxu0 %v3873
    %3971 = vmatpush1.msra.mxu0 %v3872
    %3972 = vmatprep.subr.mxu0 %v3877
    %3973 = vmatpush1.msra.mxu0 %v3876
    %3974 = vmatprep.subr.mxu0 %v3881
    %3975 = vmatpush1.msra.mxu0 %v3880
    %3976 = vmatprep.subr.mxu0 %v3885
    %3977 = vmatpush1.msra.mxu0 %v3884
    %3978 = vmatprep.subr.mxu0 %v3889
    %3979 = vmatpush1.msra.mxu0 %v3888
    %3980 = vmatprep.subr.mxu0 %v3893
    %3981 = vmatpush1.msra.mxu0 %v3892
    %3982 = vmatprep.subr.mxu0 %v3897
    %3983 = vmatpush1.msra.mxu0 %v3896
    %3984 = vmatprep.subr.mxu0 %v3901
    %3985 = vmatpush1.msra.mxu0 %v3900
    %3986 = vmatprep.subr.mxu0 %v3905
    %3987 = vmatpush1.msra.mxu0 %v3904
    %3988 = vmatprep.subr.mxu0 %v3909
    %3989 = vmatpush1.msra.mxu0 %v3908
    %3990 = vmatprep.subr.mxu0 %v3913
    %3991 = vmatpush1.msra.mxu0 %v3912
    %3992 = vmatprep.subr.mxu0 %v3917
    %3993 = vmatpush1.msra.mxu0 %v3916
    %3994 = vmatprep.subr.mxu0 %v3921
    %3995 = vmatpush1.msra.mxu0 %v3920
    %3996 = vmatprep.subr.mxu0 %v3925
    %3997 = vmatpush1.msra.mxu0 %v3924
    %3998 = vmatprep.mubr.f32.mxu0 %v3931
    %3999 = vmatmul.mubr.f32.gmra.mrb[0].mxu0 %v3930
    %v4000 = vpop.f32.mrb[0].mxu0
    %v4001 = vadd.f32 0.0, %v4000
    %v4002 = vpop.f32.mrb[0].mxu0
    %v4003 = vadd.f32 0.0, %v4002
    %4004 = vdwg.mxu0
    %4005 = vmatprep.subr.mxu0 %v3803
    %4006 = vmatpush1.msra.mxu0 %v3802
    %4007 = vmatprep.subr.mxu0 %v3807
    %4008 = vmatpush1.msra.mxu0 %v3806
    %4009 = vmatprep.subr.mxu0 %v3811
    %4010 = vmatpush1.msra.mxu0 %v3810
    %4011 = vmatprep.subr.mxu0 %v3815
    %4012 = vmatpush1.msra.mxu0 %v3814
    %4013 = vmatprep.subr.mxu0 %v3819
    %4014 = vmatpush1.msra.mxu0 %v3818
    %4015 = vmatprep.subr.mxu0 %v3823
    %4016 = vmatpush1.msra.mxu0 %v3822
    %4017 = vmatprep.subr.mxu0 %v3827
    %4018 = vmatpush1.msra.mxu0 %v3826
    %4019 = vmatprep.subr.mxu0 %v3831
    %4020 = vmatpush1.msra.mxu0 %v3830
    %4021 = vmatprep.subr.mxu0 %v3835
    %4022 = vmatpush1.msra.mxu0 %v3834
    %4023 = vmatprep.subr.mxu0 %v3839
    %4024 = vmatpush1.msra.mxu0 %v3838
    %4025 = vmatprep.subr.mxu0 %v3843
    %4026 = vmatpush1.msra.mxu0 %v3842
    %4027 = vmatprep.subr.mxu0 %v3847
    %4028 = vmatpush1.msra.mxu0 %v3846
    %4029 = vmatprep.subr.mxu0 %v3851
    %4030 = vmatpush1.msra.mxu0 %v3850
    %4031 = vmatprep.subr.mxu0 %v3855
    %4032 = vmatpush1.msra.mxu0 %v3854
    %4033 = vmatprep.subr.mxu0 %v3859
    %4034 = vmatpush1.msra.mxu0 %v3858
    %4035 = vmatprep.subr.mxu0 %v3863
    %4036 = vmatpush1.msra.mxu0 %v3862
    %4037 = vmatprep.subr.mxu0 %v3867
    %4038 = vmatpush1.msra.mxu0 %v3866
    %4039 = vmatprep.subr.mxu0 %v3871
    %4040 = vmatpush1.msra.mxu0 %v3870
    %4041 = vmatprep.subr.mxu0 %v3875
    %4042 = vmatpush1.msra.mxu0 %v3874
    %4043 = vmatprep.subr.mxu0 %v3879
    %4044 = vmatpush1.msra.mxu0 %v3878
    %4045 = vmatprep.subr.mxu0 %v3883
    %4046 = vmatpush1.msra.mxu0 %v3882
    %4047 = vmatprep.subr.mxu0 %v3887
    %4048 = vmatpush1.msra.mxu0 %v3886
    %4049 = vmatprep.subr.mxu0 %v3891
    %4050 = vmatpush1.msra.mxu0 %v3890
    %4051 = vmatprep.subr.mxu0 %v3895
    %4052 = vmatpush1.msra.mxu0 %v3894
    %4053 = vmatprep.subr.mxu0 %v3899
    %4054 = vmatpush1.msra.mxu0 %v3898
    %4055 = vmatprep.subr.mxu0 %v3903
    %4056 = vmatpush1.msra.mxu0 %v3902
    %4057 = vmatprep.subr.mxu0 %v3907
    %4058 = vmatpush1.msra.mxu0 %v3906
    %4059 = vmatprep.subr.mxu0 %v3911
    %4060 = vmatpush1.msra.mxu0 %v3910
    %4061 = vmatprep.subr.mxu0 %v3915
    %4062 = vmatpush1.msra.mxu0 %v3914
    %4063 = vmatprep.subr.mxu0 %v3919
    %4064 = vmatpush1.msra.mxu0 %v3918
    %4065 = vmatprep.subr.mxu0 %v3923
    %4066 = vmatpush1.msra.mxu0 %v3922
    %4067 = vmatprep.subr.mxu0 %v3927
    %4068 = vmatpush1.msra.mxu0 %v3926
    %4069 = vmatprep.mubr.f32.mxu0 %v3931
    %4070 = vmatmul.mubr.f32.gmra.mrb[0].mxu0 %v3930
    %v4071 = vpop.f32.mrb[0].mxu0
    %v4072 = vadd.f32 0.0, %v4071
    %v4073 = vpop.f32.mrb[0].mxu0
    %v4074 = vadd.f32 0.0, %v4073
    %4075 = vdwg.mxu0
    %v4076 = vadd.f32 %v3795, %v4001
    %v4077 = vadd.f32 %v3796, %v4003
    %v4078 = vadd.f32 %v3797, %v4072
    %v4079 = vadd.f32 %v3798, %v4074
    %s4080 = scalar_lea.vmem [#allocation16], 2048
    %v4081 = vld [vmem:[%s4080] sm:$0xff]
    %v4082 = vld [vmem:[%s4080 + $0x8] sm:$0xff]
    %v4083 = vld [vmem:[%s4080 + $0x10] sm:$0xff]
    %v4084 = vld [vmem:[%s4080 + $0x18] sm:$0xff]
    %v4085 = vld [vmem:[%s4080 + $0x20] sm:$0xff]
    %v4086 = vld [vmem:[%s4080 + $0x28] sm:$0xff]
    %v4087 = vld [vmem:[%s4080 + $0x30] sm:$0xff]
    %v4088 = vld [vmem:[%s4080 + $0x38] sm:$0xff]
    %v4089 = vld [vmem:[%s4080 + $0x40] sm:$0xff]
    %v4090 = vld [vmem:[%s4080 + $0x48] sm:$0xff]
    %v4091 = vld [vmem:[%s4080 + $0x50] sm:$0xff]
    %v4092 = vld [vmem:[%s4080 + $0x58] sm:$0xff]
    %v4093 = vld [vmem:[%s4080 + $0x60] sm:$0xff]
    %v4094 = vld [vmem:[%s4080 + $0x68] sm:$0xff]
    %v4095 = vld [vmem:[%s4080 + $0x70] sm:$0xff]
    %v4096 = vld [vmem:[%s4080 + $0x78] sm:$0xff]
    %v4097 = vld [vmem:[%s4080 + $0x80] sm:$0xff]
    %v4098 = vld [vmem:[%s4080 + $0x88] sm:$0xff]
    %v4099 = vld [vmem:[%s4080 + $0x90] sm:$0xff]
    %v4100 = vld [vmem:[%s4080 + $0x98] sm:$0xff]
    %v4101 = vld [vmem:[%s4080 + $0xa0] sm:$0xff]
    %v4102 = vld [vmem:[%s4080 + $0xa8] sm:$0xff]
    %v4103 = vld [vmem:[%s4080 + $0xb0] sm:$0xff]
    %v4104 = vld [vmem:[%s4080 + $0xb8] sm:$0xff]
    %v4105 = vld [vmem:[%s4080 + $0xc0] sm:$0xff]
    %v4106 = vld [vmem:[%s4080 + $0xc8] sm:$0xff]
    %v4107 = vld [vmem:[%s4080 + $0xd0] sm:$0xff]
    %v4108 = vld [vmem:[%s4080 + $0xd8] sm:$0xff]
    %v4109 = vld [vmem:[%s4080 + $0xe0] sm:$0xff]
    %v4110 = vld [vmem:[%s4080 + $0xe8] sm:$0xff]
    %v4111 = vld [vmem:[%s4080 + $0xf0] sm:$0xff]
    %v4112 = vld [vmem:[%s4080 + $0xf8] sm:$0xff]
    %v4113 = vld [vmem:[%s4080 + $0x100] sm:$0xff]
    %v4114 = vld [vmem:[%s4080 + $0x108] sm:$0xff]
    %v4115 = vld [vmem:[%s4080 + $0x110] sm:$0xff]
    %v4116 = vld [vmem:[%s4080 + $0x118] sm:$0xff]
    %v4117 = vld [vmem:[%s4080 + $0x120] sm:$0xff]
    %v4118 = vld [vmem:[%s4080 + $0x128] sm:$0xff]
    %v4119 = vld [vmem:[%s4080 + $0x130] sm:$0xff]
    %v4120 = vld [vmem:[%s4080 + $0x138] sm:$0xff]
    %v4121 = vld [vmem:[%s4080 + $0x140] sm:$0xff]
    %v4122 = vld [vmem:[%s4080 + $0x148] sm:$0xff]
    %v4123 = vld [vmem:[%s4080 + $0x150] sm:$0xff]
    %v4124 = vld [vmem:[%s4080 + $0x158] sm:$0xff]
    %v4125 = vld [vmem:[%s4080 + $0x160] sm:$0xff]
    %v4126 = vld [vmem:[%s4080 + $0x168] sm:$0xff]
    %v4127 = vld [vmem:[%s4080 + $0x170] sm:$0xff]
    %v4128 = vld [vmem:[%s4080 + $0x178] sm:$0xff]
    %v4129 = vld [vmem:[%s4080 + $0x180] sm:$0xff]
    %v4130 = vld [vmem:[%s4080 + $0x188] sm:$0xff]
    %v4131 = vld [vmem:[%s4080 + $0x190] sm:$0xff]
    %v4132 = vld [vmem:[%s4080 + $0x198] sm:$0xff]
    %v4133 = vld [vmem:[%s4080 + $0x1a0] sm:$0xff]
    %v4134 = vld [vmem:[%s4080 + $0x1a8] sm:$0xff]
    %v4135 = vld [vmem:[%s4080 + $0x1b0] sm:$0xff]
    %v4136 = vld [vmem:[%s4080 + $0x1b8] sm:$0xff]
    %v4137 = vld [vmem:[%s4080 + $0x1c0] sm:$0xff]
    %v4138 = vld [vmem:[%s4080 + $0x1c8] sm:$0xff]
    %v4139 = vld [vmem:[%s4080 + $0x1d0] sm:$0xff]
    %v4140 = vld [vmem:[%s4080 + $0x1d8] sm:$0xff]
    %v4141 = vld [vmem:[%s4080 + $0x1e0] sm:$0xff]
    %v4142 = vld [vmem:[%s4080 + $0x1e8] sm:$0xff]
    %v4143 = vld [vmem:[%s4080 + $0x1f0] sm:$0xff]
    %v4144 = vld [vmem:[%s4080 + $0x1f8] sm:$0xff]
    %v4145 = vld [vmem:[%s4080 + $0x200] sm:$0xff]
    %v4146 = vld [vmem:[%s4080 + $0x208] sm:$0xff]
    %v4147 = vld [vmem:[%s4080 + $0x210] sm:$0xff]
    %v4148 = vld [vmem:[%s4080 + $0x218] sm:$0xff]
    %v4149 = vld [vmem:[%s4080 + $0x220] sm:$0xff]
    %v4150 = vld [vmem:[%s4080 + $0x228] sm:$0xff]
    %v4151 = vld [vmem:[%s4080 + $0x230] sm:$0xff]
    %v4152 = vld [vmem:[%s4080 + $0x238] sm:$0xff]
    %v4153 = vld [vmem:[%s4080 + $0x240] sm:$0xff]
    %v4154 = vld [vmem:[%s4080 + $0x248] sm:$0xff]
    %v4155 = vld [vmem:[%s4080 + $0x250] sm:$0xff]
    %v4156 = vld [vmem:[%s4080 + $0x258] sm:$0xff]
    %v4157 = vld [vmem:[%s4080 + $0x260] sm:$0xff]
    %v4158 = vld [vmem:[%s4080 + $0x268] sm:$0xff]
    %v4159 = vld [vmem:[%s4080 + $0x270] sm:$0xff]
    %v4160 = vld [vmem:[%s4080 + $0x278] sm:$0xff]
    %v4161 = vld [vmem:[%s4080 + $0x280] sm:$0xff]
    %v4162 = vld [vmem:[%s4080 + $0x288] sm:$0xff]
    %v4163 = vld [vmem:[%s4080 + $0x290] sm:$0xff]
    %v4164 = vld [vmem:[%s4080 + $0x298] sm:$0xff]
    %v4165 = vld [vmem:[%s4080 + $0x2a0] sm:$0xff]
    %v4166 = vld [vmem:[%s4080 + $0x2a8] sm:$0xff]
    %v4167 = vld [vmem:[%s4080 + $0x2b0] sm:$0xff]
    %v4168 = vld [vmem:[%s4080 + $0x2b8] sm:$0xff]
    %v4169 = vld [vmem:[%s4080 + $0x2c0] sm:$0xff]
    %v4170 = vld [vmem:[%s4080 + $0x2c8] sm:$0xff]
    %v4171 = vld [vmem:[%s4080 + $0x2d0] sm:$0xff]
    %v4172 = vld [vmem:[%s4080 + $0x2d8] sm:$0xff]
    %v4173 = vld [vmem:[%s4080 + $0x2e0] sm:$0xff]
    %v4174 = vld [vmem:[%s4080 + $0x2e8] sm:$0xff]
    %v4175 = vld [vmem:[%s4080 + $0x2f0] sm:$0xff]
    %v4176 = vld [vmem:[%s4080 + $0x2f8] sm:$0xff]
    %v4177 = vld [vmem:[%s4080 + $0x300] sm:$0xff]
    %v4178 = vld [vmem:[%s4080 + $0x308] sm:$0xff]
    %v4179 = vld [vmem:[%s4080 + $0x310] sm:$0xff]
    %v4180 = vld [vmem:[%s4080 + $0x318] sm:$0xff]
    %v4181 = vld [vmem:[%s4080 + $0x320] sm:$0xff]
    %v4182 = vld [vmem:[%s4080 + $0x328] sm:$0xff]
    %v4183 = vld [vmem:[%s4080 + $0x330] sm:$0xff]
    %v4184 = vld [vmem:[%s4080 + $0x338] sm:$0xff]
    %v4185 = vld [vmem:[%s4080 + $0x340] sm:$0xff]
    %v4186 = vld [vmem:[%s4080 + $0x348] sm:$0xff]
    %v4187 = vld [vmem:[%s4080 + $0x350] sm:$0xff]
    %v4188 = vld [vmem:[%s4080 + $0x358] sm:$0xff]
    %v4189 = vld [vmem:[%s4080 + $0x360] sm:$0xff]
    %v4190 = vld [vmem:[%s4080 + $0x368] sm:$0xff]
    %v4191 = vld [vmem:[%s4080 + $0x370] sm:$0xff]
    %v4192 = vld [vmem:[%s4080 + $0x378] sm:$0xff]
    %v4193 = vld [vmem:[%s4080 + $0x380] sm:$0xff]
    %v4194 = vld [vmem:[%s4080 + $0x388] sm:$0xff]
    %v4195 = vld [vmem:[%s4080 + $0x390] sm:$0xff]
    %v4196 = vld [vmem:[%s4080 + $0x398] sm:$0xff]
    %v4197 = vld [vmem:[%s4080 + $0x3a0] sm:$0xff]
    %v4198 = vld [vmem:[%s4080 + $0x3a8] sm:$0xff]
    %v4199 = vld [vmem:[%s4080 + $0x3b0] sm:$0xff]
    %v4200 = vld [vmem:[%s4080 + $0x3b8] sm:$0xff]
    %v4201 = vld [vmem:[%s4080 + $0x3c0] sm:$0xff]
    %v4202 = vld [vmem:[%s4080 + $0x3c8] sm:$0xff]
    %v4203 = vld [vmem:[%s4080 + $0x3d0] sm:$0xff]
    %v4204 = vld [vmem:[%s4080 + $0x3d8] sm:$0xff]
    %v4205 = vld [vmem:[%s4080 + $0x3e0] sm:$0xff]
    %v4206 = vld [vmem:[%s4080 + $0x3e8] sm:$0xff]
    %v4207 = vld [vmem:[%s4080 + $0x3f0] sm:$0xff]
    %v4208 = vld [vmem:[%s4080 + $0x3f8] sm:$0xff]
    %v4209 = vrot.slane %v3497, 4
    %v4210 = vrot.slane %v3498, 4
    %4213 = vmatprep.subr.mxu0 %v4082
    %4214 = vmatpush1.msra.mxu0 %v4081
    %4215 = vmatprep.subr.mxu0 %v4086
    %4216 = vmatpush1.msra.mxu0 %v4085
    %4217 = vmatprep.subr.mxu0 %v4090
    %4218 = vmatpush1.msra.mxu0 %v4089
    %4219 = vmatprep.subr.mxu0 %v4094
    %4220 = vmatpush1.msra.mxu0 %v4093
    %4221 = vmatprep.subr.mxu0 %v4098
    %4222 = vmatpush1.msra.mxu0 %v4097
    %4223 = vmatprep.subr.mxu0 %v4102
    %4224 = vmatpush1.msra.mxu0 %v4101
    %4225 = vmatprep.subr.mxu0 %v4106
    %4226 = vmatpush1.msra.mxu0 %v4105
    %4227 = vmatprep.subr.mxu0 %v4110
    %4228 = vmatpush1.msra.mxu0 %v4109
    %4229 = vmatprep.subr.mxu0 %v4114
    %4230 = vmatpush1.msra.mxu0 %v4113
    %4231 = vmatprep.subr.mxu0 %v4118
    %4232 = vmatpush1.msra.mxu0 %v4117
    %4233 = vmatprep.subr.mxu0 %v4122
    %4234 = vmatpush1.msra.mxu0 %v4121
    %4235 = vmatprep.subr.mxu0 %v4126
    %4236 = vmatpush1.msra.mxu0 %v4125
    %4237 = vmatprep.subr.mxu0 %v4130
    %4238 = vmatpush1.msra.mxu0 %v4129
    %4239 = vmatprep.subr.mxu0 %v4134
    %4240 = vmatpush1.msra.mxu0 %v4133
    %4241 = vmatprep.subr.mxu0 %v4138
    %4242 = vmatpush1.msra.mxu0 %v4137
    %4243 = vmatprep.subr.mxu0 %v4142
    %4244 = vmatpush1.msra.mxu0 %v4141
    %4245 = vmatprep.subr.mxu0 %v4146
    %4246 = vmatpush1.msra.mxu0 %v4145
    %4247 = vmatprep.subr.mxu0 %v4150
    %4248 = vmatpush1.msra.mxu0 %v4149
    %4249 = vmatprep.subr.mxu0 %v4154
    %4250 = vmatpush1.msra.mxu0 %v4153
    %4251 = vmatprep.subr.mxu0 %v4158
    %4252 = vmatpush1.msra.mxu0 %v4157
    %4253 = vmatprep.subr.mxu0 %v4162
    %4254 = vmatpush1.msra.mxu0 %v4161
    %4255 = vmatprep.subr.mxu0 %v4166
    %4256 = vmatpush1.msra.mxu0 %v4165
    %4257 = vmatprep.subr.mxu0 %v4170
    %4258 = vmatpush1.msra.mxu0 %v4169
    %4259 = vmatprep.subr.mxu0 %v4174
    %4260 = vmatpush1.msra.mxu0 %v4173
    %4261 = vmatprep.subr.mxu0 %v4178
    %4262 = vmatpush1.msra.mxu0 %v4177
    %4263 = vmatprep.subr.mxu0 %v4182
    %4264 = vmatpush1.msra.mxu0 %v4181
    %4265 = vmatprep.subr.mxu0 %v4186
    %4266 = vmatpush1.msra.mxu0 %v4185
    %4267 = vmatprep.subr.mxu0 %v4190
    %4268 = vmatpush1.msra.mxu0 %v4189
    %4269 = vmatprep.subr.mxu0 %v4194
    %4270 = vmatpush1.msra.mxu0 %v4193
    %4271 = vmatprep.subr.mxu0 %v4198
    %4272 = vmatpush1.msra.mxu0 %v4197
    %4273 = vmatprep.subr.mxu0 %v4202
    %4274 = vmatpush1.msra.mxu0 %v4201
    %4275 = vmatprep.subr.mxu0 %v4206
    %4276 = vmatpush1.msra.mxu0 %v4205
    %4277 = vmatprep.mubr.f32.mxu0 %v4210
    %4278 = vmatmul.mubr.f32.gmra.mrb[0].mxu0 %v4209
    %v4279 = vpop.f32.mrb[0].mxu0
    %v4280 = vadd.f32 0.0, %v4279
    %v4281 = vpop.f32.mrb[0].mxu0
    %v4282 = vadd.f32 0.0, %v4281
    %4283 = vdwg.mxu0
    %4284 = vmatprep.subr.mxu0 %v4084
    %4285 = vmatpush1.msra.mxu0 %v4083
    %4286 = vmatprep.subr.mxu0 %v4088
    %4287 = vmatpush1.msra.mxu0 %v4087
    %4288 = vmatprep.subr.mxu0 %v4092
    %4289 = vmatpush1.msra.mxu0 %v4091
    %4290 = vmatprep.subr.mxu0 %v4096
    %4291 = vmatpush1.msra.mxu0 %v4095
    %4292 = vmatprep.subr.mxu0 %v4100
    %4293 = vmatpush1.msra.mxu0 %v4099
    %4294 = vmatprep.subr.mxu0 %v4104
    %4295 = vmatpush1.msra.mxu0 %v4103
    %4296 = vmatprep.subr.mxu0 %v4108
    %4297 = vmatpush1.msra.mxu0 %v4107
    %4298 = vmatprep.subr.mxu0 %v4112
    %4299 = vmatpush1.msra.mxu0 %v4111
    %4300 = vmatprep.subr.mxu0 %v4116
    %4301 = vmatpush1.msra.mxu0 %v4115
    %4302 = vmatprep.subr.mxu0 %v4120
    %4303 = vmatpush1.msra.mxu0 %v4119
    %4304 = vmatprep.subr.mxu0 %v4124
    %4305 = vmatpush1.msra.mxu0 %v4123
    %4306 = vmatprep.subr.mxu0 %v4128
    %4307 = vmatpush1.msra.mxu0 %v4127
    %4308 = vmatprep.subr.mxu0 %v4132
    %4309 = vmatpush1.msra.mxu0 %v4131
    %4310 = vmatprep.subr.mxu0 %v4136
    %4311 = vmatpush1.msra.mxu0 %v4135
    %4312 = vmatprep.subr.mxu0 %v4140
    %4313 = vmatpush1.msra.mxu0 %v4139
    %4314 = vmatprep.subr.mxu0 %v4144
    %4315 = vmatpush1.msra.mxu0 %v4143
    %4316 = vmatprep.subr.mxu0 %v4148
    %4317 = vmatpush1.msra.mxu0 %v4147
    %4318 = vmatprep.subr.mxu0 %v4152
    %4319 = vmatpush1.msra.mxu0 %v4151
    %4320 = vmatprep.subr.mxu0 %v4156
    %4321 = vmatpush1.msra.mxu0 %v4155
    %4322 = vmatprep.subr.mxu0 %v4160
    %4323 = vmatpush1.msra.mxu0 %v4159
    %4324 = vmatprep.subr.mxu0 %v4164
    %4325 = vmatpush1.msra.mxu0 %v4163
    %4326 = vmatprep.subr.mxu0 %v4168
    %4327 = vmatpush1.msra.mxu0 %v4167
    %4328 = vmatprep.subr.mxu0 %v4172
    %4329 = vmatpush1.msra.mxu0 %v4171
    %4330 = vmatprep.subr.mxu0 %v4176
    %4331 = vmatpush1.msra.mxu0 %v4175
    %4332 = vmatprep.subr.mxu0 %v4180
    %4333 = vmatpush1.msra.mxu0 %v4179
    %4334 = vmatprep.subr.mxu0 %v4184
    %4335 = vmatpush1.msra.mxu0 %v4183
    %4336 = vmatprep.subr.mxu0 %v4188
    %4337 = vmatpush1.msra.mxu0 %v4187
    %4338 = vmatprep.subr.mxu0 %v4192
    %4339 = vmatpush1.msra.mxu0 %v4191
    %4340 = vmatprep.subr.mxu0 %v4196
    %4341 = vmatpush1.msra.mxu0 %v4195
    %4342 = vmatprep.subr.mxu0 %v4200
    %4343 = vmatpush1.msra.mxu0 %v4199
    %4344 = vmatprep.subr.mxu0 %v4204
    %4345 = vmatpush1.msra.mxu0 %v4203
    %4346 = vmatprep.subr.mxu0 %v4208
    %4347 = vmatpush1.msra.mxu0 %v4207
    %4348 = vmatprep.mubr.f32.mxu0 %v4210
    %4349 = vmatmul.mubr.f32.gmra.mrb[0].mxu0 %v4209
    %v4350 = vpop.f32.mrb[0].mxu0
    %v4351 = vadd.f32 0.0, %v4350
    %v4352 = vpop.f32.mrb[0].mxu0
    %v4353 = vadd.f32 0.0, %v4352
    %4354 = vdwg.mxu0
    %v4355 = vadd.f32 %v4076, %v4280
    %v4356 = vadd.f32 %v4077, %v4282
    %v4357 = vadd.f32 %v4078, %v4351
    %v4358 = vadd.f32 %v4079, %v4353
    %s4359 = scalar_lea.vmem [#allocation16], 3072
    %v4360 = vld [vmem:[%s4359] sm:$0xff]
    %v4361 = vld [vmem:[%s4359 + $0x8] sm:$0xff]
    %v4362 = vld [vmem:[%s4359 + $0x10] sm:$0xff]
    %v4363 = vld [vmem:[%s4359 + $0x18] sm:$0xff]
    %v4364 = vld [vmem:[%s4359 + $0x20] sm:$0xff]
    %v4365 = vld [vmem:[%s4359 + $0x28] sm:$0xff]
    %v4366 = vld [vmem:[%s4359 + $0x30] sm:$0xff]
    %v4367 = vld [vmem:[%s4359 + $0x38] sm:$0xff]
    %v4368 = vld [vmem:[%s4359 + $0x40] sm:$0xff]
    %v4369 = vld [vmem:[%s4359 + $0x48] sm:$0xff]
    %v4370 = vld [vmem:[%s4359 + $0x50] sm:$0xff]
    %v4371 = vld [vmem:[%s4359 + $0x58] sm:$0xff]
    %v4372 = vld [vmem:[%s4359 + $0x60] sm:$0xff]
    %v4373 = vld [vmem:[%s4359 + $0x68] sm:$0xff]
    %v4374 = vld [vmem:[%s4359 + $0x70] sm:$0xff]
    %v4375 = vld [vmem:[%s4359 + $0x78] sm:$0xff]
    %v4376 = vld [vmem:[%s4359 + $0x80] sm:$0xff]
    %v4377 = vld [vmem:[%s4359 + $0x88] sm:$0xff]
    %v4378 = vld [vmem:[%s4359 + $0x90] sm:$0xff]
    %v4379 = vld [vmem:[%s4359 + $0x98] sm:$0xff]
    %v4380 = vld [vmem:[%s4359 + $0xa0] sm:$0xff]
    %v4381 = vld [vmem:[%s4359 + $0xa8] sm:$0xff]
    %v4382 = vld [vmem:[%s4359 + $0xb0] sm:$0xff]
    %v4383 = vld [vmem:[%s4359 + $0xb8] sm:$0xff]
    %v4384 = vld [vmem:[%s4359 + $0xc0] sm:$0xff]
    %v4385 = vld [vmem:[%s4359 + $0xc8] sm:$0xff]
    %v4386 = vld [vmem:[%s4359 + $0xd0] sm:$0xff]
    %v4387 = vld [vmem:[%s4359 + $0xd8] sm:$0xff]
    %v4388 = vld [vmem:[%s4359 + $0xe0] sm:$0xff]
    %v4389 = vld [vmem:[%s4359 + $0xe8] sm:$0xff]
    %v4390 = vld [vmem:[%s4359 + $0xf0] sm:$0xff]
    %v4391 = vld [vmem:[%s4359 + $0xf8] sm:$0xff]
    %v4392 = vld [vmem:[%s4359 + $0x100] sm:$0xff]
    %v4393 = vld [vmem:[%s4359 + $0x108] sm:$0xff]
    %v4394 = vld [vmem:[%s4359 + $0x110] sm:$0xff]
    %v4395 = vld [vmem:[%s4359 + $0x118] sm:$0xff]
    %v4396 = vld [vmem:[%s4359 + $0x120] sm:$0xff]
    %v4397 = vld [vmem:[%s4359 + $0x128] sm:$0xff]
    %v4398 = vld [vmem:[%s4359 + $0x130] sm:$0xff]
    %v4399 = vld [vmem:[%s4359 + $0x138] sm:$0xff]
    %v4400 = vld [vmem:[%s4359 + $0x140] sm:$0xff]
    %v4401 = vld [vmem:[%s4359 + $0x148] sm:$0xff]
    %v4402 = vld [vmem:[%s4359 + $0x150] sm:$0xff]
    %v4403 = vld [vmem:[%s4359 + $0x158] sm:$0xff]
    %v4404 = vld [vmem:[%s4359 + $0x160] sm:$0xff]
    %v4405 = vld [vmem:[%s4359 + $0x168] sm:$0xff]
    %v4406 = vld [vmem:[%s4359 + $0x170] sm:$0xff]
    %v4407 = vld [vmem:[%s4359 + $0x178] sm:$0xff]
    %v4408 = vld [vmem:[%s4359 + $0x180] sm:$0xff]
    %v4409 = vld [vmem:[%s4359 + $0x188] sm:$0xff]
    %v4410 = vld [vmem:[%s4359 + $0x190] sm:$0xff]
    %v4411 = vld [vmem:[%s4359 + $0x198] sm:$0xff]
    %v4412 = vld [vmem:[%s4359 + $0x1a0] sm:$0xff]
    %v4413 = vld [vmem:[%s4359 + $0x1a8] sm:$0xff]
    %v4414 = vld [vmem:[%s4359 + $0x1b0] sm:$0xff]
    %v4415 = vld [vmem:[%s4359 + $0x1b8] sm:$0xff]
    %v4416 = vld [vmem:[%s4359 + $0x1c0] sm:$0xff]
    %v4417 = vld [vmem:[%s4359 + $0x1c8] sm:$0xff]
    %v4418 = vld [vmem:[%s4359 + $0x1d0] sm:$0xff]
    %v4419 = vld [vmem:[%s4359 + $0x1d8] sm:$0xff]
    %v4420 = vld [vmem:[%s4359 + $0x1e0] sm:$0xff]
    %v4421 = vld [vmem:[%s4359 + $0x1e8] sm:$0xff]
    %v4422 = vld [vmem:[%s4359 + $0x1f0] sm:$0xff]
    %v4423 = vld [vmem:[%s4359 + $0x1f8] sm:$0xff]
    %v4424 = vld [vmem:[%s4359 + $0x200] sm:$0xff]
    %v4425 = vld [vmem:[%s4359 + $0x208] sm:$0xff]
    %v4426 = vld [vmem:[%s4359 + $0x210] sm:$0xff]
    %v4427 = vld [vmem:[%s4359 + $0x218] sm:$0xff]
    %v4428 = vld [vmem:[%s4359 + $0x220] sm:$0xff]
    %v4429 = vld [vmem:[%s4359 + $0x228] sm:$0xff]
    %v4430 = vld [vmem:[%s4359 + $0x230] sm:$0xff]
    %v4431 = vld [vmem:[%s4359 + $0x238] sm:$0xff]
    %v4432 = vld [vmem:[%s4359 + $0x240] sm:$0xff]
    %v4433 = vld [vmem:[%s4359 + $0x248] sm:$0xff]
    %v4434 = vld [vmem:[%s4359 + $0x250] sm:$0xff]
    %v4435 = vld [vmem:[%s4359 + $0x258] sm:$0xff]
    %v4436 = vld [vmem:[%s4359 + $0x260] sm:$0xff]
    %v4437 = vld [vmem:[%s4359 + $0x268] sm:$0xff]
    %v4438 = vld [vmem:[%s4359 + $0x270] sm:$0xff]
    %v4439 = vld [vmem:[%s4359 + $0x278] sm:$0xff]
    %v4440 = vld [vmem:[%s4359 + $0x280] sm:$0xff]
    %v4441 = vld [vmem:[%s4359 + $0x288] sm:$0xff]
    %v4442 = vld [vmem:[%s4359 + $0x290] sm:$0xff]
    %v4443 = vld [vmem:[%s4359 + $0x298] sm:$0xff]
    %v4444 = vld [vmem:[%s4359 + $0x2a0] sm:$0xff]
    %v4445 = vld [vmem:[%s4359 + $0x2a8] sm:$0xff]
    %v4446 = vld [vmem:[%s4359 + $0x2b0] sm:$0xff]
    %v4447 = vld [vmem:[%s4359 + $0x2b8] sm:$0xff]
    %v4448 = vld [vmem:[%s4359 + $0x2c0] sm:$0xff]
    %v4449 = vld [vmem:[%s4359 + $0x2c8] sm:$0xff]
    %v4450 = vld [vmem:[%s4359 + $0x2d0] sm:$0xff]
    %v4451 = vld [vmem:[%s4359 + $0x2d8] sm:$0xff]
    %v4452 = vld [vmem:[%s4359 + $0x2e0] sm:$0xff]
    %v4453 = vld [vmem:[%s4359 + $0x2e8] sm:$0xff]
    %v4454 = vld [vmem:[%s4359 + $0x2f0] sm:$0xff]
    %v4455 = vld [vmem:[%s4359 + $0x2f8] sm:$0xff]
    %v4456 = vld [vmem:[%s4359 + $0x300] sm:$0xff]
    %v4457 = vld [vmem:[%s4359 + $0x308] sm:$0xff]
    %v4458 = vld [vmem:[%s4359 + $0x310] sm:$0xff]
    %v4459 = vld [vmem:[%s4359 + $0x318] sm:$0xff]
    %v4460 = vld [vmem:[%s4359 + $0x320] sm:$0xff]
    %v4461 = vld [vmem:[%s4359 + $0x328] sm:$0xff]
    %v4462 = vld [vmem:[%s4359 + $0x330] sm:$0xff]
    %v4463 = vld [vmem:[%s4359 + $0x338] sm:$0xff]
    %v4464 = vld [vmem:[%s4359 + $0x340] sm:$0xff]
    %v4465 = vld [vmem:[%s4359 + $0x348] sm:$0xff]
    %v4466 = vld [vmem:[%s4359 + $0x350] sm:$0xff]
    %v4467 = vld [vmem:[%s4359 + $0x358] sm:$0xff]
    %v4468 = vld [vmem:[%s4359 + $0x360] sm:$0xff]
    %v4469 = vld [vmem:[%s4359 + $0x368] sm:$0xff]
    %v4470 = vld [vmem:[%s4359 + $0x370] sm:$0xff]
    %v4471 = vld [vmem:[%s4359 + $0x378] sm:$0xff]
    %v4472 = vld [vmem:[%s4359 + $0x380] sm:$0xff]
    %v4473 = vld [vmem:[%s4359 + $0x388] sm:$0xff]
    %v4474 = vld [vmem:[%s4359 + $0x390] sm:$0xff]
    %v4475 = vld [vmem:[%s4359 + $0x398] sm:$0xff]
    %v4476 = vld [vmem:[%s4359 + $0x3a0] sm:$0xff]
    %v4477 = vld [vmem:[%s4359 + $0x3a8] sm:$0xff]
    %v4478 = vld [vmem:[%s4359 + $0x3b0] sm:$0xff]
    %v4479 = vld [vmem:[%s4359 + $0x3b8] sm:$0xff]
    %v4480 = vld [vmem:[%s4359 + $0x3c0] sm:$0xff]
    %v4481 = vld [vmem:[%s4359 + $0x3c8] sm:$0xff]
    %v4482 = vld [vmem:[%s4359 + $0x3d0] sm:$0xff]
    %v4483 = vld [vmem:[%s4359 + $0x3d8] sm:$0xff]
    %v4484 = vld [vmem:[%s4359 + $0x3e0] sm:$0xff]
    %v4485 = vld [vmem:[%s4359 + $0x3e8] sm:$0xff]
    %v4486 = vld [vmem:[%s4359 + $0x3f0] sm:$0xff]
    %v4487 = vld [vmem:[%s4359 + $0x3f8] sm:$0xff]
    %v4488 = vrot.slane %v3497, 6
    %v4489 = vrot.slane %v3498, 6
    %4492 = vmatprep.subr.mxu0 %v4361
    %4493 = vmatpush1.msra.mxu0 %v4360
    %4494 = vmatprep.subr.mxu0 %v4365
    %4495 = vmatpush1.msra.mxu0 %v4364
    %4496 = vmatprep.subr.mxu0 %v4369
    %4497 = vmatpush1.msra.mxu0 %v4368
    %4498 = vmatprep.subr.mxu0 %v4373
    %4499 = vmatpush1.msra.mxu0 %v4372
    %4500 = vmatprep.subr.mxu0 %v4377
    %4501 = vmatpush1.msra.mxu0 %v4376
    %4502 = vmatprep.subr.mxu0 %v4381
    %4503 = vmatpush1.msra.mxu0 %v4380
    %4504 = vmatprep.subr.mxu0 %v4385
    %4505 = vmatpush1.msra.mxu0 %v4384
    %4506 = vmatprep.subr.mxu0 %v4389
    %4507 = vmatpush1.msra.mxu0 %v4388
    %4508 = vmatprep.subr.mxu0 %v4393
    %4509 = vmatpush1.msra.mxu0 %v4392
    %4510 = vmatprep.subr.mxu0 %v4397
    %4511 = vmatpush1.msra.mxu0 %v4396
    %4512 = vmatprep.subr.mxu0 %v4401
    %4513 = vmatpush1.msra.mxu0 %v4400
    %4514 = vmatprep.subr.mxu0 %v4405
    %4515 = vmatpush1.msra.mxu0 %v4404
    %4516 = vmatprep.subr.mxu0 %v4409
    %4517 = vmatpush1.msra.mxu0 %v4408
    %4518 = vmatprep.subr.mxu0 %v4413
    %4519 = vmatpush1.msra.mxu0 %v4412
    %4520 = vmatprep.subr.mxu0 %v4417
    %4521 = vmatpush1.msra.mxu0 %v4416
    %4522 = vmatprep.subr.mxu0 %v4421
    %4523 = vmatpush1.msra.mxu0 %v4420
    %4524 = vmatprep.subr.mxu0 %v4425
    %4525 = vmatpush1.msra.mxu0 %v4424
    %4526 = vmatprep.subr.mxu0 %v4429
    %4527 = vmatpush1.msra.mxu0 %v4428
    %4528 = vmatprep.subr.mxu0 %v4433
    %4529 = vmatpush1.msra.mxu0 %v4432
    %4530 = vmatprep.subr.mxu0 %v4437
    %4531 = vmatpush1.msra.mxu0 %v4436
    %4532 = vmatprep.subr.mxu0 %v4441
    %4533 = vmatpush1.msra.mxu0 %v4440
    %4534 = vmatprep.subr.mxu0 %v4445
    %4535 = vmatpush1.msra.mxu0 %v4444
    %4536 = vmatprep.subr.mxu0 %v4449
    %4537 = vmatpush1.msra.mxu0 %v4448
    %4538 = vmatprep.subr.mxu0 %v4453
    %4539 = vmatpush1.msra.mxu0 %v4452
    %4540 = vmatprep.subr.mxu0 %v4457
    %4541 = vmatpush1.msra.mxu0 %v4456
    %4542 = vmatprep.subr.mxu0 %v4461
    %4543 = vmatpush1.msra.mxu0 %v4460
    %4544 = vmatprep.subr.mxu0 %v4465
    %4545 = vmatpush1.msra.mxu0 %v4464
    %4546 = vmatprep.subr.mxu0 %v4469
    %4547 = vmatpush1.msra.mxu0 %v4468
    %4548 = vmatprep.subr.mxu0 %v4473
    %4549 = vmatpush1.msra.mxu0 %v4472
    %4550 = vmatprep.subr.mxu0 %v4477
    %4551 = vmatpush1.msra.mxu0 %v4476
    %4552 = vmatprep.subr.mxu0 %v4481
    %4553 = vmatpush1.msra.mxu0 %v4480
    %4554 = vmatprep.subr.mxu0 %v4485
    %4555 = vmatpush1.msra.mxu0 %v4484
    %4556 = vmatprep.mubr.f32.mxu0 %v4489
    %4557 = vmatmul.mubr.f32.gmra.mrb[0].mxu0 %v4488
    %v4558 = vpop.f32.mrb[0].mxu0
    %v4559 = vadd.f32 0.0, %v4558
    %v4560 = vpop.f32.mrb[0].mxu0
    %v4561 = vadd.f32 0.0, %v4560
    %4562 = vdwg.mxu0
    %4563 = vmatprep.subr.mxu0 %v4363
    %4564 = vmatpush1.msra.mxu0 %v4362
    %4565 = vmatprep.subr.mxu0 %v4367
    %4566 = vmatpush1.msra.mxu0 %v4366
    %4567 = vmatprep.subr.mxu0 %v4371
    %4568 = vmatpush1.msra.mxu0 %v4370
    %4569 = vmatprep.subr.mxu0 %v4375
    %4570 = vmatpush1.msra.mxu0 %v4374
    %4571 = vmatprep.subr.mxu0 %v4379
    %4572 = vmatpush1.msra.mxu0 %v4378
    %4573 = vmatprep.subr.mxu0 %v4383
    %4574 = vmatpush1.msra.mxu0 %v4382
    %4575 = vmatprep.subr.mxu0 %v4387
    %4576 = vmatpush1.msra.mxu0 %v4386
    %4577 = vmatprep.subr.mxu0 %v4391
    %4578 = vmatpush1.msra.mxu0 %v4390
    %4579 = vmatprep.subr.mxu0 %v4395
    %4580 = vmatpush1.msra.mxu0 %v4394
    %4581 = vmatprep.subr.mxu0 %v4399
    %4582 = vmatpush1.msra.mxu0 %v4398
    %4583 = vmatprep.subr.mxu0 %v4403
    %4584 = vmatpush1.msra.mxu0 %v4402
    %4585 = vmatprep.subr.mxu0 %v4407
    %4586 = vmatpush1.msra.mxu0 %v4406
    %4587 = vmatprep.subr.mxu0 %v4411
    %4588 = vmatpush1.msra.mxu0 %v4410
    %4589 = vmatprep.subr.mxu0 %v4415
    %4590 = vmatpush1.msra.mxu0 %v4414
    %4591 = vmatprep.subr.mxu0 %v4419
    %4592 = vmatpush1.msra.mxu0 %v4418
    %4593 = vmatprep.subr.mxu0 %v4423
    %4594 = vmatpush1.msra.mxu0 %v4422
    %4595 = vmatprep.subr.mxu0 %v4427
    %4596 = vmatpush1.msra.mxu0 %v4426
    %4597 = vmatprep.subr.mxu0 %v4431
    %4598 = vmatpush1.msra.mxu0 %v4430
    %4599 = vmatprep.subr.mxu0 %v4435
    %4600 = vmatpush1.msra.mxu0 %v4434
    %4601 = vmatprep.subr.mxu0 %v4439
    %4602 = vmatpush1.msra.mxu0 %v4438
    %4603 = vmatprep.subr.mxu0 %v4443
    %4604 = vmatpush1.msra.mxu0 %v4442
    %4605 = vmatprep.subr.mxu0 %v4447
    %4606 = vmatpush1.msra.mxu0 %v4446
    %4607 = vmatprep.subr.mxu0 %v4451
    %4608 = vmatpush1.msra.mxu0 %v4450
    %4609 = vmatprep.subr.mxu0 %v4455
    %4610 = vmatpush1.msra.mxu0 %v4454
    %4611 = vmatprep.subr.mxu0 %v4459
    %4612 = vmatpush1.msra.mxu0 %v4458
    %4613 = vmatprep.subr.mxu0 %v4463
    %4614 = vmatpush1.msra.mxu0 %v4462
    %4615 = vmatprep.subr.mxu0 %v4467
    %4616 = vmatpush1.msra.mxu0 %v4466
    %4617 = vmatprep.subr.mxu0 %v4471
    %4618 = vmatpush1.msra.mxu0 %v4470
    %4619 = vmatprep.subr.mxu0 %v4475
    %4620 = vmatpush1.msra.mxu0 %v4474
    %4621 = vmatprep.subr.mxu0 %v4479
    %4622 = vmatpush1.msra.mxu0 %v4478
    %4623 = vmatprep.subr.mxu0 %v4483
    %4624 = vmatpush1.msra.mxu0 %v4482
    %4625 = vmatprep.subr.mxu0 %v4487
    %4626 = vmatpush1.msra.mxu0 %v4486
    %4627 = vmatprep.mubr.f32.mxu0 %v4489
    %4628 = vmatmul.mubr.f32.gmra.mrb[0].mxu0 %v4488
    %v4629 = vpop.f32.mrb[0].mxu0
    %v4630 = vadd.f32 0.0, %v4629
    %v4631 = vpop.f32.mrb[0].mxu0
    %v4632 = vadd.f32 0.0, %v4631
    %4633 = vdwg.mxu0
    %v4634 = vadd.f32 %v4355, %v4559
    %v4635 = vadd.f32 %v4356, %v4561
    %v4636 = vadd.f32 %v4357, %v4630
    %v4637 = vadd.f32 %v4358, %v4632
    %v4638 = vmax.f32 %v4634, 0.0
    %v4639 = vmax.f32 %v4635, 0.0
    %v4640 = vmax.f32 %v4636, 0.0
    %v4641 = vmax.f32 %v4637, 0.0
    %v4642 = vld [vmem:[%s11] sm:$0xff]
    %v4643 = vld [vmem:[%s11 + $0x8] sm:$0xff]
    %v4644 = vld [vmem:[%s11 + $0x10] sm:$0xff]
    %v4645 = vld [vmem:[%s11 + $0x18] sm:$0xff]
    %v4646 = vld [vmem:[%s11 + $0x20] sm:$0xff]
    %v4647 = vld [vmem:[%s11 + $0x28] sm:$0xff]
    %v4648 = vld [vmem:[%s11 + $0x30] sm:$0xff]
    %v4649 = vld [vmem:[%s11 + $0x38] sm:$0xff]
    %v4650 = vld [vmem:[%s11 + $0x40] sm:$0xff]
    %v4651 = vld [vmem:[%s11 + $0x48] sm:$0xff]
    %v4652 = vld [vmem:[%s11 + $0x50] sm:$0xff]
    %v4653 = vld [vmem:[%s11 + $0x58] sm:$0xff]
    %v4654 = vld [vmem:[%s11 + $0x60] sm:$0xff]
    %v4655 = vld [vmem:[%s11 + $0x68] sm:$0xff]
    %v4656 = vld [vmem:[%s11 + $0x70] sm:$0xff]
    %v4657 = vld [vmem:[%s11 + $0x78] sm:$0xff]
    %v4658 = vld [vmem:[%s11 + $0x80] sm:$0xff]
    %v4659 = vld [vmem:[%s11 + $0x88] sm:$0xff]
    %v4660 = vld [vmem:[%s11 + $0x90] sm:$0xff]
    %v4661 = vld [vmem:[%s11 + $0x98] sm:$0xff]
    %v4662 = vld [vmem:[%s11 + $0xa0] sm:$0xff]
    %v4663 = vld [vmem:[%s11 + $0xa8] sm:$0xff]
    %v4664 = vld [vmem:[%s11 + $0xb0] sm:$0xff]
    %v4665 = vld [vmem:[%s11 + $0xb8] sm:$0xff]
    %v4666 = vld [vmem:[%s11 + $0xc0] sm:$0xff]
    %v4667 = vld [vmem:[%s11 + $0xc8] sm:$0xff]
    %v4668 = vld [vmem:[%s11 + $0xd0] sm:$0xff]
    %v4669 = vld [vmem:[%s11 + $0xd8] sm:$0xff]
    %v4670 = vld [vmem:[%s11 + $0xe0] sm:$0xff]
    %v4671 = vld [vmem:[%s11 + $0xe8] sm:$0xff]
    %v4672 = vld [vmem:[%s11 + $0xf0] sm:$0xff]
    %v4673 = vld [vmem:[%s11 + $0xf8] sm:$0xff]
    %v4674 = vld [vmem:[%s11 + $0x100] sm:$0xff]
    %v4675 = vld [vmem:[%s11 + $0x108] sm:$0xff]
    %v4676 = vld [vmem:[%s11 + $0x110] sm:$0xff]
    %v4677 = vld [vmem:[%s11 + $0x118] sm:$0xff]
    %v4678 = vld [vmem:[%s11 + $0x120] sm:$0xff]
    %v4679 = vld [vmem:[%s11 + $0x128] sm:$0xff]
    %v4680 = vld [vmem:[%s11 + $0x130] sm:$0xff]
    %v4681 = vld [vmem:[%s11 + $0x138] sm:$0xff]
    %v4682 = vld [vmem:[%s11 + $0x140] sm:$0xff]
    %v4683 = vld [vmem:[%s11 + $0x148] sm:$0xff]
    %v4684 = vld [vmem:[%s11 + $0x150] sm:$0xff]
    %v4685 = vld [vmem:[%s11 + $0x158] sm:$0xff]
    %v4686 = vld [vmem:[%s11 + $0x160] sm:$0xff]
    %v4687 = vld [vmem:[%s11 + $0x168] sm:$0xff]
    %v4688 = vld [vmem:[%s11 + $0x170] sm:$0xff]
    %v4689 = vld [vmem:[%s11 + $0x178] sm:$0xff]
    %v4690 = vld [vmem:[%s11 + $0x180] sm:$0xff]
    %v4691 = vld [vmem:[%s11 + $0x188] sm:$0xff]
    %v4692 = vld [vmem:[%s11 + $0x190] sm:$0xff]
    %v4693 = vld [vmem:[%s11 + $0x198] sm:$0xff]
    %v4694 = vld [vmem:[%s11 + $0x1a0] sm:$0xff]
    %v4695 = vld [vmem:[%s11 + $0x1a8] sm:$0xff]
    %v4696 = vld [vmem:[%s11 + $0x1b0] sm:$0xff]
    %v4697 = vld [vmem:[%s11 + $0x1b8] sm:$0xff]
    %v4698 = vld [vmem:[%s11 + $0x1c0] sm:$0xff]
    %v4699 = vld [vmem:[%s11 + $0x1c8] sm:$0xff]
    %v4700 = vld [vmem:[%s11 + $0x1d0] sm:$0xff]
    %v4701 = vld [vmem:[%s11 + $0x1d8] sm:$0xff]
    %v4702 = vld [vmem:[%s11 + $0x1e0] sm:$0xff]
    %v4703 = vld [vmem:[%s11 + $0x1e8] sm:$0xff]
    %v4704 = vld [vmem:[%s11 + $0x1f0] sm:$0xff]
    %v4705 = vld [vmem:[%s11 + $0x1f8] sm:$0xff]
    %v4706 = vld [vmem:[#allocation19] sm:$0x1]
    %v4708 = vlaneseq
    %v4709 = vshrl.u32 %v4708, 7
    %v4710 = vsub.s32 0, %v4709
    %v4711 = vrot.slane %v4706, %v4710
    %4713 = vmatprep.subr.mxu0 0.0
    %4714 = vmatpush1.msra.mxu0 %v4642
    %4715 = vmatprep.subr.mxu0 0.0
    %4716 = vmatpush1.msra.mxu0 %v4643
    %4717 = vmatprep.subr.mxu0 0.0
    %4718 = vmatpush1.msra.mxu0 %v4644
    %4719 = vmatprep.subr.mxu0 0.0
    %4720 = vmatpush1.msra.mxu0 %v4645
    %4721 = vmatprep.subr.mxu0 0.0
    %4722 = vmatpush1.msra.mxu0 %v4646
    %4723 = vmatprep.subr.mxu0 0.0
    %4724 = vmatpush1.msra.mxu0 %v4647
    %4725 = vmatprep.subr.mxu0 0.0
    %4726 = vmatpush1.msra.mxu0 %v4648
    %4727 = vmatprep.subr.mxu0 0.0
    %4728 = vmatpush1.msra.mxu0 %v4649
    %4729 = vmatprep.subr.mxu0 0.0
    %4730 = vmatpush1.msra.mxu0 %v4650
    %4731 = vmatprep.subr.mxu0 0.0
    %4732 = vmatpush1.msra.mxu0 %v4651
    %4733 = vmatprep.subr.mxu0 0.0
    %4734 = vmatpush1.msra.mxu0 %v4652
    %4735 = vmatprep.subr.mxu0 0.0
    %4736 = vmatpush1.msra.mxu0 %v4653
    %4737 = vmatprep.subr.mxu0 0.0
    %4738 = vmatpush1.msra.mxu0 %v4654
    %4739 = vmatprep.subr.mxu0 0.0
    %4740 = vmatpush1.msra.mxu0 %v4655
    %4741 = vmatprep.subr.mxu0 0.0
    %4742 = vmatpush1.msra.mxu0 %v4656
    %4743 = vmatprep.subr.mxu0 0.0
    %4744 = vmatpush1.msra.mxu0 %v4657
    %4745 = vmatprep.subr.mxu0 0.0
    %4746 = vmatpush1.msra.mxu0 %v4658
    %4747 = vmatprep.subr.mxu0 0.0
    %4748 = vmatpush1.msra.mxu0 %v4659
    %4749 = vmatprep.subr.mxu0 0.0
    %4750 = vmatpush1.msra.mxu0 %v4660
    %4751 = vmatprep.subr.mxu0 0.0
    %4752 = vmatpush1.msra.mxu0 %v4661
    %4753 = vmatprep.subr.mxu0 0.0
    %4754 = vmatpush1.msra.mxu0 %v4662
    %4755 = vmatprep.subr.mxu0 0.0
    %4756 = vmatpush1.msra.mxu0 %v4663
    %4757 = vmatprep.subr.mxu0 0.0
    %4758 = vmatpush1.msra.mxu0 %v4664
    %4759 = vmatprep.subr.mxu0 0.0
    %4760 = vmatpush1.msra.mxu0 %v4665
    %4761 = vmatprep.subr.mxu0 0.0
    %4762 = vmatpush1.msra.mxu0 %v4666
    %4763 = vmatprep.subr.mxu0 0.0
    %4764 = vmatpush1.msra.mxu0 %v4667
    %4765 = vmatprep.subr.mxu0 0.0
    %4766 = vmatpush1.msra.mxu0 %v4668
    %4767 = vmatprep.subr.mxu0 0.0
    %4768 = vmatpush1.msra.mxu0 %v4669
    %4769 = vmatprep.subr.mxu0 0.0
    %4770 = vmatpush1.msra.mxu0 %v4670
    %4771 = vmatprep.subr.mxu0 0.0
    %4772 = vmatpush1.msra.mxu0 %v4671
    %4773 = vmatprep.subr.mxu0 0.0
    %4774 = vmatpush1.msra.mxu0 %v4672
    %4775 = vmatprep.subr.mxu0 0.0
    %4776 = vmatpush1.msra.mxu0 %v4673
    %4777 = vmatprep.mubr.f32.mxu0 %v4639
    %4778 = vmatmul.mubr.f32.gmra.mrb[0].mxu0 %v4638
    %v4779 = vpop.f32.mrb[0].mxu0
    %v4780 = vadd.f32 %v4711, %v4779
    %v4781 = vpop.f32.mrb[0].mxu0
    %4782 = vdwg.mxu0
    %4783 = vmatprep.subr.mxu0 0.0
    %4784 = vmatpush1.msra.mxu0 %v4674
    %4785 = vmatprep.subr.mxu0 0.0
    %4786 = vmatpush1.msra.mxu0 %v4675
    %4787 = vmatprep.subr.mxu0 0.0
    %4788 = vmatpush1.msra.mxu0 %v4676
    %4789 = vmatprep.subr.mxu0 0.0
    %4790 = vmatpush1.msra.mxu0 %v4677
    %4791 = vmatprep.subr.mxu0 0.0
    %4792 = vmatpush1.msra.mxu0 %v4678
    %4793 = vmatprep.subr.mxu0 0.0
    %4794 = vmatpush1.msra.mxu0 %v4679
    %4795 = vmatprep.subr.mxu0 0.0
    %4796 = vmatpush1.msra.mxu0 %v4680
    %4797 = vmatprep.subr.mxu0 0.0
    %4798 = vmatpush1.msra.mxu0 %v4681
    %4799 = vmatprep.subr.mxu0 0.0
    %4800 = vmatpush1.msra.mxu0 %v4682
    %4801 = vmatprep.subr.mxu0 0.0
    %4802 = vmatpush1.msra.mxu0 %v4683
    %4803 = vmatprep.subr.mxu0 0.0
    %4804 = vmatpush1.msra.mxu0 %v4684
    %4805 = vmatprep.subr.mxu0 0.0
    %4806 = vmatpush1.msra.mxu0 %v4685
    %4807 = vmatprep.subr.mxu0 0.0
    %4808 = vmatpush1.msra.mxu0 %v4686
    %4809 = vmatprep.subr.mxu0 0.0
    %4810 = vmatpush1.msra.mxu0 %v4687
    %4811 = vmatprep.subr.mxu0 0.0
    %4812 = vmatpush1.msra.mxu0 %v4688
    %4813 = vmatprep.subr.mxu0 0.0
    %4814 = vmatpush1.msra.mxu0 %v4689
    %4815 = vmatprep.subr.mxu0 0.0
    %4816 = vmatpush1.msra.mxu0 %v4690
    %4817 = vmatprep.subr.mxu0 0.0
    %4818 = vmatpush1.msra.mxu0 %v4691
    %4819 = vmatprep.subr.mxu0 0.0
    %4820 = vmatpush1.msra.mxu0 %v4692
    %4821 = vmatprep.subr.mxu0 0.0
    %4822 = vmatpush1.msra.mxu0 %v4693
    %4823 = vmatprep.subr.mxu0 0.0
    %4824 = vmatpush1.msra.mxu0 %v4694
    %4825 = vmatprep.subr.mxu0 0.0
    %4826 = vmatpush1.msra.mxu0 %v4695
    %4827 = vmatprep.subr.mxu0 0.0
    %4828 = vmatpush1.msra.mxu0 %v4696
    %4829 = vmatprep.subr.mxu0 0.0
    %4830 = vmatpush1.msra.mxu0 %v4697
    %4831 = vmatprep.subr.mxu0 0.0
    %4832 = vmatpush1.msra.mxu0 %v4698
    %4833 = vmatprep.subr.mxu0 0.0
    %4834 = vmatpush1.msra.mxu0 %v4699
    %4835 = vmatprep.subr.mxu0 0.0
    %4836 = vmatpush1.msra.mxu0 %v4700
    %4837 = vmatprep.subr.mxu0 0.0
    %4838 = vmatpush1.msra.mxu0 %v4701
    %4839 = vmatprep.subr.mxu0 0.0
    %4840 = vmatpush1.msra.mxu0 %v4702
    %4841 = vmatprep.subr.mxu0 0.0
    %4842 = vmatpush1.msra.mxu0 %v4703
    %4843 = vmatprep.subr.mxu0 0.0
    %4844 = vmatpush1.msra.mxu0 %v4704
    %4845 = vmatprep.subr.mxu0 0.0
    %4846 = vmatpush1.msra.mxu0 %v4705
    %4847 = vmatprep.mubr.f32.mxu0 %v4641
    %4848 = vmatmul.mubr.f32.gmra.mrb[0].mxu0 %v4640
    %v4849 = vpop.f32.mrb[0].mxu0
    %v4850 = vadd.f32 %v4780, %v4849
    %v4851 = vpop.f32.mrb[0].mxu0
    %4852 = vdwg.mxu0
    %vm4853 = vcmask 74752
    %v4854 = vsel %vm4853, %v4850, -inf
    %4855 = vmax.xlane.f32.xlu0 %v4854
    %v4856 = vpop.xlane.xlu0 %4855
    %v4857 = vsub.f32 %v4850, %v4856
    %v4858 = vmul.f32 %v4857, 1.442695
    %v4859 = vpow.pop %v4858
    %v4860 = vsel %vm4853, %v4859, 0.0
    %4861 = vadd.xlane.f32.xlu0 %v4860
    %v4862 = vpop.xlane.xlu0 %4861
    %v4863 = vrcp.pop %v4862
    %v4864 = vmul.f32 %v4859, %v4863
    %4865 = vst.msk [vmem:[#allocation20] sm:$0x3] %vm4853, %v4864
    // Predicated region
    $region98: #{lenet5_forward.1} parent=1 // pred_check
      _
    $region99: #{lenet5_forward.1} parent=1 // pred_check_branch
      %4867 = sbr.rel (0) target = $region101
    $region100: #{lenet5_forward.1} parent=1 // pred_region
      %s4869 = ssub.s32 32, 32
      %4870 = vsyncadd [#allocation4], %s4869
      %s4872 = sshll.u32 [#allocation20], 4
      %s4873 = int_to_ptr.vmem [resolvable:$true] %s4872
      %4875 = dma.vmem_to_hbm [thread:$0]  %s4873, 32, %s13, [#allocation4]
    $region101: #{lenet5_forward.1} parent=1 // pred_fallthru
      _
    // Predicated region
    $region102: #{lenet5_forward.1} parent=1 // pred_check
      _
    $region103: #{lenet5_forward.1} parent=1 // pred_check_branch
      %4877 = sbr.rel (0) target = $region105
    $region104: #{lenet5_forward.1} parent=1 // pred_region
      %4878 = dma.done [#allocation4], 32
    $region105: #{lenet5_forward.1} parent=1 // pred_fallthru
      _
    %4879 = vsyncpa [#allocation3], 1
    %4880 = vsyncpa [#allocation6], 1
    %4881 = vsyncpa [#allocation9], 1
    %4882 = vsyncpa [#allocation12], 1
    %4883 = vsyncpa [#allocation15], 1
    %4884 = vsyncpa [#allocation18], 1
    %4885 = vsyncpa [#allocation4], 1

</llo_original>
